<compile_context>
chip_gen: v7x
topology: tpu7x:2x2x1
jax: 0.10.0
libtpu: 0.0.40
codegen_flags: <defaults>
</compile_context>

<pallas_src>
import functools

import jax
import jax.numpy as jnp
from jax.experimental import pallas as pl
from jax.experimental.pallas import tpu as pltpu


# ------------------------------------------------------------------------ fused kernel
def _gcnet_kernel(g_ref, gjv_ref, x_ref, *refs, ng):
    """Whole GCNet forward for ONE batch element (grid axis = batch), VMEM-resident.

    g_ref:   (N_ngb-1, S_pad, S_pad) per-site one-hot gather matrices. Row 0 of NNsites
             is the identity neighbour and is not stored (handled by using `y` directly).
    gjv_ref: (S_pad, Ndim*S_pad) NgbSum gather with JumpVecs and the final 1/Ng folded in.
    x_ref:   (1, C0, S_pad) input activations for this batch element (lane = padded site).
    refs:    (w_0, b_0, ..., w_{L-1}, b_{L-1}, out)
             w_l: (cout_l*Ng, N_ngb*cin_l) symmetrized weights, cols ordered (j, c),
                  with the previous layer's GAvg 1/Ng folded in for l >= 1.
             b_l: (cout_l*Ng, 1)
             out: (1, c_last, Ndim*S_pad) lane-dense output slab.
    """
    o_ref = refs[-1]
    wb = refs[:-1]
    n_layers = len(wb) // 2
    n_gather = g_ref.shape[0]            # N_ngb - 1
    s_pad = x_ref.shape[-1]

    y = x_ref[0]                                                   # (C, S_pad) f32
    for l in range(n_layers):
        w = wb[2 * l][...]                                         # (M, N_ngb*C)
        b = wb[2 * l + 1][...]                                     # (M, 1)

        # Neighbour gather: j = 0 is the identity -> no matmul; j >= 1 via one-hot dots.
        blocks = [y]
        for j in range(n_gather):
            blocks.append(jnp.dot(y, g_ref[j], preferred_element_type=jnp.float32))
        xg = jnp.concatenate(blocks, axis=0)                       # (N_ngb*C, S_pad)

        # Single fused conv matmul (K = N_ngb*C) + bias + Softplus.
        acc = jnp.dot(w, xg, preferred_element_type=jnp.float32) + b
        acc = jnp.logaddexp(acc, 0.0)                              # Softplus

        # GAvg over the Ng group rows (row order (o, g); groups of Ng=8 rows are
        # sublane-tile aligned). The 1/Ng is folded into the next layer's weights /
        # into gjv, so this is a pure sum.
        cout = acc.shape[0] // ng
        y = acc.reshape(cout, ng, s_pad).sum(axis=1)               # (cout, S_pad)

    # NgbSum epilogue: one lane-dense matmul; out[c, d*S_pad + s].
    o_ref[0] = jnp.dot(y, gjv_ref[...], preferred_element_type=jnp.float32)


def _const_spec(arr):
    nd = arr.ndim
    return pl.BlockSpec(arr.shape, lambda b, _nd=nd: (0,) * _nd)


def _fused_call(x_pad, layer_w, layer_b, gmat, gjv, ng, c_last, ndim, s_pad):
    nb, c0, _ = x_pad.shape
    args = [gmat, gjv, x_pad]
    in_specs = [_const_spec(gmat), _const_spec(gjv),
                pl.BlockSpec((1, c0, s_pad), lambda b: (b, 0, 0))]
    for w, bias in zip(layer_w, layer_b):
        args += [w, bias]
        in_specs += [_const_spec(w), _const_spec(bias)]
    return pl.pallas_call(
        functools.partial(_gcnet_kernel, ng=ng),
        out_shape=jax.ShapeDtypeStruct((nb, c_last, ndim * s_pad), jnp.float32),
        grid=(nb,),
        in_specs=in_specs,
        out_specs=pl.BlockSpec((1, c_last, ndim * s_pad), lambda b: (b, 0, 0)),
        compiler_params=pltpu.CompilerParams(
            dimension_semantics=("parallel",),
            vmem_limit_bytes=32 * 1024 * 1024),
    )(*args)


# ---------------------------------------------------------------- one-time precompute
def prepare_gcnet_params(params, gnn_perms, nnsites, jump_vecs, min_pad=128):
    """RotateParams (symmetrized weights/bias, GAvg scale folded), per-site one-hot
    gather matrices (shared across batch, site axis padded to a lane-dense width), and
    the NgbSum gather with JumpVecs folded in.  Pure function of params/symmetry/lattice;
    computed once, costs nothing per forward call."""
    ng, n_ngb = gnn_perms.shape
    nsites = nnsites.shape[1]
    ndim = jump_vecs.shape[0]
    s_pad = max(min_pad, ((nsites + 127) // 128) * 128)

    layer_w, layer_b = [], []
    for idx, (psi, bias) in enumerate(params):
        cout, cin, _ = psi.shape
        gw = psi[:, :, gnn_perms]                            # (cout, cin, Ng, N_ngb)
        # rows ordered (o, g); columns ordered (j, c) to match the in-kernel stacking
        w = jnp.transpose(gw, (0, 2, 3, 1)).reshape(cout * ng, n_ngb * cin)
        if idx > 0:
            w = w / ng                                       # fold previous layer's GAvg
        layer_w.append(w.astype(jnp.float32))
        layer_b.append(jnp.repeat(bias, ng, axis=0).astype(jnp.float32))

    # onehot[j, s', s] = 1 iff NNsites[j, s] == s'; padded sites stay all-zero.
    onehot = (nnsites[:, None, :] == jnp.arange(nsites)[None, :, None]).astype(jnp.float32)
    onehot = jnp.pad(onehot, ((0, 0), (0, s_pad - nsites), (0, s_pad - nsites)))
    gmat = onehot[1:]                                        # identity row handled in-kernel

    # NgbSum gather with JumpVecs and the last GAvg 1/Ng folded in: (S_pad, Ndim*S_pad)
    gjv = jnp.einsum('dz,zxy->xdy', jump_vecs.astype(jnp.float32), onehot[1:]) / ng
    gjv = gjv.reshape(s_pad, ndim * s_pad)
    return layer_w, layer_b, gmat, gjv


def gcnet_forward(x, layer_w, layer_b, gmat, gjv, ng):
    """Hot path: one fused pallas_call (grid over batch); only layout plumbing outside."""
    nb, c0, s = x.shape
    s_pad = gmat.shape[-1]
    ndim = gjv.shape[-1] // s_pad
    c_last = layer_w[-1].shape[0] // ng
    x_pad = jnp.pad(x.astype(jnp.float32), ((0, 0), (0, 0), (0, s_pad - s)))
    out = _fused_call(x_pad, layer_w, layer_b, gmat, gjv, ng, c_last, ndim, s_pad)
    return out.reshape(nb, c_last, ndim, s_pad)[:, :, :, :s]     # (B, nchLast, Ndim, Nsites)


# ---------------------------------------------------------------------------- reference
def gcnet_reference(x, params, gnn_perms, nnsites, jump_vecs):
    """Pure-JAX reference mirroring the PyTorch forward (for correctness check)."""
    ng, n_ngb = gnn_perms.shape
    y = x
    for psi, bias in params:
        cout, cin, _ = psi.shape
        gw = psi[:, :, gnn_perms]                            # (cout, cin, Ng, N_ngb)
        gw = jnp.transpose(gw, (0, 2, 1, 3)).reshape(cout * ng, cin * n_ngb)
        gb = jnp.repeat(bias, ng, axis=0)
        xg = y[:, :, nnsites].reshape(y.shape[0], cin * n_ngb, y.shape[2])
        out = jnp.einsum('mk,bks->bms', gw, xg) + gb[None]
        out = jax.nn.softplus(out)
        y = out.reshape(out.shape[0], cout, ng, -1).sum(axis=2) / ng
    xg = y[:, :, nnsites[1:]]
    return jnp.einsum('dz,bczs->bcds', jump_vecs, xg)


# --------------------------------------------------------------------------------- main
if __name__ == "__main__":
    key = jax.random.PRNGKey(0)
    k_in, k_nn, k_perm, k_jump, k_params = jax.random.split(key, 5)

    # Small, forward-consistent shapes
    Nbatch, NSpec, Nsites = 2, 4, 16
    N_ngb = 5                 # coordination number 4 + the site itself
    Ng = 8                    # number of group operations
    Ndim = 3                  # spatial dimension for JumpVecs
    nl, nch, nchLast = 3, 8, 1
    mean, std = 1.0, 0.1

    # NNsites: row 0 is the identity (sites are their own 0th neighbor)
    nn_rest = jax.random.randint(k_nn, (N_ngb - 1, Nsites), 0, Nsites)
    NNsites = jnp.concatenate(
        [jnp.arange(Nsites, dtype=jnp.int32)[None, :], nn_rest.astype(jnp.int32)], axis=0)

    # GnnPerms: Ng permutations of the N_ngb neighbor slots
    perm_keys = jax.random.split(k_perm, Ng)
    GnnPerms = jnp.stack(
        [jax.random.permutation(pk, N_ngb) for pk in perm_keys]).astype(jnp.int32)

    # JumpVecs: (Ndim, coordination number)
    JumpVecs = jax.random.normal(k_jump, (Ndim, N_ngb - 1), jnp.float32)

    # Layer channel plan: NSpec->nch, nl x (nch->nch), nch->nchLast  (relu=False -> Softplus)
    channel_plan = [(NSpec, nch)] + [(nch, nch)] * nl + [(nch, nchLast)]
    params = []
    pkeys = jax.random.split(k_params, len(channel_plan))
    for (cin, cout), pk in zip(channel_plan, pkeys):
        kw, kb = jax.random.split(pk)
        psi = mean + std * jax.random.normal(kw, (cout, cin, N_ngb), jnp.float32)
        bias = mean + std * jax.random.normal(kb, (cout, 1), jnp.float32)
        params.append((psi, bias))

    # Input state (Nbatch, NSpec, Nsites)
    x = jax.random.normal(k_in, (Nbatch, NSpec, Nsites), jnp.float32)

    # One-time precompute (pure function of params + symmetry + lattice)
    layer_w, layer_b, gmat, gjv = prepare_gcnet_params(params, GnnPerms, NNsites, JumpVecs)

    # Fused forward (single Pallas kernel, parallel grid over batch)
    out = gcnet_forward(x, layer_w, layer_b, gmat, gjv, Ng)
    out = jax.block_until_ready(out)

    ref = gcnet_reference(x, params, GnnPerms, NNsites, JumpVecs)
    assert out.shape == (Nbatch, nchLast, Ndim, Nsites), out.shape
    assert jnp.allclose(out, ref, rtol=1e-4, atol=1e-4), "mismatch vs JAX reference"

    print("KERNEL_OK")
</pallas_src>

<mosaic_0001>
module attributes {stable_mosaic.version = 11 : i64} {
  func.func @_gcnet_kernel(%arg0: i32, %arg1: memref<4x128x128xf32, #tpu.memory_space<vmem>>, %arg2: memref<128x384xf32, #tpu.memory_space<vmem>>, %arg3: memref<1x4x128xf32, #tpu.memory_space<vmem>>, %arg4: memref<64x20xf32, #tpu.memory_space<vmem>>, %arg5: memref<64x1xf32, #tpu.memory_space<vmem>>, %arg6: memref<64x40xf32, #tpu.memory_space<vmem>>, %arg7: memref<64x1xf32, #tpu.memory_space<vmem>>, %arg8: memref<64x40xf32, #tpu.memory_space<vmem>>, %arg9: memref<64x1xf32, #tpu.memory_space<vmem>>, %arg10: memref<64x40xf32, #tpu.memory_space<vmem>>, %arg11: memref<64x1xf32, #tpu.memory_space<vmem>>, %arg12: memref<8x40xf32, #tpu.memory_space<vmem>>, %arg13: memref<8x1xf32, #tpu.memory_space<vmem>>, %arg14: memref<1x1x384xf32, #tpu.memory_space<vmem>>) attributes {dimension_semantics = [#tpu.dimension_semantics<parallel>], iteration_bounds = array<i64: 2>, scalar_prefetch = 0 : i64, scratch_operands = 0 : i64, tpu.core_type = #tpu.core_type<tc>, window_params = [{pipeline_mode = #tpu.pipeline_mode<synchronous>, transform_indices = @transform_0, window_bounds = array<i64: 4, 128, 128>}, {pipeline_mode = #tpu.pipeline_mode<synchronous>, transform_indices = @transform_1, window_bounds = array<i64: 128, 384>}, {transform_indices = @transform_2, window_bounds = array<i64: 1, 4, 128>}, {pipeline_mode = #tpu.pipeline_mode<synchronous>, transform_indices = @transform_3, window_bounds = array<i64: 64, 20>}, {pipeline_mode = #tpu.pipeline_mode<synchronous>, transform_indices = @transform_4, window_bounds = array<i64: 64, 1>}, {pipeline_mode = #tpu.pipeline_mode<synchronous>, transform_indices = @transform_5, window_bounds = array<i64: 64, 40>}, {pipeline_mode = #tpu.pipeline_mode<synchronous>, transform_indices = @transform_6, window_bounds = array<i64: 64, 1>}, {pipeline_mode = #tpu.pipeline_mode<synchronous>, transform_indices = @transform_7, window_bounds = array<i64: 64, 40>}, {pipeline_mode = #tpu.pipeline_mode<synchronous>, transform_indices = @transform_8, window_bounds = array<i64: 64, 1>}, {pipeline_mode = #tpu.pipeline_mode<synchronous>, transform_indices = @transform_9, window_bounds = array<i64: 64, 40>}, {pipeline_mode = #tpu.pipeline_mode<synchronous>, transform_indices = @transform_10, window_bounds = array<i64: 64, 1>}, {pipeline_mode = #tpu.pipeline_mode<synchronous>, transform_indices = @transform_11, window_bounds = array<i64: 8, 40>}, {pipeline_mode = #tpu.pipeline_mode<synchronous>, transform_indices = @transform_12, window_bounds = array<i64: 8, 1>}, {transform_indices = @transform_13, window_bounds = array<i64: 1, 1, 384>}]} {
    %c0 = arith.constant 0 : index
    %c0_0 = arith.constant 0 : index
    %c0_1 = arith.constant 0 : index
    %0 = vector.load %arg3[%c0, %c0_0, %c0_1] : memref<1x4x128xf32, #tpu.memory_space<vmem>>, vector<1x4x128xf32>
    %1 = vector.shape_cast %0 : vector<1x4x128xf32> to vector<4x128xf32>
    %c0_2 = arith.constant 0 : index
    %c0_3 = arith.constant 0 : index
    %2 = vector.load %arg4[%c0_2, %c0_3] : memref<64x20xf32, #tpu.memory_space<vmem>>, vector<64x20xf32>
    %c0_4 = arith.constant 0 : index
    %c0_5 = arith.constant 0 : index
    %3 = vector.load %arg5[%c0_4, %c0_5] : memref<64x1xf32, #tpu.memory_space<vmem>>, vector<64x1xf32>
    %c0_6 = arith.constant 0 : index
    %c0_7 = arith.constant 0 : index
    %c0_8 = arith.constant 0 : index
    %4 = vector.load %arg1[%c0_6, %c0_7, %c0_8] : memref<4x128x128xf32, #tpu.memory_space<vmem>>, vector<1x128x128xf32>
    %5 = vector.shape_cast %4 : vector<1x128x128xf32> to vector<128x128xf32>
    %cst = arith.constant dense<0.000000e+00> : vector<4x128xf32>
    %6 = tpu.matmul %1, %5, %cst {dimension_numbers = #tpu.dot_dimension_numbers<[1], [0], [0], [1], [0, 0, 1, 1], [], []>} : vector<4x128xf32>, vector<128x128xf32>, vector<4x128xf32> -> vector<4x128xf32>
    %c1 = arith.constant 1 : index
    %c0_9 = arith.constant 0 : index
    %c0_10 = arith.constant 0 : index
    %7 = vector.load %arg1[%c1, %c0_9, %c0_10] : memref<4x128x128xf32, #tpu.memory_space<vmem>>, vector<1x128x128xf32>
    %8 = vector.shape_cast %7 : vector<1x128x128xf32> to vector<128x128xf32>
    %cst_11 = arith.constant dense<0.000000e+00> : vector<4x128xf32>
    %9 = tpu.matmul %1, %8, %cst_11 {dimension_numbers = #tpu.dot_dimension_numbers<[1], [0], [0], [1], [0, 0, 1, 1], [], []>} : vector<4x128xf32>, vector<128x128xf32>, vector<4x128xf32> -> vector<4x128xf32>
    %c2 = arith.constant 2 : index
    %c0_12 = arith.constant 0 : index
    %c0_13 = arith.constant 0 : index
    %10 = vector.load %arg1[%c2, %c0_12, %c0_13] : memref<4x128x128xf32, #tpu.memory_space<vmem>>, vector<1x128x128xf32>
    %11 = vector.shape_cast %10 : vector<1x128x128xf32> to vector<128x128xf32>
    %cst_14 = arith.constant dense<0.000000e+00> : vector<4x128xf32>
    %12 = tpu.matmul %1, %11, %cst_14 {dimension_numbers = #tpu.dot_dimension_numbers<[1], [0], [0], [1], [0, 0, 1, 1], [], []>} : vector<4x128xf32>, vector<128x128xf32>, vector<4x128xf32> -> vector<4x128xf32>
    %c3 = arith.constant 3 : index
    %c0_15 = arith.constant 0 : index
    %c0_16 = arith.constant 0 : index
    %13 = vector.load %arg1[%c3, %c0_15, %c0_16] : memref<4x128x128xf32, #tpu.memory_space<vmem>>, vector<1x128x128xf32>
    %14 = vector.shape_cast %13 : vector<1x128x128xf32> to vector<128x128xf32>
    %cst_17 = arith.constant dense<0.000000e+00> : vector<4x128xf32>
    %15 = tpu.matmul %1, %14, %cst_17 {dimension_numbers = #tpu.dot_dimension_numbers<[1], [0], [0], [1], [0, 0, 1, 1], [], []>} : vector<4x128xf32>, vector<128x128xf32>, vector<4x128xf32> -> vector<4x128xf32>
    %16 = tpu.concatenate %1, %6, %9, %12, %15 in 0 : vector<4x128xf32>, vector<4x128xf32>, vector<4x128xf32>, vector<4x128xf32>, vector<4x128xf32> -> vector<20x128xf32>
    %cst_18 = arith.constant dense<0.000000e+00> : vector<64x128xf32>
    %17 = tpu.matmul %2, %16, %cst_18 {dimension_numbers = #tpu.dot_dimension_numbers<[1], [0], [0], [1], [0, 0, 1, 1], [], []>} : vector<64x20xf32>, vector<20x128xf32>, vector<64x128xf32> -> vector<64x128xf32>
    %18 = vector.broadcast %3 : vector<64x1xf32> to vector<64x128xf32>
    %19 = arith.addf %17, %18 : vector<64x128xf32>
    %cst_19 = arith.constant 0.000000e+00 : f32
    %20 = vector.broadcast %cst_19 : f32 to vector<64x128xf32>
    %21 = arith.maximumf %19, %20 : vector<64x128xf32>
    %22 = vector.broadcast %cst_19 : f32 to vector<64x128xf32>
    %23 = arith.subf %19, %22 : vector<64x128xf32>
    %24 = arith.cmpf one, %23, %23 : vector<64x128xf32>
    %25 = vector.broadcast %cst_19 : f32 to vector<64x128xf32>
    %26 = arith.addf %19, %25 : vector<64x128xf32>
    %27 = math.absf %23 : vector<64x128xf32>
    %cst_20 = arith.constant 0.000000e+00 : f32
    %28 = vector.broadcast %cst_20 : f32 to vector<64x128xf32>
    %29 = arith.subf %28, %27 : vector<64x128xf32>
    %30 = math.exp %29 : vector<64x128xf32>
    %31 = math.log1p %30 : vector<64x128xf32>
    %32 = arith.addf %21, %31 : vector<64x128xf32>
    %33 = arith.select %24, %26, %32 : vector<64x128xi1>, vector<64x128xf32>
    %34 = vector.shape_cast %33 : vector<64x128xf32> to vector<8x8x128xf32>
    %cst_21 = arith.constant dense<0.000000e+00> : vector<8x128xf32>
    %35 = vector.multi_reduction <add>, %34, %cst_21 [1] : vector<8x8x128xf32> to vector<8x128xf32>
    %c0_22 = arith.constant 0 : index
    %c0_23 = arith.constant 0 : index
    %36 = vector.load %arg6[%c0_22, %c0_23] : memref<64x40xf32, #tpu.memory_space<vmem>>, vector<64x40xf32>
    %c0_24 = arith.constant 0 : index
    %c0_25 = arith.constant 0 : index
    %37 = vector.load %arg7[%c0_24, %c0_25] : memref<64x1xf32, #tpu.memory_space<vmem>>, vector<64x1xf32>
    %c0_26 = arith.constant 0 : index
    %c0_27 = arith.constant 0 : index
    %c0_28 = arith.constant 0 : index
    %38 = vector.load %arg1[%c0_26, %c0_27, %c0_28] : memref<4x128x128xf32, #tpu.memory_space<vmem>>, vector<1x128x128xf32>
    %39 = vector.shape_cast %38 : vector<1x128x128xf32> to vector<128x128xf32>
    %cst_29 = arith.constant dense<0.000000e+00> : vector<8x128xf32>
    %40 = tpu.matmul %35, %39, %cst_29 {dimension_numbers = #tpu.dot_dimension_numbers<[1], [0], [0], [1], [0, 0, 1, 1], [], []>} : vector<8x128xf32>, vector<128x128xf32>, vector<8x128xf32> -> vector<8x128xf32>
    %c1_30 = arith.constant 1 : index
    %c0_31 = arith.constant 0 : index
    %c0_32 = arith.constant 0 : index
    %41 = vector.load %arg1[%c1_30, %c0_31, %c0_32] : memref<4x128x128xf32, #tpu.memory_space<vmem>>, vector<1x128x128xf32>
    %42 = vector.shape_cast %41 : vector<1x128x128xf32> to vector<128x128xf32>
    %cst_33 = arith.constant dense<0.000000e+00> : vector<8x128xf32>
    %43 = tpu.matmul %35, %42, %cst_33 {dimension_numbers = #tpu.dot_dimension_numbers<[1], [0], [0], [1], [0, 0, 1, 1], [], []>} : vector<8x128xf32>, vector<128x128xf32>, vector<8x128xf32> -> vector<8x128xf32>
    %c2_34 = arith.constant 2 : index
    %c0_35 = arith.constant 0 : index
    %c0_36 = arith.constant 0 : index
    %44 = vector.load %arg1[%c2_34, %c0_35, %c0_36] : memref<4x128x128xf32, #tpu.memory_space<vmem>>, vector<1x128x128xf32>
    %45 = vector.shape_cast %44 : vector<1x128x128xf32> to vector<128x128xf32>
    %cst_37 = arith.constant dense<0.000000e+00> : vector<8x128xf32>
    %46 = tpu.matmul %35, %45, %cst_37 {dimension_numbers = #tpu.dot_dimension_numbers<[1], [0], [0], [1], [0, 0, 1, 1], [], []>} : vector<8x128xf32>, vector<128x128xf32>, vector<8x128xf32> -> vector<8x128xf32>
    %c3_38 = arith.constant 3 : index
    %c0_39 = arith.constant 0 : index
    %c0_40 = arith.constant 0 : index
    %47 = vector.load %arg1[%c3_38, %c0_39, %c0_40] : memref<4x128x128xf32, #tpu.memory_space<vmem>>, vector<1x128x128xf32>
    %48 = vector.shape_cast %47 : vector<1x128x128xf32> to vector<128x128xf32>
    %cst_41 = arith.constant dense<0.000000e+00> : vector<8x128xf32>
    %49 = tpu.matmul %35, %48, %cst_41 {dimension_numbers = #tpu.dot_dimension_numbers<[1], [0], [0], [1], [0, 0, 1, 1], [], []>} : vector<8x128xf32>, vector<128x128xf32>, vector<8x128xf32> -> vector<8x128xf32>
    %50 = tpu.concatenate %35, %40, %43, %46, %49 in 0 : vector<8x128xf32>, vector<8x128xf32>, vector<8x128xf32>, vector<8x128xf32>, vector<8x128xf32> -> vector<40x128xf32>
    %cst_42 = arith.constant dense<0.000000e+00> : vector<64x128xf32>
    %51 = tpu.matmul %36, %50, %cst_42 {dimension_numbers = #tpu.dot_dimension_numbers<[1], [0], [0], [1], [0, 0, 1, 1], [], []>} : vector<64x40xf32>, vector<40x128xf32>, vector<64x128xf32> -> vector<64x128xf32>
    %52 = vector.broadcast %37 : vector<64x1xf32> to vector<64x128xf32>
    %53 = arith.addf %51, %52 : vector<64x128xf32>
    %cst_43 = arith.constant 0.000000e+00 : f32
    %54 = vector.broadcast %cst_43 : f32 to vector<64x128xf32>
    %55 = arith.maximumf %53, %54 : vector<64x128xf32>
    %56 = vector.broadcast %cst_43 : f32 to vector<64x128xf32>
    %57 = arith.subf %53, %56 : vector<64x128xf32>
    %58 = arith.cmpf one, %57, %57 : vector<64x128xf32>
    %59 = vector.broadcast %cst_43 : f32 to vector<64x128xf32>
    %60 = arith.addf %53, %59 : vector<64x128xf32>
    %61 = math.absf %57 : vector<64x128xf32>
    %cst_44 = arith.constant 0.000000e+00 : f32
    %62 = vector.broadcast %cst_44 : f32 to vector<64x128xf32>
    %63 = arith.subf %62, %61 : vector<64x128xf32>
    %64 = math.exp %63 : vector<64x128xf32>
    %65 = math.log1p %64 : vector<64x128xf32>
    %66 = arith.addf %55, %65 : vector<64x128xf32>
    %67 = arith.select %58, %60, %66 : vector<64x128xi1>, vector<64x128xf32>
    %68 = vector.shape_cast %67 : vector<64x128xf32> to vector<8x8x128xf32>
    %cst_45 = arith.constant dense<0.000000e+00> : vector<8x128xf32>
    %69 = vector.multi_reduction <add>, %68, %cst_45 [1] : vector<8x8x128xf32> to vector<8x128xf32>
    %c0_46 = arith.constant 0 : index
    %c0_47 = arith.constant 0 : index
    %70 = vector.load %arg8[%c0_46, %c0_47] : memref<64x40xf32, #tpu.memory_space<vmem>>, vector<64x40xf32>
    %c0_48 = arith.constant 0 : index
    %c0_49 = arith.constant 0 : index
    %71 = vector.load %arg9[%c0_48, %c0_49] : memref<64x1xf32, #tpu.memory_space<vmem>>, vector<64x1xf32>
    %c0_50 = arith.constant 0 : index
    %c0_51 = arith.constant 0 : index
    %c0_52 = arith.constant 0 : index
    %72 = vector.load %arg1[%c0_50, %c0_51, %c0_52] : memref<4x128x128xf32, #tpu.memory_space<vmem>>, vector<1x128x128xf32>
    %73 = vector.shape_cast %72 : vector<1x128x128xf32> to vector<128x128xf32>
    %cst_53 = arith.constant dense<0.000000e+00> : vector<8x128xf32>
    %74 = tpu.matmul %69, %73, %cst_53 {dimension_numbers = #tpu.dot_dimension_numbers<[1], [0], [0], [1], [0, 0, 1, 1], [], []>} : vector<8x128xf32>, vector<128x128xf32>, vector<8x128xf32> -> vector<8x128xf32>
    %c1_54 = arith.constant 1 : index
    %c0_55 = arith.constant 0 : index
    %c0_56 = arith.constant 0 : index
    %75 = vector.load %arg1[%c1_54, %c0_55, %c0_56] : memref<4x128x128xf32, #tpu.memory_space<vmem>>, vector<1x128x128xf32>
    %76 = vector.shape_cast %75 : vector<1x128x128xf32> to vector<128x128xf32>
    %cst_57 = arith.constant dense<0.000000e+00> : vector<8x128xf32>
    %77 = tpu.matmul %69, %76, %cst_57 {dimension_numbers = #tpu.dot_dimension_numbers<[1], [0], [0], [1], [0, 0, 1, 1], [], []>} : vector<8x128xf32>, vector<128x128xf32>, vector<8x128xf32> -> vector<8x128xf32>
    %c2_58 = arith.constant 2 : index
    %c0_59 = arith.constant 0 : index
    %c0_60 = arith.constant 0 : index
    %78 = vector.load %arg1[%c2_58, %c0_59, %c0_60] : memref<4x128x128xf32, #tpu.memory_space<vmem>>, vector<1x128x128xf32>
    %79 = vector.shape_cast %78 : vector<1x128x128xf32> to vector<128x128xf32>
    %cst_61 = arith.constant dense<0.000000e+00> : vector<8x128xf32>
    %80 = tpu.matmul %69, %79, %cst_61 {dimension_numbers = #tpu.dot_dimension_numbers<[1], [0], [0], [1], [0, 0, 1, 1], [], []>} : vector<8x128xf32>, vector<128x128xf32>, vector<8x128xf32> -> vector<8x128xf32>
    %c3_62 = arith.constant 3 : index
    %c0_63 = arith.constant 0 : index
    %c0_64 = arith.constant 0 : index
    %81 = vector.load %arg1[%c3_62, %c0_63, %c0_64] : memref<4x128x128xf32, #tpu.memory_space<vmem>>, vector<1x128x128xf32>
    %82 = vector.shape_cast %81 : vector<1x128x128xf32> to vector<128x128xf32>
    %cst_65 = arith.constant dense<0.000000e+00> : vector<8x128xf32>
    %83 = tpu.matmul %69, %82, %cst_65 {dimension_numbers = #tpu.dot_dimension_numbers<[1], [0], [0], [1], [0, 0, 1, 1], [], []>} : vector<8x128xf32>, vector<128x128xf32>, vector<8x128xf32> -> vector<8x128xf32>
    %84 = tpu.concatenate %69, %74, %77, %80, %83 in 0 : vector<8x128xf32>, vector<8x128xf32>, vector<8x128xf32>, vector<8x128xf32>, vector<8x128xf32> -> vector<40x128xf32>
    %cst_66 = arith.constant dense<0.000000e+00> : vector<64x128xf32>
    %85 = tpu.matmul %70, %84, %cst_66 {dimension_numbers = #tpu.dot_dimension_numbers<[1], [0], [0], [1], [0, 0, 1, 1], [], []>} : vector<64x40xf32>, vector<40x128xf32>, vector<64x128xf32> -> vector<64x128xf32>
    %86 = vector.broadcast %71 : vector<64x1xf32> to vector<64x128xf32>
    %87 = arith.addf %85, %86 : vector<64x128xf32>
    %cst_67 = arith.constant 0.000000e+00 : f32
    %88 = vector.broadcast %cst_67 : f32 to vector<64x128xf32>
    %89 = arith.maximumf %87, %88 : vector<64x128xf32>
    %90 = vector.broadcast %cst_67 : f32 to vector<64x128xf32>
    %91 = arith.subf %87, %90 : vector<64x128xf32>
    %92 = arith.cmpf one, %91, %91 : vector<64x128xf32>
    %93 = vector.broadcast %cst_67 : f32 to vector<64x128xf32>
    %94 = arith.addf %87, %93 : vector<64x128xf32>
    %95 = math.absf %91 : vector<64x128xf32>
    %cst_68 = arith.constant 0.000000e+00 : f32
    %96 = vector.broadcast %cst_68 : f32 to vector<64x128xf32>
    %97 = arith.subf %96, %95 : vector<64x128xf32>
    %98 = math.exp %97 : vector<64x128xf32>
    %99 = math.log1p %98 : vector<64x128xf32>
    %100 = arith.addf %89, %99 : vector<64x128xf32>
    %101 = arith.select %92, %94, %100 : vector<64x128xi1>, vector<64x128xf32>
    %102 = vector.shape_cast %101 : vector<64x128xf32> to vector<8x8x128xf32>
    %cst_69 = arith.constant dense<0.000000e+00> : vector<8x128xf32>
    %103 = vector.multi_reduction <add>, %102, %cst_69 [1] : vector<8x8x128xf32> to vector<8x128xf32>
    %c0_70 = arith.constant 0 : index
    %c0_71 = arith.constant 0 : index
    %104 = vector.load %arg10[%c0_70, %c0_71] : memref<64x40xf32, #tpu.memory_space<vmem>>, vector<64x40xf32>
    %c0_72 = arith.constant 0 : index
    %c0_73 = arith.constant 0 : index
    %105 = vector.load %arg11[%c0_72, %c0_73] : memref<64x1xf32, #tpu.memory_space<vmem>>, vector<64x1xf32>
    %c0_74 = arith.constant 0 : index
    %c0_75 = arith.constant 0 : index
    %c0_76 = arith.constant 0 : index
    %106 = vector.load %arg1[%c0_74, %c0_75, %c0_76] : memref<4x128x128xf32, #tpu.memory_space<vmem>>, vector<1x128x128xf32>
    %107 = vector.shape_cast %106 : vector<1x128x128xf32> to vector<128x128xf32>
    %cst_77 = arith.constant dense<0.000000e+00> : vector<8x128xf32>
    %108 = tpu.matmul %103, %107, %cst_77 {dimension_numbers = #tpu.dot_dimension_numbers<[1], [0], [0], [1], [0, 0, 1, 1], [], []>} : vector<8x128xf32>, vector<128x128xf32>, vector<8x128xf32> -> vector<8x128xf32>
    %c1_78 = arith.constant 1 : index
    %c0_79 = arith.constant 0 : index
    %c0_80 = arith.constant 0 : index
    %109 = vector.load %arg1[%c1_78, %c0_79, %c0_80] : memref<4x128x128xf32, #tpu.memory_space<vmem>>, vector<1x128x128xf32>
    %110 = vector.shape_cast %109 : vector<1x128x128xf32> to vector<128x128xf32>
    %cst_81 = arith.constant dense<0.000000e+00> : vector<8x128xf32>
    %111 = tpu.matmul %103, %110, %cst_81 {dimension_numbers = #tpu.dot_dimension_numbers<[1], [0], [0], [1], [0, 0, 1, 1], [], []>} : vector<8x128xf32>, vector<128x128xf32>, vector<8x128xf32> -> vector<8x128xf32>
    %c2_82 = arith.constant 2 : index
    %c0_83 = arith.constant 0 : index
    %c0_84 = arith.constant 0 : index
    %112 = vector.load %arg1[%c2_82, %c0_83, %c0_84] : memref<4x128x128xf32, #tpu.memory_space<vmem>>, vector<1x128x128xf32>
    %113 = vector.shape_cast %112 : vector<1x128x128xf32> to vector<128x128xf32>
    %cst_85 = arith.constant dense<0.000000e+00> : vector<8x128xf32>
    %114 = tpu.matmul %103, %113, %cst_85 {dimension_numbers = #tpu.dot_dimension_numbers<[1], [0], [0], [1], [0, 0, 1, 1], [], []>} : vector<8x128xf32>, vector<128x128xf32>, vector<8x128xf32> -> vector<8x128xf32>
    %c3_86 = arith.constant 3 : index
    %c0_87 = arith.constant 0 : index
    %c0_88 = arith.constant 0 : index
    %115 = vector.load %arg1[%c3_86, %c0_87, %c0_88] : memref<4x128x128xf32, #tpu.memory_space<vmem>>, vector<1x128x128xf32>
    %116 = vector.shape_cast %115 : vector<1x128x128xf32> to vector<128x128xf32>
    %cst_89 = arith.constant dense<0.000000e+00> : vector<8x128xf32>
    %117 = tpu.matmul %103, %116, %cst_89 {dimension_numbers = #tpu.dot_dimension_numbers<[1], [0], [0], [1], [0, 0, 1, 1], [], []>} : vector<8x128xf32>, vector<128x128xf32>, vector<8x128xf32> -> vector<8x128xf32>
    %118 = tpu.concatenate %103, %108, %111, %114, %117 in 0 : vector<8x128xf32>, vector<8x128xf32>, vector<8x128xf32>, vector<8x128xf32>, vector<8x128xf32> -> vector<40x128xf32>
    %cst_90 = arith.constant dense<0.000000e+00> : vector<64x128xf32>
    %119 = tpu.matmul %104, %118, %cst_90 {dimension_numbers = #tpu.dot_dimension_numbers<[1], [0], [0], [1], [0, 0, 1, 1], [], []>} : vector<64x40xf32>, vector<40x128xf32>, vector<64x128xf32> -> vector<64x128xf32>
    %120 = vector.broadcast %105 : vector<64x1xf32> to vector<64x128xf32>
    %121 = arith.addf %119, %120 : vector<64x128xf32>
    %cst_91 = arith.constant 0.000000e+00 : f32
    %122 = vector.broadcast %cst_91 : f32 to vector<64x128xf32>
    %123 = arith.maximumf %121, %122 : vector<64x128xf32>
    %124 = vector.broadcast %cst_91 : f32 to vector<64x128xf32>
    %125 = arith.subf %121, %124 : vector<64x128xf32>
    %126 = arith.cmpf one, %125, %125 : vector<64x128xf32>
    %127 = vector.broadcast %cst_91 : f32 to vector<64x128xf32>
    %128 = arith.addf %121, %127 : vector<64x128xf32>
    %129 = math.absf %125 : vector<64x128xf32>
    %cst_92 = arith.constant 0.000000e+00 : f32
    %130 = vector.broadcast %cst_92 : f32 to vector<64x128xf32>
    %131 = arith.subf %130, %129 : vector<64x128xf32>
    %132 = math.exp %131 : vector<64x128xf32>
    %133 = math.log1p %132 : vector<64x128xf32>
    %134 = arith.addf %123, %133 : vector<64x128xf32>
    %135 = arith.select %126, %128, %134 : vector<64x128xi1>, vector<64x128xf32>
    %136 = vector.shape_cast %135 : vector<64x128xf32> to vector<8x8x128xf32>
    %cst_93 = arith.constant dense<0.000000e+00> : vector<8x128xf32>
    %137 = vector.multi_reduction <add>, %136, %cst_93 [1] : vector<8x8x128xf32> to vector<8x128xf32>
    %c0_94 = arith.constant 0 : index
    %c0_95 = arith.constant 0 : index
    %138 = vector.load %arg12[%c0_94, %c0_95] : memref<8x40xf32, #tpu.memory_space<vmem>>, vector<8x40xf32>
    %c0_96 = arith.constant 0 : index
    %c0_97 = arith.constant 0 : index
    %139 = vector.load %arg13[%c0_96, %c0_97] : memref<8x1xf32, #tpu.memory_space<vmem>>, vector<8x1xf32>
    %c0_98 = arith.constant 0 : index
    %c0_99 = arith.constant 0 : index
    %c0_100 = arith.constant 0 : index
    %140 = vector.load %arg1[%c0_98, %c0_99, %c0_100] : memref<4x128x128xf32, #tpu.memory_space<vmem>>, vector<1x128x128xf32>
    %141 = vector.shape_cast %140 : vector<1x128x128xf32> to vector<128x128xf32>
    %cst_101 = arith.constant dense<0.000000e+00> : vector<8x128xf32>
    %142 = tpu.matmul %137, %141, %cst_101 {dimension_numbers = #tpu.dot_dimension_numbers<[1], [0], [0], [1], [0, 0, 1, 1], [], []>} : vector<8x128xf32>, vector<128x128xf32>, vector<8x128xf32> -> vector<8x128xf32>
    %c1_102 = arith.constant 1 : index
    %c0_103 = arith.constant 0 : index
    %c0_104 = arith.constant 0 : index
    %143 = vector.load %arg1[%c1_102, %c0_103, %c0_104] : memref<4x128x128xf32, #tpu.memory_space<vmem>>, vector<1x128x128xf32>
    %144 = vector.shape_cast %143 : vector<1x128x128xf32> to vector<128x128xf32>
    %cst_105 = arith.constant dense<0.000000e+00> : vector<8x128xf32>
    %145 = tpu.matmul %137, %144, %cst_105 {dimension_numbers = #tpu.dot_dimension_numbers<[1], [0], [0], [1], [0, 0, 1, 1], [], []>} : vector<8x128xf32>, vector<128x128xf32>, vector<8x128xf32> -> vector<8x128xf32>
    %c2_106 = arith.constant 2 : index
    %c0_107 = arith.constant 0 : index
    %c0_108 = arith.constant 0 : index
    %146 = vector.load %arg1[%c2_106, %c0_107, %c0_108] : memref<4x128x128xf32, #tpu.memory_space<vmem>>, vector<1x128x128xf32>
    %147 = vector.shape_cast %146 : vector<1x128x128xf32> to vector<128x128xf32>
    %cst_109 = arith.constant dense<0.000000e+00> : vector<8x128xf32>
    %148 = tpu.matmul %137, %147, %cst_109 {dimension_numbers = #tpu.dot_dimension_numbers<[1], [0], [0], [1], [0, 0, 1, 1], [], []>} : vector<8x128xf32>, vector<128x128xf32>, vector<8x128xf32> -> vector<8x128xf32>
    %c3_110 = arith.constant 3 : index
    %c0_111 = arith.constant 0 : index
    %c0_112 = arith.constant 0 : index
    %149 = vector.load %arg1[%c3_110, %c0_111, %c0_112] : memref<4x128x128xf32, #tpu.memory_space<vmem>>, vector<1x128x128xf32>
    %150 = vector.shape_cast %149 : vector<1x128x128xf32> to vector<128x128xf32>
    %cst_113 = arith.constant dense<0.000000e+00> : vector<8x128xf32>
    %151 = tpu.matmul %137, %150, %cst_113 {dimension_numbers = #tpu.dot_dimension_numbers<[1], [0], [0], [1], [0, 0, 1, 1], [], []>} : vector<8x128xf32>, vector<128x128xf32>, vector<8x128xf32> -> vector<8x128xf32>
    %152 = tpu.concatenate %137, %142, %145, %148, %151 in 0 : vector<8x128xf32>, vector<8x128xf32>, vector<8x128xf32>, vector<8x128xf32>, vector<8x128xf32> -> vector<40x128xf32>
    %cst_114 = arith.constant dense<0.000000e+00> : vector<8x128xf32>
    %153 = tpu.matmul %138, %152, %cst_114 {dimension_numbers = #tpu.dot_dimension_numbers<[1], [0], [0], [1], [0, 0, 1, 1], [], []>} : vector<8x40xf32>, vector<40x128xf32>, vector<8x128xf32> -> vector<8x128xf32>
    %154 = vector.broadcast %139 : vector<8x1xf32> to vector<8x128xf32>
    %155 = arith.addf %153, %154 : vector<8x128xf32>
    %cst_115 = arith.constant 0.000000e+00 : f32
    %156 = vector.broadcast %cst_115 : f32 to vector<8x128xf32>
    %157 = arith.maximumf %155, %156 : vector<8x128xf32>
    %158 = vector.broadcast %cst_115 : f32 to vector<8x128xf32>
    %159 = arith.subf %155, %158 : vector<8x128xf32>
    %160 = arith.cmpf one, %159, %159 : vector<8x128xf32>
    %161 = vector.broadcast %cst_115 : f32 to vector<8x128xf32>
    %162 = arith.addf %155, %161 : vector<8x128xf32>
    %163 = math.absf %159 : vector<8x128xf32>
    %cst_116 = arith.constant 0.000000e+00 : f32
    %164 = vector.broadcast %cst_116 : f32 to vector<8x128xf32>
    %165 = arith.subf %164, %163 : vector<8x128xf32>
    %166 = math.exp %165 : vector<8x128xf32>
    %167 = math.log1p %166 : vector<8x128xf32>
    %168 = arith.addf %157, %167 : vector<8x128xf32>
    %169 = arith.select %160, %162, %168 : vector<8x128xi1>, vector<8x128xf32>
    %170 = vector.shape_cast %169 : vector<8x128xf32> to vector<1x8x128xf32>
    %cst_117 = arith.constant dense<0.000000e+00> : vector<1x128xf32>
    %171 = vector.multi_reduction <add>, %170, %cst_117 [1] : vector<1x8x128xf32> to vector<1x128xf32>
    %c0_118 = arith.constant 0 : index
    %c0_119 = arith.constant 0 : index
    %172 = vector.load %arg2[%c0_118, %c0_119] : memref<128x384xf32, #tpu.memory_space<vmem>>, vector<128x384xf32>
    %cst_120 = arith.constant dense<0.000000e+00> : vector<1x384xf32>
    %173 = tpu.matmul %171, %172, %cst_120 {dimension_numbers = #tpu.dot_dimension_numbers<[1], [0], [0], [1], [0, 0, 1, 1], [], []>} : vector<1x128xf32>, vector<128x384xf32>, vector<1x384xf32> -> vector<1x384xf32>
    %c0_121 = arith.constant 0 : index
    %c0_122 = arith.constant 0 : index
    %c0_123 = arith.constant 0 : index
    %174 = vector.load %arg14[%c0_121, %c0_122, %c0_123] : memref<1x1x384xf32, #tpu.memory_space<vmem>>, vector<1x1x384xf32>
    %175 = vector.shape_cast %174 : vector<1x1x384xf32> to vector<1x384xf32>
    %176 = vector.shape_cast %173 : vector<1x384xf32> to vector<1x1x384xf32>
    tpu.vector_store %arg14[%c0_121, %c0_122, %c0_123], %176 {strides = array<i32>} : memref<1x1x384xf32, #tpu.memory_space<vmem>>, vector<1x1x384xf32>,
    return
  }
  func.func @transform_0(%arg0: i32) -> (i32, i32, i32) {
    %c0_i32 = arith.constant 0 : i32
    %c0_i32_0 = arith.constant 0 : i32
    %c0_i32_1 = arith.constant 0 : i32
    %c0_i32_2 = arith.constant 0 : i32
    return %c0_i32, %c0_i32_0, %c0_i32_1 : i32, i32, i32
  }
  func.func @transform_1(%arg0: i32) -> (i32, i32) {
    %c0_i32 = arith.constant 0 : i32
    %c0_i32_0 = arith.constant 0 : i32
    %c0_i32_1 = arith.constant 0 : i32
    return %c0_i32, %c0_i32_0 : i32, i32
  }
  func.func @transform_2(%arg0: i32) -> (i32, i32, i32) {
    %c0_i32 = arith.constant 0 : i32
    %c0_i32_0 = arith.constant 0 : i32
    %c0_i32_1 = arith.constant 0 : i32
    return %arg0, %c0_i32, %c0_i32_0 : i32, i32, i32
  }
  func.func @transform_3(%arg0: i32) -> (i32, i32) {
    %c0_i32 = arith.constant 0 : i32
    %c0_i32_0 = arith.constant 0 : i32
    %c0_i32_1 = arith.constant 0 : i32
    return %c0_i32, %c0_i32_0 : i32, i32
  }
  func.func @transform_4(%arg0: i32) -> (i32, i32) {
    %c0_i32 = arith.constant 0 : i32
    %c0_i32_0 = arith.constant 0 : i32
    %c0_i32_1 = arith.constant 0 : i32
    return %c0_i32, %c0_i32_0 : i32, i32
  }
  func.func @transform_5(%arg0: i32) -> (i32, i32) {
    %c0_i32 = arith.constant 0 : i32
    %c0_i32_0 = arith.constant 0 : i32
    %c0_i32_1 = arith.constant 0 : i32
    return %c0_i32, %c0_i32_0 : i32, i32
  }
  func.func @transform_6(%arg0: i32) -> (i32, i32) {
    %c0_i32 = arith.constant 0 : i32
    %c0_i32_0 = arith.constant 0 : i32
    %c0_i32_1 = arith.constant 0 : i32
    return %c0_i32, %c0_i32_0 : i32, i32
  }
  func.func @transform_7(%arg0: i32) -> (i32, i32) {
    %c0_i32 = arith.constant 0 : i32
    %c0_i32_0 = arith.constant 0 : i32
    %c0_i32_1 = arith.constant 0 : i32
    return %c0_i32, %c0_i32_0 : i32, i32
  }
  func.func @transform_8(%arg0: i32) -> (i32, i32) {
    %c0_i32 = arith.constant 0 : i32
    %c0_i32_0 = arith.constant 0 : i32
    %c0_i32_1 = arith.constant 0 : i32
    return %c0_i32, %c0_i32_0 : i32, i32
  }
  func.func @transform_9(%arg0: i32) -> (i32, i32) {
    %c0_i32 = arith.constant 0 : i32
    %c0_i32_0 = arith.constant 0 : i32
    %c0_i32_1 = arith.constant 0 : i32
    return %c0_i32, %c0_i32_0 : i32, i32
  }
  func.func @transform_10(%arg0: i32) -> (i32, i32) {
    %c0_i32 = arith.constant 0 : i32
    %c0_i32_0 = arith.constant 0 : i32
    %c0_i32_1 = arith.constant 0 : i32
    return %c0_i32, %c0_i32_0 : i32, i32
  }
  func.func @transform_11(%arg0: i32) -> (i32, i32) {
    %c0_i32 = arith.constant 0 : i32
    %c0_i32_0 = arith.constant 0 : i32
    %c0_i32_1 = arith.constant 0 : i32
    return %c0_i32, %c0_i32_0 : i32, i32
  }
  func.func @transform_12(%arg0: i32) -> (i32, i32) {
    %c0_i32 = arith.constant 0 : i32
    %c0_i32_0 = arith.constant 0 : i32
    %c0_i32_1 = arith.constant 0 : i32
    return %c0_i32, %c0_i32_0 : i32, i32
  }
  func.func @transform_13(%arg0: i32) -> (i32, i32, i32) {
    %c0_i32 = arith.constant 0 : i32
    %c0_i32_0 = arith.constant 0 : i32
    %c0_i32_1 = arith.constant 0 : i32
    return %arg0, %c0_i32, %c0_i32_0 : i32, i32, i32
  }
}

</mosaic_0001>

<llo_original>
// kernel: tpu_custom_call.1
$region0: #{tpu_custom_call.1}
  #allocation0 [shape = 'u32[]', space=smem, size = 0x4, offset = 0x4, fixed_abs, tag = 'smem constant byte address 0x4 - core index']
  #allocation1 [shape = 'u32[144,128]{1,0:T(1,128)}', space=vmem, size = 0x12000, scoped, tag = 'internal scratch']
  %s0 = inlined_call_operand.vmem [shape: f32[4,128,128], index: 0, kind: input, shape index: {}]
  %s1 = inlined_call_operand.hbm [shape: f32[128,384], index: 1, kind: input, shape index: {}]
  %s2 = inlined_call_operand.vmem [shape: f32[2,4,128], index: 2, kind: input, shape index: {}]
  %s3 = inlined_call_operand.vmem [shape: f32[64,20], index: 3, kind: input, shape index: {}]
  %s4 = inlined_call_operand.vmem [shape: f32[64,1], index: 4, kind: input, shape index: {}]
  %s5 = inlined_call_operand.vmem [shape: f32[64,40], index: 5, kind: input, shape index: {}]
  %s6 = inlined_call_operand.vmem [shape: f32[64,1], index: 6, kind: input, shape index: {}]
  %s7 = inlined_call_operand.vmem [shape: f32[64,40], index: 7, kind: input, shape index: {}]
  %s8 = inlined_call_operand.vmem [shape: f32[64,1], index: 8, kind: input, shape index: {}]
  %s9 = inlined_call_operand.vmem [shape: f32[64,40], index: 9, kind: input, shape index: {}]
  %s10 = inlined_call_operand.vmem [shape: f32[64,1], index: 10, kind: input, shape index: {}]
  %s11 = inlined_call_operand.vmem [shape: f32[8,40], index: 11, kind: input, shape index: {}]
  %s12 = inlined_call_operand.vmem [shape: f32[8,1], index: 12, kind: input, shape index: {}]
  %s13 = inlined_call_operand.hbm [shape: f32[2,1,384], index: 13, kind: output, shape index: {}]
  %s14 = sld [smem:[#allocation0]]
  $region89: #{tpu_custom_call.1} parent=0
    _
  %s16 = ssub.s32 1, %s14
  %s17 = scalar_select 0, %s16, %s14
  $region1: #{tpu_custom_call.1} parent=0
    #allocation2 [shape = 'u8[196608]{0}', space=vmem, size = 0x30000, scoped, tag = 'input window, operand 1, single buffered']
    #allocation3 [shape = 's32[2]{0}', space=sflag, size = 0x8, scoped, tag = 'scoped memory for tpu_custom_call.1']
    #allocation4 [shape = 's32[2]{0}', space=sflag, size = 0x8, scoped, tag = 'scoped memory for tpu_custom_call.1']
    #allocation5 [shape = 'u8[3072]{0}', space=vmem, size = 0xc00, scoped, tag = 'output window, operand 0']
    %18 = vsyncpa [#allocation3], 0
    %19 = vsyncpa [#allocation4], 0
    %s20 = scalar_lea.sflag [#allocation4], 1
    %21 = vsyncpa %s20, 0
    loop: start=0, step=1, limit=4
    $region2: #{tpu_custom_call.1} parent=1 // loop_pre_header
      _
    $region3: #{tpu_custom_call.1} parent=1 // loop_header
      %s23 = sphi 0, %s27
      %p24 = scmp.ge.s32.totalorder %s23, 4
      %s31 = sphi 0, %s31
      %s33 = sphi 0, %s31
      %s34 = sphi 0, %s33
      %s48 = sphi 0, %s34
      %s52 = sphi 0, %s52
      %s54 = sphi 0, %s52
      %s55 = sphi 0, %s54
      %s69 = sphi 0, %s55
      %s75 = sphi 0, %s77
      %s78 = sphi 0, %s75
      %s79 = sphi 0, %s78
      %s95 = sphi 0, %s79
      %s99 = sphi 0, %s99
      %s101 = sphi 0, %s99
      %s102 = sphi 0, %s101
      %s116 = sphi 0, %s102
      %s120 = sphi 0, %s120
      %s122 = sphi 0, %s120
      %s123 = sphi 0, %s122
      %s137 = sphi 0, %s123
      %s141 = sphi 0, %s141
      %s143 = sphi 0, %s141
      %s144 = sphi 0, %s143
      %s158 = sphi 0, %s144
      %s162 = sphi 0, %s162
      %s164 = sphi 0, %s162
      %s165 = sphi 0, %s164
      %s179 = sphi 0, %s165
      %s183 = sphi 0, %s183
      %s185 = sphi 0, %s183
      %s186 = sphi 0, %s185
      %s200 = sphi 0, %s186
      %s204 = sphi 0, %s204
      %s206 = sphi 0, %s204
      %s207 = sphi 0, %s206
      %s221 = sphi 0, %s207
      %s225 = sphi 0, %s225
      %s227 = sphi 0, %s225
      %s228 = sphi 0, %s227
      %s242 = sphi 0, %s228
      %s246 = sphi 0, %s246
      %s248 = sphi 0, %s246
      %s249 = sphi 0, %s248
      %s263 = sphi 0, %s249
      %s267 = sphi 0, %s267
      %s269 = sphi 0, %s267
      %s270 = sphi 0, %s269
      %s284 = sphi 0, %s270
      %s288 = sphi 0, %s288
      %s290 = sphi 0, %s288
      %s291 = sphi 0, %s290
      %s305 = sphi 0, %s291
      %s311 = sphi 0, %s313
      %s314 = sphi 0, %s311
      %s315 = sphi 0, %s314
      %s331 = sphi 0, %s315
    $region4: #{tpu_custom_call.1} parent=1 // loop_header_branch
      %26 = sbr.rel (%p24) target = $region8
    $region5: #{tpu_custom_call.1} parent=1 // loop_body
      %s28 = ssub.s32 %s23, 1
      %s29 = ssub.s32 %s23, 2
      %s30 = sadd.s32 %s23, 1
      %s32 = sadd.s32 %s31, 1
      %p35 = scmp.eq.s32.totalorder %s23, 1
      %p36 = scmp.ne.s32.totalorder %s31, %s33
      %p37 = scmp.eq.s32.totalorder %s23, 0
      %p38 = por %p36, %p37
      %p39 = scmp.ne.s32.totalorder %s31, %s33
      %p40 = scmp.eq.s32.totalorder %s28, 1
      %p41 = por %p39, %p40
      %p42 = scmp.ne.s32.totalorder %s33, %s34
      %p43 = scmp.eq.s32.totalorder %s28, 0
      %p44 = por %p42, %p43
      %p45 = scmp.ne.s32.totalorder %s33, %s34
      %p46 = scmp.eq.s32.totalorder %s29, 1
      %p47 = por %p45, %p46
      %p49 = scmp.ne.s32.totalorder %s34, %s48
      %p50 = scmp.eq.s32.totalorder %s29, 0
      %p51 = por %p49, %p50
      %s53 = sadd.s32 %s52, 1
      %p56 = scmp.eq.s32.totalorder %s23, 1
      %p57 = scmp.ne.s32.totalorder %s52, %s54
      %p58 = scmp.eq.s32.totalorder %s23, 0
      %p59 = por %p57, %p58
      %p60 = scmp.ne.s32.totalorder %s52, %s54
      %p61 = scmp.eq.s32.totalorder %s28, 1
      %p62 = por %p60, %p61
      %p63 = scmp.ne.s32.totalorder %s54, %s55
      %p64 = scmp.eq.s32.totalorder %s28, 0
      %p65 = por %p63, %p64
      %p66 = scmp.ne.s32.totalorder %s54, %s55
      %p67 = scmp.eq.s32.totalorder %s29, 1
      %p68 = por %p66, %p67
      %p70 = scmp.ne.s32.totalorder %s55, %s69
      %p71 = scmp.eq.s32.totalorder %s29, 0
      %p72 = por %p70, %p71
      %s73 = ssub.s32 %s23, %s30
      %p74 = scmp.eq.s32.totalorder %s73, 0
      %s76 = sadd.s32 %s75, 1
      %s77 = scalar_select %p74, %s75, %s76
      %p80 = pneg %p74
      %p81 = scmp.eq.s32.totalorder %s23, 1
      %p82 = por %p80, %p81
      %p83 = scmp.ne.s32.totalorder %s75, %s78
      %p84 = scmp.eq.s32.totalorder %s23, 0
      %p85 = por %p83, %p84
      %p86 = scmp.ne.s32.totalorder %s75, %s78
      %p87 = scmp.eq.s32.totalorder %s28, 1
      %p88 = por %p86, %p87
      %p89 = scmp.ne.s32.totalorder %s78, %s79
      %p90 = scmp.eq.s32.totalorder %s28, 0
      %p91 = por %p89, %p90
      %p92 = scmp.ne.s32.totalorder %s78, %s79
      %p93 = scmp.eq.s32.totalorder %s29, 1
      %p94 = por %p92, %p93
      %p96 = scmp.ne.s32.totalorder %s79, %s95
      %p97 = scmp.eq.s32.totalorder %s29, 0
      %p98 = por %p96, %p97
      %s100 = sadd.s32 %s99, 1
      %p103 = scmp.eq.s32.totalorder %s23, 1
      %p104 = scmp.ne.s32.totalorder %s99, %s101
      %p105 = scmp.eq.s32.totalorder %s23, 0
      %p106 = por %p104, %p105
      %p107 = scmp.ne.s32.totalorder %s99, %s101
      %p108 = scmp.eq.s32.totalorder %s28, 1
      %p109 = por %p107, %p108
      %p110 = scmp.ne.s32.totalorder %s101, %s102
      %p111 = scmp.eq.s32.totalorder %s28, 0
      %p112 = por %p110, %p111
      %p113 = scmp.ne.s32.totalorder %s101, %s102
      %p114 = scmp.eq.s32.totalorder %s29, 1
      %p115 = por %p113, %p114
      %p117 = scmp.ne.s32.totalorder %s102, %s116
      %p118 = scmp.eq.s32.totalorder %s29, 0
      %p119 = por %p117, %p118
      %s121 = sadd.s32 %s120, 1
      %p124 = scmp.eq.s32.totalorder %s23, 1
      %p125 = scmp.ne.s32.totalorder %s120, %s122
      %p126 = scmp.eq.s32.totalorder %s23, 0
      %p127 = por %p125, %p126
      %p128 = scmp.ne.s32.totalorder %s120, %s122
      %p129 = scmp.eq.s32.totalorder %s28, 1
      %p130 = por %p128, %p129
      %p131 = scmp.ne.s32.totalorder %s122, %s123
      %p132 = scmp.eq.s32.totalorder %s28, 0
      %p133 = por %p131, %p132
      %p134 = scmp.ne.s32.totalorder %s122, %s123
      %p135 = scmp.eq.s32.totalorder %s29, 1
      %p136 = por %p134, %p135
      %p138 = scmp.ne.s32.totalorder %s123, %s137
      %p139 = scmp.eq.s32.totalorder %s29, 0
      %p140 = por %p138, %p139
      %s142 = sadd.s32 %s141, 1
      %p145 = scmp.eq.s32.totalorder %s23, 1
      %p146 = scmp.ne.s32.totalorder %s141, %s143
      %p147 = scmp.eq.s32.totalorder %s23, 0
      %p148 = por %p146, %p147
      %p149 = scmp.ne.s32.totalorder %s141, %s143
      %p150 = scmp.eq.s32.totalorder %s28, 1
      %p151 = por %p149, %p150
      %p152 = scmp.ne.s32.totalorder %s143, %s144
      %p153 = scmp.eq.s32.totalorder %s28, 0
      %p154 = por %p152, %p153
      %p155 = scmp.ne.s32.totalorder %s143, %s144
      %p156 = scmp.eq.s32.totalorder %s29, 1
      %p157 = por %p155, %p156
      %p159 = scmp.ne.s32.totalorder %s144, %s158
      %p160 = scmp.eq.s32.totalorder %s29, 0
      %p161 = por %p159, %p160
      %s163 = sadd.s32 %s162, 1
      %p166 = scmp.eq.s32.totalorder %s23, 1
      %p167 = scmp.ne.s32.totalorder %s162, %s164
      %p168 = scmp.eq.s32.totalorder %s23, 0
      %p169 = por %p167, %p168
      %p170 = scmp.ne.s32.totalorder %s162, %s164
      %p171 = scmp.eq.s32.totalorder %s28, 1
      %p172 = por %p170, %p171
      %p173 = scmp.ne.s32.totalorder %s164, %s165
      %p174 = scmp.eq.s32.totalorder %s28, 0
      %p175 = por %p173, %p174
      %p176 = scmp.ne.s32.totalorder %s164, %s165
      %p177 = scmp.eq.s32.totalorder %s29, 1
      %p178 = por %p176, %p177
      %p180 = scmp.ne.s32.totalorder %s165, %s179
      %p181 = scmp.eq.s32.totalorder %s29, 0
      %p182 = por %p180, %p181
      %s184 = sadd.s32 %s183, 1
      %p187 = scmp.eq.s32.totalorder %s23, 1
      %p188 = scmp.ne.s32.totalorder %s183, %s185
      %p189 = scmp.eq.s32.totalorder %s23, 0
      %p190 = por %p188, %p189
      %p191 = scmp.ne.s32.totalorder %s183, %s185
      %p192 = scmp.eq.s32.totalorder %s28, 1
      %p193 = por %p191, %p192
      %p194 = scmp.ne.s32.totalorder %s185, %s186
      %p195 = scmp.eq.s32.totalorder %s28, 0
      %p196 = por %p194, %p195
      %p197 = scmp.ne.s32.totalorder %s185, %s186
      %p198 = scmp.eq.s32.totalorder %s29, 1
      %p199 = por %p197, %p198
      %p201 = scmp.ne.s32.totalorder %s186, %s200
      %p202 = scmp.eq.s32.totalorder %s29, 0
      %p203 = por %p201, %p202
      %s205 = sadd.s32 %s204, 1
      %p208 = scmp.eq.s32.totalorder %s23, 1
      %p209 = scmp.ne.s32.totalorder %s204, %s206
      %p210 = scmp.eq.s32.totalorder %s23, 0
      %p211 = por %p209, %p210
      %p212 = scmp.ne.s32.totalorder %s204, %s206
      %p213 = scmp.eq.s32.totalorder %s28, 1
      %p214 = por %p212, %p213
      %p215 = scmp.ne.s32.totalorder %s206, %s207
      %p216 = scmp.eq.s32.totalorder %s28, 0
      %p217 = por %p215, %p216
      %p218 = scmp.ne.s32.totalorder %s206, %s207
      %p219 = scmp.eq.s32.totalorder %s29, 1
      %p220 = por %p218, %p219
      %p222 = scmp.ne.s32.totalorder %s207, %s221
      %p223 = scmp.eq.s32.totalorder %s29, 0
      %p224 = por %p222, %p223
      %s226 = sadd.s32 %s225, 1
      %p229 = scmp.eq.s32.totalorder %s23, 1
      %p230 = scmp.ne.s32.totalorder %s225, %s227
      %p231 = scmp.eq.s32.totalorder %s23, 0
      %p232 = por %p230, %p231
      %p233 = scmp.ne.s32.totalorder %s225, %s227
      %p234 = scmp.eq.s32.totalorder %s28, 1
      %p235 = por %p233, %p234
      %p236 = scmp.ne.s32.totalorder %s227, %s228
      %p237 = scmp.eq.s32.totalorder %s28, 0
      %p238 = por %p236, %p237
      %p239 = scmp.ne.s32.totalorder %s227, %s228
      %p240 = scmp.eq.s32.totalorder %s29, 1
      %p241 = por %p239, %p240
      %p243 = scmp.ne.s32.totalorder %s228, %s242
      %p244 = scmp.eq.s32.totalorder %s29, 0
      %p245 = por %p243, %p244
      %s247 = sadd.s32 %s246, 1
      %p250 = scmp.eq.s32.totalorder %s23, 1
      %p251 = scmp.ne.s32.totalorder %s246, %s248
      %p252 = scmp.eq.s32.totalorder %s23, 0
      %p253 = por %p251, %p252
      %p254 = scmp.ne.s32.totalorder %s246, %s248
      %p255 = scmp.eq.s32.totalorder %s28, 1
      %p256 = por %p254, %p255
      %p257 = scmp.ne.s32.totalorder %s248, %s249
      %p258 = scmp.eq.s32.totalorder %s28, 0
      %p259 = por %p257, %p258
      %p260 = scmp.ne.s32.totalorder %s248, %s249
      %p261 = scmp.eq.s32.totalorder %s29, 1
      %p262 = por %p260, %p261
      %p264 = scmp.ne.s32.totalorder %s249, %s263
      %p265 = scmp.eq.s32.totalorder %s29, 0
      %p266 = por %p264, %p265
      %s268 = sadd.s32 %s267, 1
      %p271 = scmp.eq.s32.totalorder %s23, 1
      %p272 = scmp.ne.s32.totalorder %s267, %s269
      %p273 = scmp.eq.s32.totalorder %s23, 0
      %p274 = por %p272, %p273
      %p275 = scmp.ne.s32.totalorder %s267, %s269
      %p276 = scmp.eq.s32.totalorder %s28, 1
      %p277 = por %p275, %p276
      %p278 = scmp.ne.s32.totalorder %s269, %s270
      %p279 = scmp.eq.s32.totalorder %s28, 0
      %p280 = por %p278, %p279
      %p281 = scmp.ne.s32.totalorder %s269, %s270
      %p282 = scmp.eq.s32.totalorder %s29, 1
      %p283 = por %p281, %p282
      %p285 = scmp.ne.s32.totalorder %s270, %s284
      %p286 = scmp.eq.s32.totalorder %s29, 0
      %p287 = por %p285, %p286
      %s289 = sadd.s32 %s288, 1
      %p292 = scmp.eq.s32.totalorder %s23, 1
      %p293 = scmp.ne.s32.totalorder %s288, %s290
      %p294 = scmp.eq.s32.totalorder %s23, 0
      %p295 = por %p293, %p294
      %p296 = scmp.ne.s32.totalorder %s288, %s290
      %p297 = scmp.eq.s32.totalorder %s28, 1
      %p298 = por %p296, %p297
      %p299 = scmp.ne.s32.totalorder %s290, %s291
      %p300 = scmp.eq.s32.totalorder %s28, 0
      %p301 = por %p299, %p300
      %p302 = scmp.ne.s32.totalorder %s290, %s291
      %p303 = scmp.eq.s32.totalorder %s29, 1
      %p304 = por %p302, %p303
      %p306 = scmp.ne.s32.totalorder %s291, %s305
      %p307 = scmp.eq.s32.totalorder %s29, 0
      %p308 = por %p306, %p307
      %s309 = ssub.s32 %s23, %s30
      %p310 = scmp.eq.s32.totalorder %s309, 0
      %s312 = sadd.s32 %s311, 1
      %s313 = scalar_select %p310, %s311, %s312
      %p316 = pneg %p310
      %p317 = scmp.eq.s32.totalorder %s23, 1
      %p318 = por %p316, %p317
      %p319 = scmp.ne.s32.totalorder %s311, %s314
      %p320 = scmp.eq.s32.totalorder %s23, 0
      %p321 = por %p319, %p320
      %p322 = scmp.ne.s32.totalorder %s311, %s314
      %p323 = scmp.eq.s32.totalorder %s28, 1
      %p324 = por %p322, %p323
      %p325 = scmp.ne.s32.totalorder %s314, %s315
      %p326 = scmp.eq.s32.totalorder %s28, 0
      %p327 = por %p325, %p326
      %p328 = scmp.ne.s32.totalorder %s314, %s315
      %p329 = scmp.eq.s32.totalorder %s29, 1
      %p330 = por %p328, %p329
      %p332 = scmp.ne.s32.totalorder %s315, %s331
      %p333 = scmp.eq.s32.totalorder %s29, 0
      %p334 = por %p332, %p333
      %p335 = scmp.le.s32.totalorder 1, %s23
      %p336 = scmp.lt.s32.totalorder %s23, 3
      %p337 = pnand %p335, %p336
      %p338 = pneg %p337
      // Predicated region
      $region9: #{tpu_custom_call.1} parent=5 // pred_check
        _
      $region10: #{tpu_custom_call.1} parent=5 // pred_check_branch
        %340 = sbr.rel (%p337) target = $region12
      $region11: #{tpu_custom_call.1} parent=5 // pred_region
        %s341 = ssub.s32 %s23, 1
        // Predicated region
        $region13: #{tpu_custom_call.1} parent=11 // pred_check
          %p342 = pneg %p44
        $region14: #{tpu_custom_call.1} parent=11 // pred_check_branch
          %344 = sbr.rel (%p342) target = $region16
        $region15: #{tpu_custom_call.1} parent=11 // pred_region
          _
        $region16: #{tpu_custom_call.1} parent=11 // pred_fallthru
          _
        // Predicated region
        $region17: #{tpu_custom_call.1} parent=11 // pred_check
          %p345 = pneg %p65
        $region18: #{tpu_custom_call.1} parent=11 // pred_check_branch
          %347 = sbr.rel (%p345) target = $region20
        $region19: #{tpu_custom_call.1} parent=11 // pred_region
          %s349 = ssub.s32 6144, 6144
          %350 = vsyncadd [#allocation3], %s349
          %s351 = sshll.u32 [#allocation2], 4
          %s352 = int_to_ptr.vmem [resolvable:$true] %s351
          %357 = dma.hbm_to_vmem [thread:$0]  %s1, 6144, %s352, [#allocation3], 384, 384, 24
        $region20: #{tpu_custom_call.1} parent=11 // pred_fallthru
          _
        // Predicated region
        $region21: #{tpu_custom_call.1} parent=11 // pred_check
          %p358 = pneg %p112
        $region22: #{tpu_custom_call.1} parent=11 // pred_check_branch
          %360 = sbr.rel (%p358) target = $region24
        $region23: #{tpu_custom_call.1} parent=11 // pred_region
          _
        $region24: #{tpu_custom_call.1} parent=11 // pred_fallthru
          _
        // Predicated region
        $region25: #{tpu_custom_call.1} parent=11 // pred_check
          %p361 = pneg %p133
        $region26: #{tpu_custom_call.1} parent=11 // pred_check_branch
          %363 = sbr.rel (%p361) target = $region28
        $region27: #{tpu_custom_call.1} parent=11 // pred_region
          _
        $region28: #{tpu_custom_call.1} parent=11 // pred_fallthru
          _
        // Predicated region
        $region29: #{tpu_custom_call.1} parent=11 // pred_check
          %p364 = pneg %p154
        $region30: #{tpu_custom_call.1} parent=11 // pred_check_branch
          %366 = sbr.rel (%p364) target = $region32
        $region31: #{tpu_custom_call.1} parent=11 // pred_region
          _
        $region32: #{tpu_custom_call.1} parent=11 // pred_fallthru
          _
        // Predicated region
        $region33: #{tpu_custom_call.1} parent=11 // pred_check
          %p367 = pneg %p175
        $region34: #{tpu_custom_call.1} parent=11 // pred_check_branch
          %369 = sbr.rel (%p367) target = $region36
        $region35: #{tpu_custom_call.1} parent=11 // pred_region
          _
        $region36: #{tpu_custom_call.1} parent=11 // pred_fallthru
          _
        // Predicated region
        $region37: #{tpu_custom_call.1} parent=11 // pred_check
          %p370 = pneg %p196
        $region38: #{tpu_custom_call.1} parent=11 // pred_check_branch
          %372 = sbr.rel (%p370) target = $region40
        $region39: #{tpu_custom_call.1} parent=11 // pred_region
          _
        $region40: #{tpu_custom_call.1} parent=11 // pred_fallthru
          _
        // Predicated region
        $region41: #{tpu_custom_call.1} parent=11 // pred_check
          %p373 = pneg %p217
        $region42: #{tpu_custom_call.1} parent=11 // pred_check_branch
          %375 = sbr.rel (%p373) target = $region44
        $region43: #{tpu_custom_call.1} parent=11 // pred_region
          _
        $region44: #{tpu_custom_call.1} parent=11 // pred_fallthru
          _
        // Predicated region
        $region45: #{tpu_custom_call.1} parent=11 // pred_check
          %p376 = pneg %p238
        $region46: #{tpu_custom_call.1} parent=11 // pred_check_branch
          %378 = sbr.rel (%p376) target = $region48
        $region47: #{tpu_custom_call.1} parent=11 // pred_region
          _
        $region48: #{tpu_custom_call.1} parent=11 // pred_fallthru
          _
        // Predicated region
        $region49: #{tpu_custom_call.1} parent=11 // pred_check
          %p379 = pneg %p259
        $region50: #{tpu_custom_call.1} parent=11 // pred_check_branch
          %381 = sbr.rel (%p379) target = $region52
        $region51: #{tpu_custom_call.1} parent=11 // pred_region
          _
        $region52: #{tpu_custom_call.1} parent=11 // pred_fallthru
          _
        // Predicated region
        $region53: #{tpu_custom_call.1} parent=11 // pred_check
          %p382 = pneg %p280
        $region54: #{tpu_custom_call.1} parent=11 // pred_check_branch
          %384 = sbr.rel (%p382) target = $region56
        $region55: #{tpu_custom_call.1} parent=11 // pred_region
          _
        $region56: #{tpu_custom_call.1} parent=11 // pred_fallthru
          _
        // Predicated region
        $region57: #{tpu_custom_call.1} parent=11 // pred_check
          %p385 = pneg %p301
        $region58: #{tpu_custom_call.1} parent=11 // pred_check_branch
          %387 = sbr.rel (%p385) target = $region60
        $region59: #{tpu_custom_call.1} parent=11 // pred_region
          _
        $region60: #{tpu_custom_call.1} parent=11 // pred_fallthru
          _
      $region12: #{tpu_custom_call.1} parent=5 // pred_fallthru
        _
      %p388 = scmp.lt.s32.totalorder %s23, 2
      // Predicated region
      $region61: #{tpu_custom_call.1} parent=5 // pred_check
        %p389 = pneg %p388
      $region62: #{tpu_custom_call.1} parent=5 // pred_check_branch
        %391 = sbr.rel (%p389) target = $region64
      $region63: #{tpu_custom_call.1} parent=5 // pred_region
        // Predicated region
        $region65: #{tpu_custom_call.1} parent=63 // pred_check
          %p392 = pneg %p85
        $region66: #{tpu_custom_call.1} parent=63 // pred_check_branch
          %394 = sbr.rel (%p392) target = $region68
        $region67: #{tpu_custom_call.1} parent=63 // pred_region
          %p395 = scmp.lt.s32.totalorder %s23, 1
          %s396 = scalar_select %p395, %s23, 1
          %s397 = smul.addr %s396, 4
          %s398 = scalar_lea.vmem %s2, %s397
        $region68: #{tpu_custom_call.1} parent=63 // pred_fallthru
          _
      $region64: #{tpu_custom_call.1} parent=5 // pred_fallthru
        _
      %p399 = scmp.le.s32.totalorder 1, %s23
      %p400 = scmp.lt.s32.totalorder %s23, 3
      %p401 = pnand %p399, %p400
      %p402 = pneg %p401
      // Predicated region
      $region69: #{tpu_custom_call.1} parent=5 // pred_check
        _
      $region70: #{tpu_custom_call.1} parent=5 // pred_check_branch
        %404 = sbr.rel (%p401) target = $region72
      $region71: #{tpu_custom_call.1} parent=5 // pred_region
        %s405 = ssub.s32 %s23, 1
        // Predicated region
        $region73: #{tpu_custom_call.1} parent=71 // pred_check
          %p406 = pneg %p65
        $region74: #{tpu_custom_call.1} parent=71 // pred_check_branch
          %408 = sbr.rel (%p406) target = $region76
        $region75: #{tpu_custom_call.1} parent=71 // pred_region
          %409 = dma.done [#allocation3], 6144
        $region76: #{tpu_custom_call.1} parent=71 // pred_fallthru
          _
        %p410 = pneg %p44
        %p411 = pneg %p41
        %p412 = pneg %p65
        %p413 = pneg %p62
        %p414 = scmp.lt.s32.totalorder %s28, 1
        %s415 = scalar_select %p414, %s28, 1
        %s416 = smul.addr %s415, 4
        %s417 = scalar_lea.vmem %s2, %s416
        %p418 = pneg %p91
        %p419 = pneg %p88
        %p420 = pneg %p112
        %p421 = pneg %p109
        %p422 = pneg %p133
        %p423 = pneg %p130
        %p424 = pneg %p154
        %p425 = pneg %p151
        %p426 = pneg %p175
        %p427 = pneg %p172
        %p428 = pneg %p196
        %p429 = pneg %p193
        %p430 = pneg %p217
        %p431 = pneg %p214
        %p432 = pneg %p238
        %p433 = pneg %p235
        %p434 = pneg %p259
        %p435 = pneg %p256
        %p436 = pneg %p280
        %p437 = pneg %p277
        %p438 = pneg %p301
        %p439 = pneg %p298
        %p440 = pneg %p327
        %p441 = pneg %p324
        %s442 = sand.u32 %s314, 1
        %s443 = scalar_lea.sflag [#allocation4], %s442
        %s444 = sand.u32 %s314, 1
        %s445 = smul.addr %s444, 3
        %s446 = scalar_lea.vmem [#allocation5], %s445
        %p447 = scmp.lt.s32.totalorder %s28, 1
        %s448 = scalar_select %p447, %s28, 1
        %s449 = smul.addr %s448, 4
        %s450 = scalar_lea.vmem %s2, %s449
        %v451 = vld [vmem:[%s450] sm:$0xf]
        %v452 = vld [vmem:[%s3] sm:$0xff]
        %v453 = vld [vmem:[%s3 + $0x8] sm:$0xff]
        %v454 = vld [vmem:[%s3 + $0x10] sm:$0xff]
        %v455 = vld [vmem:[%s3 + $0x18] sm:$0xff]
        %v456 = vld [vmem:[%s3 + $0x20] sm:$0xff]
        %v457 = vld [vmem:[%s3 + $0x28] sm:$0xff]
        %v458 = vld [vmem:[%s3 + $0x30] sm:$0xff]
        %v459 = vld [vmem:[%s3 + $0x38] sm:$0xff]
        %v460 = vld [vmem:[%s4] sm:$0xff]
        %v461 = vld [vmem:[%s4 + $0x8] sm:$0xff]
        %v462 = vld [vmem:[%s4 + $0x10] sm:$0xff]
        %v463 = vld [vmem:[%s4 + $0x18] sm:$0xff]
        %v464 = vld [vmem:[%s4 + $0x20] sm:$0xff]
        %v465 = vld [vmem:[%s4 + $0x28] sm:$0xff]
        %v466 = vld [vmem:[%s4 + $0x30] sm:$0xff]
        %v467 = vld [vmem:[%s4 + $0x38] sm:$0xff]
        %v468 = vld [vmem:[%s0] sm:$0xff]
        %v469 = vld [vmem:[%s0 + $0x8] sm:$0xff]
        %v470 = vld [vmem:[%s0 + $0x10] sm:$0xff]
        %v471 = vld [vmem:[%s0 + $0x18] sm:$0xff]
        %v472 = vld [vmem:[%s0 + $0x20] sm:$0xff]
        %v473 = vld [vmem:[%s0 + $0x28] sm:$0xff]
        %v474 = vld [vmem:[%s0 + $0x30] sm:$0xff]
        %v475 = vld [vmem:[%s0 + $0x38] sm:$0xff]
        %v476 = vld [vmem:[%s0 + $0x40] sm:$0xff]
        %v477 = vld [vmem:[%s0 + $0x48] sm:$0xff]
        %v478 = vld [vmem:[%s0 + $0x50] sm:$0xff]
        %v479 = vld [vmem:[%s0 + $0x58] sm:$0xff]
        %v480 = vld [vmem:[%s0 + $0x60] sm:$0xff]
        %v481 = vld [vmem:[%s0 + $0x68] sm:$0xff]
        %v482 = vld [vmem:[%s0 + $0x70] sm:$0xff]
        %v483 = vld [vmem:[%s0 + $0x78] sm:$0xff]
        %484 = vmatprep.subr.mxu0 0.0
        %485 = vmatpush1.msra.mxu0 %v468
        %486 = vmatprep.subr.mxu0 0.0
        %487 = vmatpush1.msra.mxu0 %v469
        %488 = vmatprep.subr.mxu0 0.0
        %489 = vmatpush1.msra.mxu0 %v470
        %490 = vmatprep.subr.mxu0 0.0
        %491 = vmatpush1.msra.mxu0 %v471
        %492 = vmatprep.subr.mxu0 0.0
        %493 = vmatpush1.msra.mxu0 %v472
        %494 = vmatprep.subr.mxu0 0.0
        %495 = vmatpush1.msra.mxu0 %v473
        %496 = vmatprep.subr.mxu0 0.0
        %497 = vmatpush1.msra.mxu0 %v474
        %498 = vmatprep.subr.mxu0 0.0
        %499 = vmatpush1.msra.mxu0 %v475
        %500 = vmatprep.subr.mxu0 0.0
        %501 = vmatpush1.msra.mxu0 %v476
        %502 = vmatprep.subr.mxu0 0.0
        %503 = vmatpush1.msra.mxu0 %v477
        %504 = vmatprep.subr.mxu0 0.0
        %505 = vmatpush1.msra.mxu0 %v478
        %506 = vmatprep.subr.mxu0 0.0
        %507 = vmatpush1.msra.mxu0 %v479
        %508 = vmatprep.subr.mxu0 0.0
        %509 = vmatpush1.msra.mxu0 %v480
        %510 = vmatprep.subr.mxu0 0.0
        %511 = vmatpush1.msra.mxu0 %v481
        %512 = vmatprep.subr.mxu0 0.0
        %513 = vmatpush1.msra.mxu0 %v482
        %514 = vmatprep.subr.mxu0 0.0
        %515 = vmatpush1.msra.mxu0 %v483
        %516 = vmatprep.subr.mxu0 0.0
        %517 = vmatpush1.msra.mxu0 0.0
        %518 = vmatprep.subr.mxu0 0.0
        %519 = vmatpush1.msra.mxu0 0.0
        %520 = vmatprep.subr.mxu0 0.0
        %521 = vmatpush1.msra.mxu0 0.0
        %522 = vmatprep.subr.mxu0 0.0
        %523 = vmatpush1.msra.mxu0 0.0
        %524 = vmatprep.subr.mxu0 0.0
        %525 = vmatpush1.msra.mxu0 0.0
        %526 = vmatprep.subr.mxu0 0.0
        %527 = vmatpush1.msra.mxu0 0.0
        %528 = vmatprep.subr.mxu0 0.0
        %529 = vmatpush1.msra.mxu0 0.0
        %530 = vmatprep.subr.mxu0 0.0
        %531 = vmatpush1.msra.mxu0 0.0
        %532 = vmatprep.subr.mxu0 0.0
        %533 = vmatpush1.msra.mxu0 0.0
        %534 = vmatprep.subr.mxu0 0.0
        %535 = vmatpush1.msra.mxu0 0.0
        %536 = vmatprep.subr.mxu0 0.0
        %537 = vmatpush1.msra.mxu0 0.0
        %538 = vmatprep.subr.mxu0 0.0
        %539 = vmatpush1.msra.mxu0 0.0
        %540 = vmatprep.subr.mxu0 0.0
        %541 = vmatpush1.msra.mxu0 0.0
        %542 = vmatprep.subr.mxu0 0.0
        %543 = vmatpush1.msra.mxu0 0.0
        %544 = vmatprep.subr.mxu0 0.0
        %545 = vmatpush1.msra.mxu0 0.0
        %546 = vmatprep.subr.mxu0 0.0
        %547 = vmatpush1.msra.mxu0 0.0
        %548 = vmatprep.mubr.f32.mxu0 0.0
        %549 = vmatmul.mubr.f32.gmra.mrb[0].mxu0 %v451
        %v550 = vpop.f32.mrb[0].mxu0
        %v551 = vadd.f32 0.0, %v550
        %v552 = vpop.f32.mrb[0].mxu0
        %553 = vdwg.mxu0
        %s554 = scalar_lea.vmem %s0, 128
        %v555 = vld [vmem:[%s554] sm:$0xff]
        %v556 = vld [vmem:[%s554 + $0x8] sm:$0xff]
        %v557 = vld [vmem:[%s554 + $0x10] sm:$0xff]
        %v558 = vld [vmem:[%s554 + $0x18] sm:$0xff]
        %v559 = vld [vmem:[%s554 + $0x20] sm:$0xff]
        %v560 = vld [vmem:[%s554 + $0x28] sm:$0xff]
        %v561 = vld [vmem:[%s554 + $0x30] sm:$0xff]
        %v562 = vld [vmem:[%s554 + $0x38] sm:$0xff]
        %v563 = vld [vmem:[%s554 + $0x40] sm:$0xff]
        %v564 = vld [vmem:[%s554 + $0x48] sm:$0xff]
        %v565 = vld [vmem:[%s554 + $0x50] sm:$0xff]
        %v566 = vld [vmem:[%s554 + $0x58] sm:$0xff]
        %v567 = vld [vmem:[%s554 + $0x60] sm:$0xff]
        %v568 = vld [vmem:[%s554 + $0x68] sm:$0xff]
        %v569 = vld [vmem:[%s554 + $0x70] sm:$0xff]
        %v570 = vld [vmem:[%s554 + $0x78] sm:$0xff]
        %571 = vmatprep.subr.mxu0 0.0
        %572 = vmatpush1.msra.mxu0 %v555
        %573 = vmatprep.subr.mxu0 0.0
        %574 = vmatpush1.msra.mxu0 %v556
        %575 = vmatprep.subr.mxu0 0.0
        %576 = vmatpush1.msra.mxu0 %v557
        %577 = vmatprep.subr.mxu0 0.0
        %578 = vmatpush1.msra.mxu0 %v558
        %579 = vmatprep.subr.mxu0 0.0
        %580 = vmatpush1.msra.mxu0 %v559
        %581 = vmatprep.subr.mxu0 0.0
        %582 = vmatpush1.msra.mxu0 %v560
        %583 = vmatprep.subr.mxu0 0.0
        %584 = vmatpush1.msra.mxu0 %v561
        %585 = vmatprep.subr.mxu0 0.0
        %586 = vmatpush1.msra.mxu0 %v562
        %587 = vmatprep.subr.mxu0 0.0
        %588 = vmatpush1.msra.mxu0 %v563
        %589 = vmatprep.subr.mxu0 0.0
        %590 = vmatpush1.msra.mxu0 %v564
        %591 = vmatprep.subr.mxu0 0.0
        %592 = vmatpush1.msra.mxu0 %v565
        %593 = vmatprep.subr.mxu0 0.0
        %594 = vmatpush1.msra.mxu0 %v566
        %595 = vmatprep.subr.mxu0 0.0
        %596 = vmatpush1.msra.mxu0 %v567
        %597 = vmatprep.subr.mxu0 0.0
        %598 = vmatpush1.msra.mxu0 %v568
        %599 = vmatprep.subr.mxu0 0.0
        %600 = vmatpush1.msra.mxu0 %v569
        %601 = vmatprep.subr.mxu0 0.0
        %602 = vmatpush1.msra.mxu0 %v570
        %603 = vmatprep.subr.mxu0 0.0
        %604 = vmatpush1.msra.mxu0 0.0
        %605 = vmatprep.subr.mxu0 0.0
        %606 = vmatpush1.msra.mxu0 0.0
        %607 = vmatprep.subr.mxu0 0.0
        %608 = vmatpush1.msra.mxu0 0.0
        %609 = vmatprep.subr.mxu0 0.0
        %610 = vmatpush1.msra.mxu0 0.0
        %611 = vmatprep.subr.mxu0 0.0
        %612 = vmatpush1.msra.mxu0 0.0
        %613 = vmatprep.subr.mxu0 0.0
        %614 = vmatpush1.msra.mxu0 0.0
        %615 = vmatprep.subr.mxu0 0.0
        %616 = vmatpush1.msra.mxu0 0.0
        %617 = vmatprep.subr.mxu0 0.0
        %618 = vmatpush1.msra.mxu0 0.0
        %619 = vmatprep.subr.mxu0 0.0
        %620 = vmatpush1.msra.mxu0 0.0
        %621 = vmatprep.subr.mxu0 0.0
        %622 = vmatpush1.msra.mxu0 0.0
        %623 = vmatprep.subr.mxu0 0.0
        %624 = vmatpush1.msra.mxu0 0.0
        %625 = vmatprep.subr.mxu0 0.0
        %626 = vmatpush1.msra.mxu0 0.0
        %627 = vmatprep.subr.mxu0 0.0
        %628 = vmatpush1.msra.mxu0 0.0
        %629 = vmatprep.subr.mxu0 0.0
        %630 = vmatpush1.msra.mxu0 0.0
        %631 = vmatprep.subr.mxu0 0.0
        %632 = vmatpush1.msra.mxu0 0.0
        %633 = vmatprep.subr.mxu0 0.0
        %634 = vmatpush1.msra.mxu0 0.0
        %635 = vmatprep.mubr.f32.mxu0 0.0
        %636 = vmatmul.mubr.f32.gmra.mrb[0].mxu0 %v451
        %v637 = vpop.f32.mrb[0].mxu0
        %v638 = vadd.f32 0.0, %v637
        %v639 = vpop.f32.mrb[0].mxu0
        %640 = vdwg.mxu0
        %s641 = scalar_lea.vmem %s0, 256
        %v642 = vld [vmem:[%s641] sm:$0xff]
        %v643 = vld [vmem:[%s641 + $0x8] sm:$0xff]
        %v644 = vld [vmem:[%s641 + $0x10] sm:$0xff]
        %v645 = vld [vmem:[%s641 + $0x18] sm:$0xff]
        %v646 = vld [vmem:[%s641 + $0x20] sm:$0xff]
        %v647 = vld [vmem:[%s641 + $0x28] sm:$0xff]
        %v648 = vld [vmem:[%s641 + $0x30] sm:$0xff]
        %v649 = vld [vmem:[%s641 + $0x38] sm:$0xff]
        %v650 = vld [vmem:[%s641 + $0x40] sm:$0xff]
        %v651 = vld [vmem:[%s641 + $0x48] sm:$0xff]
        %v652 = vld [vmem:[%s641 + $0x50] sm:$0xff]
        %v653 = vld [vmem:[%s641 + $0x58] sm:$0xff]
        %v654 = vld [vmem:[%s641 + $0x60] sm:$0xff]
        %v655 = vld [vmem:[%s641 + $0x68] sm:$0xff]
        %v656 = vld [vmem:[%s641 + $0x70] sm:$0xff]
        %v657 = vld [vmem:[%s641 + $0x78] sm:$0xff]
        %658 = vmatprep.subr.mxu0 0.0
        %659 = vmatpush1.msra.mxu0 %v642
        %660 = vmatprep.subr.mxu0 0.0
        %661 = vmatpush1.msra.mxu0 %v643
        %662 = vmatprep.subr.mxu0 0.0
        %663 = vmatpush1.msra.mxu0 %v644
        %664 = vmatprep.subr.mxu0 0.0
        %665 = vmatpush1.msra.mxu0 %v645
        %666 = vmatprep.subr.mxu0 0.0
        %667 = vmatpush1.msra.mxu0 %v646
        %668 = vmatprep.subr.mxu0 0.0
        %669 = vmatpush1.msra.mxu0 %v647
        %670 = vmatprep.subr.mxu0 0.0
        %671 = vmatpush1.msra.mxu0 %v648
        %672 = vmatprep.subr.mxu0 0.0
        %673 = vmatpush1.msra.mxu0 %v649
        %674 = vmatprep.subr.mxu0 0.0
        %675 = vmatpush1.msra.mxu0 %v650
        %676 = vmatprep.subr.mxu0 0.0
        %677 = vmatpush1.msra.mxu0 %v651
        %678 = vmatprep.subr.mxu0 0.0
        %679 = vmatpush1.msra.mxu0 %v652
        %680 = vmatprep.subr.mxu0 0.0
        %681 = vmatpush1.msra.mxu0 %v653
        %682 = vmatprep.subr.mxu0 0.0
        %683 = vmatpush1.msra.mxu0 %v654
        %684 = vmatprep.subr.mxu0 0.0
        %685 = vmatpush1.msra.mxu0 %v655
        %686 = vmatprep.subr.mxu0 0.0
        %687 = vmatpush1.msra.mxu0 %v656
        %688 = vmatprep.subr.mxu0 0.0
        %689 = vmatpush1.msra.mxu0 %v657
        %690 = vmatprep.subr.mxu0 0.0
        %691 = vmatpush1.msra.mxu0 0.0
        %692 = vmatprep.subr.mxu0 0.0
        %693 = vmatpush1.msra.mxu0 0.0
        %694 = vmatprep.subr.mxu0 0.0
        %695 = vmatpush1.msra.mxu0 0.0
        %696 = vmatprep.subr.mxu0 0.0
        %697 = vmatpush1.msra.mxu0 0.0
        %698 = vmatprep.subr.mxu0 0.0
        %699 = vmatpush1.msra.mxu0 0.0
        %700 = vmatprep.subr.mxu0 0.0
        %701 = vmatpush1.msra.mxu0 0.0
        %702 = vmatprep.subr.mxu0 0.0
        %703 = vmatpush1.msra.mxu0 0.0
        %704 = vmatprep.subr.mxu0 0.0
        %705 = vmatpush1.msra.mxu0 0.0
        %706 = vmatprep.subr.mxu0 0.0
        %707 = vmatpush1.msra.mxu0 0.0
        %708 = vmatprep.subr.mxu0 0.0
        %709 = vmatpush1.msra.mxu0 0.0
        %710 = vmatprep.subr.mxu0 0.0
        %711 = vmatpush1.msra.mxu0 0.0
        %712 = vmatprep.subr.mxu0 0.0
        %713 = vmatpush1.msra.mxu0 0.0
        %714 = vmatprep.subr.mxu0 0.0
        %715 = vmatpush1.msra.mxu0 0.0
        %716 = vmatprep.subr.mxu0 0.0
        %717 = vmatpush1.msra.mxu0 0.0
        %718 = vmatprep.subr.mxu0 0.0
        %719 = vmatpush1.msra.mxu0 0.0
        %720 = vmatprep.subr.mxu0 0.0
        %721 = vmatpush1.msra.mxu0 0.0
        %722 = vmatprep.mubr.f32.mxu0 0.0
        %723 = vmatmul.mubr.f32.gmra.mrb[0].mxu0 %v451
        %v724 = vpop.f32.mrb[0].mxu0
        %v725 = vadd.f32 0.0, %v724
        %v726 = vpop.f32.mrb[0].mxu0
        %727 = vdwg.mxu0
        %s728 = scalar_lea.vmem %s0, 384
        %v729 = vld [vmem:[%s728] sm:$0xff]
        %v730 = vld [vmem:[%s728 + $0x8] sm:$0xff]
        %v731 = vld [vmem:[%s728 + $0x10] sm:$0xff]
        %v732 = vld [vmem:[%s728 + $0x18] sm:$0xff]
        %v733 = vld [vmem:[%s728 + $0x20] sm:$0xff]
        %v734 = vld [vmem:[%s728 + $0x28] sm:$0xff]
        %v735 = vld [vmem:[%s728 + $0x30] sm:$0xff]
        %v736 = vld [vmem:[%s728 + $0x38] sm:$0xff]
        %v737 = vld [vmem:[%s728 + $0x40] sm:$0xff]
        %v738 = vld [vmem:[%s728 + $0x48] sm:$0xff]
        %v739 = vld [vmem:[%s728 + $0x50] sm:$0xff]
        %v740 = vld [vmem:[%s728 + $0x58] sm:$0xff]
        %v741 = vld [vmem:[%s728 + $0x60] sm:$0xff]
        %v742 = vld [vmem:[%s728 + $0x68] sm:$0xff]
        %v743 = vld [vmem:[%s728 + $0x70] sm:$0xff]
        %v744 = vld [vmem:[%s728 + $0x78] sm:$0xff]
        %745 = vmatprep.subr.mxu0 0.0
        %746 = vmatpush1.msra.mxu0 %v729
        %747 = vmatprep.subr.mxu0 0.0
        %748 = vmatpush1.msra.mxu0 %v730
        %749 = vmatprep.subr.mxu0 0.0
        %750 = vmatpush1.msra.mxu0 %v731
        %751 = vmatprep.subr.mxu0 0.0
        %752 = vmatpush1.msra.mxu0 %v732
        %753 = vmatprep.subr.mxu0 0.0
        %754 = vmatpush1.msra.mxu0 %v733
        %755 = vmatprep.subr.mxu0 0.0
        %756 = vmatpush1.msra.mxu0 %v734
        %757 = vmatprep.subr.mxu0 0.0
        %758 = vmatpush1.msra.mxu0 %v735
        %759 = vmatprep.subr.mxu0 0.0
        %760 = vmatpush1.msra.mxu0 %v736
        %761 = vmatprep.subr.mxu0 0.0
        %762 = vmatpush1.msra.mxu0 %v737
        %763 = vmatprep.subr.mxu0 0.0
        %764 = vmatpush1.msra.mxu0 %v738
        %765 = vmatprep.subr.mxu0 0.0
        %766 = vmatpush1.msra.mxu0 %v739
        %767 = vmatprep.subr.mxu0 0.0
        %768 = vmatpush1.msra.mxu0 %v740
        %769 = vmatprep.subr.mxu0 0.0
        %770 = vmatpush1.msra.mxu0 %v741
        %771 = vmatprep.subr.mxu0 0.0
        %772 = vmatpush1.msra.mxu0 %v742
        %773 = vmatprep.subr.mxu0 0.0
        %774 = vmatpush1.msra.mxu0 %v743
        %775 = vmatprep.subr.mxu0 0.0
        %776 = vmatpush1.msra.mxu0 %v744
        %777 = vmatprep.subr.mxu0 0.0
        %778 = vmatpush1.msra.mxu0 0.0
        %779 = vmatprep.subr.mxu0 0.0
        %780 = vmatpush1.msra.mxu0 0.0
        %781 = vmatprep.subr.mxu0 0.0
        %782 = vmatpush1.msra.mxu0 0.0
        %783 = vmatprep.subr.mxu0 0.0
        %784 = vmatpush1.msra.mxu0 0.0
        %785 = vmatprep.subr.mxu0 0.0
        %786 = vmatpush1.msra.mxu0 0.0
        %787 = vmatprep.subr.mxu0 0.0
        %788 = vmatpush1.msra.mxu0 0.0
        %789 = vmatprep.subr.mxu0 0.0
        %790 = vmatpush1.msra.mxu0 0.0
        %791 = vmatprep.subr.mxu0 0.0
        %792 = vmatpush1.msra.mxu0 0.0
        %793 = vmatprep.subr.mxu0 0.0
        %794 = vmatpush1.msra.mxu0 0.0
        %795 = vmatprep.subr.mxu0 0.0
        %796 = vmatpush1.msra.mxu0 0.0
        %797 = vmatprep.subr.mxu0 0.0
        %798 = vmatpush1.msra.mxu0 0.0
        %799 = vmatprep.subr.mxu0 0.0
        %800 = vmatpush1.msra.mxu0 0.0
        %801 = vmatprep.subr.mxu0 0.0
        %802 = vmatpush1.msra.mxu0 0.0
        %803 = vmatprep.subr.mxu0 0.0
        %804 = vmatpush1.msra.mxu0 0.0
        %805 = vmatprep.subr.mxu0 0.0
        %806 = vmatpush1.msra.mxu0 0.0
        %807 = vmatprep.subr.mxu0 0.0
        %808 = vmatpush1.msra.mxu0 0.0
        %809 = vmatprep.mubr.f32.mxu0 0.0
        %810 = vmatmul.mubr.f32.gmra.mrb[0].mxu0 %v451
        %v811 = vpop.f32.mrb[0].mxu0
        %v812 = vadd.f32 0.0, %v811
        %v813 = vpop.f32.mrb[0].mxu0
        %814 = vdwg.mxu0
        %v816 = vrot.slane %v551, 4
        %v819 = vrot.slane %v725, 4
        %vm821 = vcmask 1043456
        %v822 = vsel %vm821, %v451, %v816
        %v823 = vsel %vm821, %v638, %v819
        %825 = vset.pattern.permute.xlu0 0
        %826 = vperm.xlu0 %825, %v460
        %v827 = vpop.permute.xlu0 %826
        %830 = vset.pattern.permute.xlu0 0
        %831 = vperm.xlu0 %830, %v461
        %v832 = vpop.permute.xlu0 %831
        %835 = vset.pattern.permute.xlu0 0
        %836 = vperm.xlu0 %835, %v462
        %v837 = vpop.permute.xlu0 %836
        %840 = vset.pattern.permute.xlu0 0
        %841 = vperm.xlu0 %840, %v463
        %v842 = vpop.permute.xlu0 %841
        %845 = vset.pattern.permute.xlu0 0
        %846 = vperm.xlu0 %845, %v464
        %v847 = vpop.permute.xlu0 %846
        %850 = vset.pattern.permute.xlu0 0
        %851 = vperm.xlu0 %850, %v465
        %v852 = vpop.permute.xlu0 %851
        %855 = vset.pattern.permute.xlu0 0
        %856 = vperm.xlu0 %855, %v466
        %v857 = vpop.permute.xlu0 %856
        %860 = vset.pattern.permute.xlu0 0
        %861 = vperm.xlu0 %860, %v467
        %v862 = vpop.permute.xlu0 %861
        %vm864 = vcmask 162816
        %v866 = vsel %vm864, %v452, 0
        %v869 = vsel %vm864, %v453, 0
        %v872 = vsel %vm864, %v454, 0
        %v875 = vsel %vm864, %v455, 0
        %v878 = vsel %vm864, %v456, 0
        %v881 = vsel %vm864, %v457, 0
        %v884 = vsel %vm864, %v458, 0
        %v887 = vsel %vm864, %v459, 0
        %v890 = vsel %vm821, %v812, 0
        %892 = vmatprep.subr.mxu0 0.0
        %893 = vmatpush1.msra.mxu0 %v822
        %894 = vmatprep.subr.mxu0 0.0
        %895 = vmatpush1.msra.mxu0 %v823
        %896 = vmatprep.subr.mxu0 0.0
        %897 = vmatpush1.msra.mxu0 %v890
        %898 = vmatprep.subr.mxu0 0.0
        %899 = vmatpush1.msra.mxu0 0.0
        %900 = vmatprep.subr.mxu0 0.0
        %901 = vmatpush1.msra.mxu0 0.0
        %902 = vmatprep.subr.mxu0 0.0
        %903 = vmatpush1.msra.mxu0 0.0
        %904 = vmatprep.subr.mxu0 0.0
        %905 = vmatpush1.msra.mxu0 0.0
        %906 = vmatprep.subr.mxu0 0.0
        %907 = vmatpush1.msra.mxu0 0.0
        %908 = vmatprep.subr.mxu0 0.0
        %909 = vmatpush1.msra.mxu0 0.0
        %910 = vmatprep.subr.mxu0 0.0
        %911 = vmatpush1.msra.mxu0 0.0
        %912 = vmatprep.subr.mxu0 0.0
        %913 = vmatpush1.msra.mxu0 0.0
        %914 = vmatprep.subr.mxu0 0.0
        %915 = vmatpush1.msra.mxu0 0.0
        %916 = vmatprep.subr.mxu0 0.0
        %917 = vmatpush1.msra.mxu0 0.0
        %918 = vmatprep.subr.mxu0 0.0
        %919 = vmatpush1.msra.mxu0 0.0
        %920 = vmatprep.subr.mxu0 0.0
        %921 = vmatpush1.msra.mxu0 0.0
        %922 = vmatprep.subr.mxu0 0.0
        %923 = vmatpush1.msra.mxu0 0.0
        %924 = vmatprep.subr.mxu0 0.0
        %925 = vmatpush1.msra.mxu0 0.0
        %926 = vmatprep.subr.mxu0 0.0
        %927 = vmatpush1.msra.mxu0 0.0
        %928 = vmatprep.subr.mxu0 0.0
        %929 = vmatpush1.msra.mxu0 0.0
        %930 = vmatprep.subr.mxu0 0.0
        %931 = vmatpush1.msra.mxu0 0.0
        %932 = vmatprep.subr.mxu0 0.0
        %933 = vmatpush1.msra.mxu0 0.0
        %934 = vmatprep.subr.mxu0 0.0
        %935 = vmatpush1.msra.mxu0 0.0
        %936 = vmatprep.subr.mxu0 0.0
        %937 = vmatpush1.msra.mxu0 0.0
        %938 = vmatprep.subr.mxu0 0.0
        %939 = vmatpush1.msra.mxu0 0.0
        %940 = vmatprep.subr.mxu0 0.0
        %941 = vmatpush1.msra.mxu0 0.0
        %942 = vmatprep.subr.mxu0 0.0
        %943 = vmatpush1.msra.mxu0 0.0
        %944 = vmatprep.subr.mxu0 0.0
        %945 = vmatpush1.msra.mxu0 0.0
        %946 = vmatprep.subr.mxu0 0.0
        %947 = vmatpush1.msra.mxu0 0.0
        %948 = vmatprep.subr.mxu0 0.0
        %949 = vmatpush1.msra.mxu0 0.0
        %950 = vmatprep.subr.mxu0 0.0
        %951 = vmatpush1.msra.mxu0 0.0
        %952 = vmatprep.subr.mxu0 0.0
        %953 = vmatpush1.msra.mxu0 0.0
        %954 = vmatprep.subr.mxu0 0.0
        %955 = vmatpush1.msra.mxu0 0.0
        %956 = vmatprep.mubr.f32.mxu0 0.0
        %957 = vmatmul.mubr.f32.gmra.mrb[0].mxu0 %v866
        %v958 = vpop.f32.mrb[0].mxu0
        %v959 = vadd.f32 %v827, %v958
        %v960 = vpop.f32.mrb[0].mxu0
        %961 = vmatprep.mubr.f32.mxu0 0.0
        %962 = vmatmul.mubr.f32.gmra.mrb[0].mxu0 %v869
        %v963 = vpop.f32.mrb[0].mxu0
        %v964 = vadd.f32 %v832, %v963
        %v965 = vpop.f32.mrb[0].mxu0
        %966 = vmatprep.mubr.f32.mxu0 0.0
        %967 = vmatmul.mubr.f32.gmra.mrb[0].mxu0 %v872
        %v968 = vpop.f32.mrb[0].mxu0
        %v969 = vadd.f32 %v837, %v968
        %v970 = vpop.f32.mrb[0].mxu0
        %971 = vmatprep.mubr.f32.mxu0 0.0
        %972 = vmatmul.mubr.f32.gmra.mrb[0].mxu0 %v875
        %v973 = vpop.f32.mrb[0].mxu0
        %v974 = vadd.f32 %v842, %v973
        %v975 = vpop.f32.mrb[0].mxu0
        %976 = vmatprep.mubr.f32.mxu0 0.0
        %977 = vmatmul.mubr.f32.gmra.mrb[0].mxu0 %v878
        %v978 = vpop.f32.mrb[0].mxu0
        %v979 = vadd.f32 %v847, %v978
        %v980 = vpop.f32.mrb[0].mxu0
        %981 = vmatprep.mubr.f32.mxu0 0.0
        %982 = vmatmul.mubr.f32.gmra.mrb[0].mxu0 %v881
        %v983 = vpop.f32.mrb[0].mxu0
        %v984 = vadd.f32 %v852, %v983
        %v985 = vpop.f32.mrb[0].mxu0
        %986 = vmatprep.mubr.f32.mxu0 0.0
        %987 = vmatmul.mubr.f32.gmra.mrb[0].mxu0 %v884
        %v988 = vpop.f32.mrb[0].mxu0
        %v989 = vadd.f32 %v857, %v988
        %v990 = vpop.f32.mrb[0].mxu0
        %991 = vmatprep.mubr.f32.mxu0 0.0
        %992 = vmatmul.mubr.f32.gmra.mrb[0].mxu0 %v887
        %v993 = vpop.f32.mrb[0].mxu0
        %v994 = vadd.f32 %v862, %v993
        %v995 = vpop.f32.mrb[0].mxu0
        %996 = vdwg.mxu0
        %v997 = vmax.f32 %v959, 0.0
        %v998 = vmax.f32 %v964, 0.0
        %v999 = vmax.f32 %v969, 0.0
        %v1000 = vmax.f32 %v974, 0.0
        %v1001 = vmax.f32 %v979, 0.0
        %v1002 = vmax.f32 %v984, 0.0
        %v1003 = vmax.f32 %v989, 0.0
        %v1004 = vmax.f32 %v994, 0.0
        %vm1005 = vcmp.ne.f32.partialorder %v959, %v959
        %vm1006 = vcmp.ne.f32.partialorder %v964, %v964
        %vm1007 = vcmp.ne.f32.partialorder %v969, %v969
        %vm1008 = vcmp.ne.f32.partialorder %v974, %v974
        %vm1009 = vcmp.ne.f32.partialorder %v979, %v979
        %vm1010 = vcmp.ne.f32.partialorder %v984, %v984
        %vm1011 = vcmp.ne.f32.partialorder %v989, %v989
        %vm1012 = vcmp.ne.f32.partialorder %v994, %v994
        %v1013 = vadd.f32 %v959, 0.0
        %v1014 = vadd.f32 %v964, 0.0
        %v1015 = vadd.f32 %v969, 0.0
        %v1016 = vadd.f32 %v974, 0.0
        %v1017 = vadd.f32 %v979, 0.0
        %v1018 = vadd.f32 %v984, 0.0
        %v1019 = vadd.f32 %v989, 0.0
        %v1020 = vadd.f32 %v994, 0.0
        %v1021 = vand.u32 2147483647, %v959
        %v1022 = vand.u32 2147483647, %v964
        %v1023 = vand.u32 2147483647, %v969
        %v1024 = vand.u32 2147483647, %v974
        %v1025 = vand.u32 2147483647, %v979
        %v1026 = vand.u32 2147483647, %v984
        %v1027 = vand.u32 2147483647, %v989
        %v1028 = vand.u32 2147483647, %v994
        %v1029 = vsub.f32 0.0, %v1021
        %v1030 = vsub.f32 0.0, %v1022
        %v1031 = vsub.f32 0.0, %v1023
        %v1032 = vsub.f32 0.0, %v1024
        %v1033 = vsub.f32 0.0, %v1025
        %v1034 = vsub.f32 0.0, %v1026
        %v1035 = vsub.f32 0.0, %v1027
        %v1036 = vsub.f32 0.0, %v1028
        %v1037 = vmul.f32 %v1029, 1.442695
        %v1038 = vpow.pop %v1037
        %v1039 = vmul.f32 %v1030, 1.442695
        %v1040 = vpow.pop %v1039
        %v1041 = vmul.f32 %v1031, 1.442695
        %v1042 = vpow.pop %v1041
        %v1043 = vmul.f32 %v1032, 1.442695
        %v1044 = vpow.pop %v1043
        %v1045 = vmul.f32 %v1033, 1.442695
        %v1046 = vpow.pop %v1045
        %v1047 = vmul.f32 %v1034, 1.442695
        %v1048 = vpow.pop %v1047
        %v1049 = vmul.f32 %v1035, 1.442695
        %v1050 = vpow.pop %v1049
        %v1051 = vmul.f32 %v1036, 1.442695
        %v1052 = vpow.pop %v1051
        %v1053 = vadd.f32 %v1038, 1.0
        %v1054 = vlog2.pop %v1053
        %v1055 = vmul.f32 %v1054, 0.6931472
        %v1056 = vmul.f32 -0.5, %v1038
        %v1057 = vadd.f32 %v1056, 1.0
        %v1058 = vmul.f32 %v1057, %v1038
        %v1059 = vand.u32 2147483647, %v1038
        %vm1060 = vcmp.lt.f32.partialorder %v1059, 0.0004427343
        %v1061 = vsel %vm1060, %v1058, %v1055
        %v1062 = vadd.f32 %v1040, 1.0
        %v1063 = vlog2.pop %v1062
        %v1064 = vmul.f32 %v1063, 0.6931472
        %v1065 = vmul.f32 -0.5, %v1040
        %v1066 = vadd.f32 %v1065, 1.0
        %v1067 = vmul.f32 %v1066, %v1040
        %v1068 = vand.u32 2147483647, %v1040
        %vm1069 = vcmp.lt.f32.partialorder %v1068, 0.0004427343
        %v1070 = vsel %vm1069, %v1067, %v1064
        %v1071 = vadd.f32 %v1042, 1.0
        %v1072 = vlog2.pop %v1071
        %v1073 = vmul.f32 %v1072, 0.6931472
        %v1074 = vmul.f32 -0.5, %v1042
        %v1075 = vadd.f32 %v1074, 1.0
        %v1076 = vmul.f32 %v1075, %v1042
        %v1077 = vand.u32 2147483647, %v1042
        %vm1078 = vcmp.lt.f32.partialorder %v1077, 0.0004427343
        %v1079 = vsel %vm1078, %v1076, %v1073
        %v1080 = vadd.f32 %v1044, 1.0
        %v1081 = vlog2.pop %v1080
        %v1082 = vmul.f32 %v1081, 0.6931472
        %v1083 = vmul.f32 -0.5, %v1044
        %v1084 = vadd.f32 %v1083, 1.0
        %v1085 = vmul.f32 %v1084, %v1044
        %v1086 = vand.u32 2147483647, %v1044
        %vm1087 = vcmp.lt.f32.partialorder %v1086, 0.0004427343
        %v1088 = vsel %vm1087, %v1085, %v1082
        %v1089 = vadd.f32 %v1046, 1.0
        %v1090 = vlog2.pop %v1089
        %v1091 = vmul.f32 %v1090, 0.6931472
        %v1092 = vmul.f32 -0.5, %v1046
        %v1093 = vadd.f32 %v1092, 1.0
        %v1094 = vmul.f32 %v1093, %v1046
        %v1095 = vand.u32 2147483647, %v1046
        %vm1096 = vcmp.lt.f32.partialorder %v1095, 0.0004427343
        %v1097 = vsel %vm1096, %v1094, %v1091
        %v1098 = vadd.f32 %v1048, 1.0
        %v1099 = vlog2.pop %v1098
        %v1100 = vmul.f32 %v1099, 0.6931472
        %v1101 = vmul.f32 -0.5, %v1048
        %v1102 = vadd.f32 %v1101, 1.0
        %v1103 = vmul.f32 %v1102, %v1048
        %v1104 = vand.u32 2147483647, %v1048
        %vm1105 = vcmp.lt.f32.partialorder %v1104, 0.0004427343
        %v1106 = vsel %vm1105, %v1103, %v1100
        %v1107 = vadd.f32 %v1050, 1.0
        %v1108 = vlog2.pop %v1107
        %v1109 = vmul.f32 %v1108, 0.6931472
        %v1110 = vmul.f32 -0.5, %v1050
        %v1111 = vadd.f32 %v1110, 1.0
        %v1112 = vmul.f32 %v1111, %v1050
        %v1113 = vand.u32 2147483647, %v1050
        %vm1114 = vcmp.lt.f32.partialorder %v1113, 0.0004427343
        %v1115 = vsel %vm1114, %v1112, %v1109
        %v1116 = vadd.f32 %v1052, 1.0
        %v1117 = vlog2.pop %v1116
        %v1118 = vmul.f32 %v1117, 0.6931472
        %v1119 = vmul.f32 -0.5, %v1052
        %v1120 = vadd.f32 %v1119, 1.0
        %v1121 = vmul.f32 %v1120, %v1052
        %v1122 = vand.u32 2147483647, %v1052
        %vm1123 = vcmp.lt.f32.partialorder %v1122, 0.0004427343
        %v1124 = vsel %vm1123, %v1121, %v1118
        %v1125 = vadd.f32 %v997, %v1061
        %v1126 = vadd.f32 %v998, %v1070
        %v1127 = vadd.f32 %v999, %v1079
        %v1128 = vadd.f32 %v1000, %v1088
        %v1129 = vadd.f32 %v1001, %v1097
        %v1130 = vadd.f32 %v1002, %v1106
        %v1131 = vadd.f32 %v1003, %v1115
        %v1132 = vadd.f32 %v1004, %v1124
        %v1133 = vsel %vm1005, %v1013, %v1125
        %v1134 = vsel %vm1006, %v1014, %v1126
        %v1135 = vsel %vm1007, %v1015, %v1127
        %v1136 = vsel %vm1008, %v1016, %v1128
        %v1137 = vsel %vm1009, %v1017, %v1129
        %v1138 = vsel %vm1010, %v1018, %v1130
        %v1139 = vsel %vm1011, %v1019, %v1131
        %v1140 = vsel %vm1012, %v1020, %v1132
        %v1141 = vrot.slane %v1133, 4
        %v1142 = vadd.f32 %v1133, %v1141
        %v1143 = vrot.slane %v1142, 2
        %v1144 = vadd.f32 %v1142, %v1143
        %v1145 = vrot.slane %v1144, 1
        %v1146 = vadd.f32 %v1144, %v1145
        %v1147 = vrot.slane %v1134, 4
        %v1148 = vadd.f32 %v1134, %v1147
        %v1149 = vrot.slane %v1148, 2
        %v1150 = vadd.f32 %v1148, %v1149
        %v1151 = vrot.slane %v1150, 1
        %v1152 = vadd.f32 %v1150, %v1151
        %v1153 = vrot.slane %v1135, 4
        %v1154 = vadd.f32 %v1135, %v1153
        %v1155 = vrot.slane %v1154, 2
        %v1156 = vadd.f32 %v1154, %v1155
        %v1157 = vrot.slane %v1156, 1
        %v1158 = vadd.f32 %v1156, %v1157
        %v1159 = vrot.slane %v1136, 4
        %v1160 = vadd.f32 %v1136, %v1159
        %v1161 = vrot.slane %v1160, 2
        %v1162 = vadd.f32 %v1160, %v1161
        %v1163 = vrot.slane %v1162, 1
        %v1164 = vadd.f32 %v1162, %v1163
        %v1165 = vrot.slane %v1137, 4
        %v1166 = vadd.f32 %v1137, %v1165
        %v1167 = vrot.slane %v1166, 2
        %v1168 = vadd.f32 %v1166, %v1167
        %v1169 = vrot.slane %v1168, 1
        %v1170 = vadd.f32 %v1168, %v1169
        %v1171 = vrot.slane %v1138, 4
        %v1172 = vadd.f32 %v1138, %v1171
        %v1173 = vrot.slane %v1172, 2
        %v1174 = vadd.f32 %v1172, %v1173
        %v1175 = vrot.slane %v1174, 1
        %v1176 = vadd.f32 %v1174, %v1175
        %v1177 = vrot.slane %v1139, 4
        %v1178 = vadd.f32 %v1139, %v1177
        %v1179 = vrot.slane %v1178, 2
        %v1180 = vadd.f32 %v1178, %v1179
        %v1181 = vrot.slane %v1180, 1
        %v1182 = vadd.f32 %v1180, %v1181
        %v1183 = vrot.slane %v1140, 4
        %v1184 = vadd.f32 %v1140, %v1183
        %v1185 = vrot.slane %v1184, 2
        %v1186 = vadd.f32 %v1184, %v1185
        %v1187 = vrot.slane %v1186, 1
        %v1188 = vadd.f32 %v1186, %v1187
        %v1189 = vld [vmem:[%s5] sm:$0xff]
        %v1190 = vld [vmem:[%s5 + $0x8] sm:$0xff]
        %v1191 = vld [vmem:[%s5 + $0x10] sm:$0xff]
        %v1192 = vld [vmem:[%s5 + $0x18] sm:$0xff]
        %v1193 = vld [vmem:[%s5 + $0x20] sm:$0xff]
        %v1194 = vld [vmem:[%s5 + $0x28] sm:$0xff]
        %v1195 = vld [vmem:[%s5 + $0x30] sm:$0xff]
        %v1196 = vld [vmem:[%s5 + $0x38] sm:$0xff]
        %v1197 = vld [vmem:[%s6] sm:$0xff]
        %v1198 = vld [vmem:[%s6 + $0x8] sm:$0xff]
        %v1199 = vld [vmem:[%s6 + $0x10] sm:$0xff]
        %v1200 = vld [vmem:[%s6 + $0x18] sm:$0xff]
        %v1201 = vld [vmem:[%s6 + $0x20] sm:$0xff]
        %v1202 = vld [vmem:[%s6 + $0x28] sm:$0xff]
        %v1203 = vld [vmem:[%s6 + $0x30] sm:$0xff]
        %v1204 = vld [vmem:[%s6 + $0x38] sm:$0xff]
        %vm1213 = vcmask 1041409
        %v1214 = vsel %vm1213, %v1152, %v1146
        %vm1215 = vcmask 1042434
        %v1216 = vsel %vm1215, %v1158, %v1214
        %vm1217 = vcmask 1043459
        %v1218 = vsel %vm1217, %v1164, %v1216
        %vm1219 = vcmask 1044484
        %v1220 = vsel %vm1219, %v1170, %v1218
        %vm1221 = vcmask 1045509
        %v1222 = vsel %vm1221, %v1176, %v1220
        %vm1223 = vcmask 1046534
        %v1224 = vsel %vm1223, %v1182, %v1222
        %vm1225 = vcmask 1047559
        %v1226 = vsel %vm1225, %v1188, %v1224
        %1228 = vmatprep.subr.mxu0 0.0
        %1229 = vmatpush1.msra.mxu0 %v468
        %1230 = vmatprep.subr.mxu0 0.0
        %1231 = vmatpush1.msra.mxu0 %v469
        %1232 = vmatprep.subr.mxu0 0.0
        %1233 = vmatpush1.msra.mxu0 %v470
        %1234 = vmatprep.subr.mxu0 0.0
        %1235 = vmatpush1.msra.mxu0 %v471
        %1236 = vmatprep.subr.mxu0 0.0
        %1237 = vmatpush1.msra.mxu0 %v472
        %1238 = vmatprep.subr.mxu0 0.0
        %1239 = vmatpush1.msra.mxu0 %v473
        %1240 = vmatprep.subr.mxu0 0.0
        %1241 = vmatpush1.msra.mxu0 %v474
        %1242 = vmatprep.subr.mxu0 0.0
        %1243 = vmatpush1.msra.mxu0 %v475
        %1244 = vmatprep.subr.mxu0 0.0
        %1245 = vmatpush1.msra.mxu0 %v476
        %1246 = vmatprep.subr.mxu0 0.0
        %1247 = vmatpush1.msra.mxu0 %v477
        %1248 = vmatprep.subr.mxu0 0.0
        %1249 = vmatpush1.msra.mxu0 %v478
        %1250 = vmatprep.subr.mxu0 0.0
        %1251 = vmatpush1.msra.mxu0 %v479
        %1252 = vmatprep.subr.mxu0 0.0
        %1253 = vmatpush1.msra.mxu0 %v480
        %1254 = vmatprep.subr.mxu0 0.0
        %1255 = vmatpush1.msra.mxu0 %v481
        %1256 = vmatprep.subr.mxu0 0.0
        %1257 = vmatpush1.msra.mxu0 %v482
        %1258 = vmatprep.subr.mxu0 0.0
        %1259 = vmatpush1.msra.mxu0 %v483
        %1260 = vmatprep.subr.mxu0 0.0
        %1261 = vmatpush1.msra.mxu0 0.0
        %1262 = vmatprep.subr.mxu0 0.0
        %1263 = vmatpush1.msra.mxu0 0.0
        %1264 = vmatprep.subr.mxu0 0.0
        %1265 = vmatpush1.msra.mxu0 0.0
        %1266 = vmatprep.subr.mxu0 0.0
        %1267 = vmatpush1.msra.mxu0 0.0
        %1268 = vmatprep.subr.mxu0 0.0
        %1269 = vmatpush1.msra.mxu0 0.0
        %1270 = vmatprep.subr.mxu0 0.0
        %1271 = vmatpush1.msra.mxu0 0.0
        %1272 = vmatprep.subr.mxu0 0.0
        %1273 = vmatpush1.msra.mxu0 0.0
        %1274 = vmatprep.subr.mxu0 0.0
        %1275 = vmatpush1.msra.mxu0 0.0
        %1276 = vmatprep.subr.mxu0 0.0
        %1277 = vmatpush1.msra.mxu0 0.0
        %1278 = vmatprep.subr.mxu0 0.0
        %1279 = vmatpush1.msra.mxu0 0.0
        %1280 = vmatprep.subr.mxu0 0.0
        %1281 = vmatpush1.msra.mxu0 0.0
        %1282 = vmatprep.subr.mxu0 0.0
        %1283 = vmatpush1.msra.mxu0 0.0
        %1284 = vmatprep.subr.mxu0 0.0
        %1285 = vmatpush1.msra.mxu0 0.0
        %1286 = vmatprep.subr.mxu0 0.0
        %1287 = vmatpush1.msra.mxu0 0.0
        %1288 = vmatprep.subr.mxu0 0.0
        %1289 = vmatpush1.msra.mxu0 0.0
        %1290 = vmatprep.subr.mxu0 0.0
        %1291 = vmatpush1.msra.mxu0 0.0
        %1292 = vmatprep.mubr.f32.mxu0 0.0
        %1293 = vmatmul.mubr.f32.gmra.mrb[0].mxu0 %v1226
        %v1294 = vpop.f32.mrb[0].mxu0
        %v1295 = vadd.f32 0.0, %v1294
        %v1296 = vpop.f32.mrb[0].mxu0
        %1297 = vdwg.mxu0
        %1298 = vmatprep.subr.mxu0 0.0
        %1299 = vmatpush1.msra.mxu0 %v555
        %1300 = vmatprep.subr.mxu0 0.0
        %1301 = vmatpush1.msra.mxu0 %v556
        %1302 = vmatprep.subr.mxu0 0.0
        %1303 = vmatpush1.msra.mxu0 %v557
        %1304 = vmatprep.subr.mxu0 0.0
        %1305 = vmatpush1.msra.mxu0 %v558
        %1306 = vmatprep.subr.mxu0 0.0
        %1307 = vmatpush1.msra.mxu0 %v559
        %1308 = vmatprep.subr.mxu0 0.0
        %1309 = vmatpush1.msra.mxu0 %v560
        %1310 = vmatprep.subr.mxu0 0.0
        %1311 = vmatpush1.msra.mxu0 %v561
        %1312 = vmatprep.subr.mxu0 0.0
        %1313 = vmatpush1.msra.mxu0 %v562
        %1314 = vmatprep.subr.mxu0 0.0
        %1315 = vmatpush1.msra.mxu0 %v563
        %1316 = vmatprep.subr.mxu0 0.0
        %1317 = vmatpush1.msra.mxu0 %v564
        %1318 = vmatprep.subr.mxu0 0.0
        %1319 = vmatpush1.msra.mxu0 %v565
        %1320 = vmatprep.subr.mxu0 0.0
        %1321 = vmatpush1.msra.mxu0 %v566
        %1322 = vmatprep.subr.mxu0 0.0
        %1323 = vmatpush1.msra.mxu0 %v567
        %1324 = vmatprep.subr.mxu0 0.0
        %1325 = vmatpush1.msra.mxu0 %v568
        %1326 = vmatprep.subr.mxu0 0.0
        %1327 = vmatpush1.msra.mxu0 %v569
        %1328 = vmatprep.subr.mxu0 0.0
        %1329 = vmatpush1.msra.mxu0 %v570
        %1330 = vmatprep.subr.mxu0 0.0
        %1331 = vmatpush1.msra.mxu0 0.0
        %1332 = vmatprep.subr.mxu0 0.0
        %1333 = vmatpush1.msra.mxu0 0.0
        %1334 = vmatprep.subr.mxu0 0.0
        %1335 = vmatpush1.msra.mxu0 0.0
        %1336 = vmatprep.subr.mxu0 0.0
        %1337 = vmatpush1.msra.mxu0 0.0
        %1338 = vmatprep.subr.mxu0 0.0
        %1339 = vmatpush1.msra.mxu0 0.0
        %1340 = vmatprep.subr.mxu0 0.0
        %1341 = vmatpush1.msra.mxu0 0.0
        %1342 = vmatprep.subr.mxu0 0.0
        %1343 = vmatpush1.msra.mxu0 0.0
        %1344 = vmatprep.subr.mxu0 0.0
        %1345 = vmatpush1.msra.mxu0 0.0
        %1346 = vmatprep.subr.mxu0 0.0
        %1347 = vmatpush1.msra.mxu0 0.0
        %1348 = vmatprep.subr.mxu0 0.0
        %1349 = vmatpush1.msra.mxu0 0.0
        %1350 = vmatprep.subr.mxu0 0.0
        %1351 = vmatpush1.msra.mxu0 0.0
        %1352 = vmatprep.subr.mxu0 0.0
        %1353 = vmatpush1.msra.mxu0 0.0
        %1354 = vmatprep.subr.mxu0 0.0
        %1355 = vmatpush1.msra.mxu0 0.0
        %1356 = vmatprep.subr.mxu0 0.0
        %1357 = vmatpush1.msra.mxu0 0.0
        %1358 = vmatprep.subr.mxu0 0.0
        %1359 = vmatpush1.msra.mxu0 0.0
        %1360 = vmatprep.subr.mxu0 0.0
        %1361 = vmatpush1.msra.mxu0 0.0
        %1362 = vmatprep.mubr.f32.mxu0 0.0
        %1363 = vmatmul.mubr.f32.gmra.mrb[0].mxu0 %v1226
        %v1364 = vpop.f32.mrb[0].mxu0
        %v1365 = vadd.f32 0.0, %v1364
        %v1366 = vpop.f32.mrb[0].mxu0
        %1367 = vdwg.mxu0
        %1368 = vmatprep.subr.mxu0 0.0
        %1369 = vmatpush1.msra.mxu0 %v642
        %1370 = vmatprep.subr.mxu0 0.0
        %1371 = vmatpush1.msra.mxu0 %v643
        %1372 = vmatprep.subr.mxu0 0.0
        %1373 = vmatpush1.msra.mxu0 %v644
        %1374 = vmatprep.subr.mxu0 0.0
        %1375 = vmatpush1.msra.mxu0 %v645
        %1376 = vmatprep.subr.mxu0 0.0
        %1377 = vmatpush1.msra.mxu0 %v646
        %1378 = vmatprep.subr.mxu0 0.0
        %1379 = vmatpush1.msra.mxu0 %v647
        %1380 = vmatprep.subr.mxu0 0.0
        %1381 = vmatpush1.msra.mxu0 %v648
        %1382 = vmatprep.subr.mxu0 0.0
        %1383 = vmatpush1.msra.mxu0 %v649
        %1384 = vmatprep.subr.mxu0 0.0
        %1385 = vmatpush1.msra.mxu0 %v650
        %1386 = vmatprep.subr.mxu0 0.0
        %1387 = vmatpush1.msra.mxu0 %v651
        %1388 = vmatprep.subr.mxu0 0.0
        %1389 = vmatpush1.msra.mxu0 %v652
        %1390 = vmatprep.subr.mxu0 0.0
        %1391 = vmatpush1.msra.mxu0 %v653
        %1392 = vmatprep.subr.mxu0 0.0
        %1393 = vmatpush1.msra.mxu0 %v654
        %1394 = vmatprep.subr.mxu0 0.0
        %1395 = vmatpush1.msra.mxu0 %v655
        %1396 = vmatprep.subr.mxu0 0.0
        %1397 = vmatpush1.msra.mxu0 %v656
        %1398 = vmatprep.subr.mxu0 0.0
        %1399 = vmatpush1.msra.mxu0 %v657
        %1400 = vmatprep.subr.mxu0 0.0
        %1401 = vmatpush1.msra.mxu0 0.0
        %1402 = vmatprep.subr.mxu0 0.0
        %1403 = vmatpush1.msra.mxu0 0.0
        %1404 = vmatprep.subr.mxu0 0.0
        %1405 = vmatpush1.msra.mxu0 0.0
        %1406 = vmatprep.subr.mxu0 0.0
        %1407 = vmatpush1.msra.mxu0 0.0
        %1408 = vmatprep.subr.mxu0 0.0
        %1409 = vmatpush1.msra.mxu0 0.0
        %1410 = vmatprep.subr.mxu0 0.0
        %1411 = vmatpush1.msra.mxu0 0.0
        %1412 = vmatprep.subr.mxu0 0.0
        %1413 = vmatpush1.msra.mxu0 0.0
        %1414 = vmatprep.subr.mxu0 0.0
        %1415 = vmatpush1.msra.mxu0 0.0
        %1416 = vmatprep.subr.mxu0 0.0
        %1417 = vmatpush1.msra.mxu0 0.0
        %1418 = vmatprep.subr.mxu0 0.0
        %1419 = vmatpush1.msra.mxu0 0.0
        %1420 = vmatprep.subr.mxu0 0.0
        %1421 = vmatpush1.msra.mxu0 0.0
        %1422 = vmatprep.subr.mxu0 0.0
        %1423 = vmatpush1.msra.mxu0 0.0
        %1424 = vmatprep.subr.mxu0 0.0
        %1425 = vmatpush1.msra.mxu0 0.0
        %1426 = vmatprep.subr.mxu0 0.0
        %1427 = vmatpush1.msra.mxu0 0.0
        %1428 = vmatprep.subr.mxu0 0.0
        %1429 = vmatpush1.msra.mxu0 0.0
        %1430 = vmatprep.subr.mxu0 0.0
        %1431 = vmatpush1.msra.mxu0 0.0
        %1432 = vmatprep.mubr.f32.mxu0 0.0
        %1433 = vmatmul.mubr.f32.gmra.mrb[0].mxu0 %v1226
        %v1434 = vpop.f32.mrb[0].mxu0
        %v1435 = vadd.f32 0.0, %v1434
        %v1436 = vpop.f32.mrb[0].mxu0
        %1437 = vdwg.mxu0
        %1438 = vmatprep.subr.mxu0 0.0
        %1439 = vmatpush1.msra.mxu0 %v729
        %1440 = vmatprep.subr.mxu0 0.0
        %1441 = vmatpush1.msra.mxu0 %v730
        %1442 = vmatprep.subr.mxu0 0.0
        %1443 = vmatpush1.msra.mxu0 %v731
        %1444 = vmatprep.subr.mxu0 0.0
        %1445 = vmatpush1.msra.mxu0 %v732
        %1446 = vmatprep.subr.mxu0 0.0
        %1447 = vmatpush1.msra.mxu0 %v733
        %1448 = vmatprep.subr.mxu0 0.0
        %1449 = vmatpush1.msra.mxu0 %v734
        %1450 = vmatprep.subr.mxu0 0.0
        %1451 = vmatpush1.msra.mxu0 %v735
        %1452 = vmatprep.subr.mxu0 0.0
        %1453 = vmatpush1.msra.mxu0 %v736
        %1454 = vmatprep.subr.mxu0 0.0
        %1455 = vmatpush1.msra.mxu0 %v737
        %1456 = vmatprep.subr.mxu0 0.0
        %1457 = vmatpush1.msra.mxu0 %v738
        %1458 = vmatprep.subr.mxu0 0.0
        %1459 = vmatpush1.msra.mxu0 %v739
        %1460 = vmatprep.subr.mxu0 0.0
        %1461 = vmatpush1.msra.mxu0 %v740
        %1462 = vmatprep.subr.mxu0 0.0
        %1463 = vmatpush1.msra.mxu0 %v741
        %1464 = vmatprep.subr.mxu0 0.0
        %1465 = vmatpush1.msra.mxu0 %v742
        %1466 = vmatprep.subr.mxu0 0.0
        %1467 = vmatpush1.msra.mxu0 %v743
        %1468 = vmatprep.subr.mxu0 0.0
        %1469 = vmatpush1.msra.mxu0 %v744
        %1470 = vmatprep.subr.mxu0 0.0
        %1471 = vmatpush1.msra.mxu0 0.0
        %1472 = vmatprep.subr.mxu0 0.0
        %1473 = vmatpush1.msra.mxu0 0.0
        %1474 = vmatprep.subr.mxu0 0.0
        %1475 = vmatpush1.msra.mxu0 0.0
        %1476 = vmatprep.subr.mxu0 0.0
        %1477 = vmatpush1.msra.mxu0 0.0
        %1478 = vmatprep.subr.mxu0 0.0
        %1479 = vmatpush1.msra.mxu0 0.0
        %1480 = vmatprep.subr.mxu0 0.0
        %1481 = vmatpush1.msra.mxu0 0.0
        %1482 = vmatprep.subr.mxu0 0.0
        %1483 = vmatpush1.msra.mxu0 0.0
        %1484 = vmatprep.subr.mxu0 0.0
        %1485 = vmatpush1.msra.mxu0 0.0
        %1486 = vmatprep.subr.mxu0 0.0
        %1487 = vmatpush1.msra.mxu0 0.0
        %1488 = vmatprep.subr.mxu0 0.0
        %1489 = vmatpush1.msra.mxu0 0.0
        %1490 = vmatprep.subr.mxu0 0.0
        %1491 = vmatpush1.msra.mxu0 0.0
        %1492 = vmatprep.subr.mxu0 0.0
        %1493 = vmatpush1.msra.mxu0 0.0
        %1494 = vmatprep.subr.mxu0 0.0
        %1495 = vmatpush1.msra.mxu0 0.0
        %1496 = vmatprep.subr.mxu0 0.0
        %1497 = vmatpush1.msra.mxu0 0.0
        %1498 = vmatprep.subr.mxu0 0.0
        %1499 = vmatpush1.msra.mxu0 0.0
        %1500 = vmatprep.subr.mxu0 0.0
        %1501 = vmatpush1.msra.mxu0 0.0
        %1502 = vmatprep.mubr.f32.mxu0 0.0
        %1503 = vmatmul.mubr.f32.gmra.mrb[0].mxu0 %v1226
        %v1504 = vpop.f32.mrb[0].mxu0
        %v1505 = vadd.f32 0.0, %v1504
        %v1506 = vpop.f32.mrb[0].mxu0
        %1507 = vdwg.mxu0
        %1509 = vset.pattern.permute.xlu0 0
        %1510 = vperm.xlu0 %1509, %v1197
        %v1511 = vpop.permute.xlu0 %1510
        %1514 = vset.pattern.permute.xlu0 0
        %1515 = vperm.xlu0 %1514, %v1198
        %v1516 = vpop.permute.xlu0 %1515
        %1519 = vset.pattern.permute.xlu0 0
        %1520 = vperm.xlu0 %1519, %v1199
        %v1521 = vpop.permute.xlu0 %1520
        %1524 = vset.pattern.permute.xlu0 0
        %1525 = vperm.xlu0 %1524, %v1200
        %v1526 = vpop.permute.xlu0 %1525
        %1529 = vset.pattern.permute.xlu0 0
        %1530 = vperm.xlu0 %1529, %v1201
        %v1531 = vpop.permute.xlu0 %1530
        %1534 = vset.pattern.permute.xlu0 0
        %1535 = vperm.xlu0 %1534, %v1202
        %v1536 = vpop.permute.xlu0 %1535
        %1539 = vset.pattern.permute.xlu0 0
        %1540 = vperm.xlu0 %1539, %v1203
        %v1541 = vpop.permute.xlu0 %1540
        %1544 = vset.pattern.permute.xlu0 0
        %1545 = vperm.xlu0 %1544, %v1204
        %v1546 = vpop.permute.xlu0 %1545
        %vm1548 = vcmask 326656
        %v1550 = vsel %vm1548, %v1189, 0
        %v1553 = vsel %vm1548, %v1190, 0
        %v1556 = vsel %vm1548, %v1191, 0
        %v1559 = vsel %vm1548, %v1192, 0
        %v1562 = vsel %vm1548, %v1193, 0
        %v1565 = vsel %vm1548, %v1194, 0
        %v1568 = vsel %vm1548, %v1195, 0
        %v1571 = vsel %vm1548, %v1196, 0
        %1573 = vmatprep.subr.mxu0 0.0
        %1574 = vmatpush1.msra.mxu0 %v1226
        %1575 = vmatprep.subr.mxu0 0.0
        %1576 = vmatpush1.msra.mxu0 %v1295
        %1577 = vmatprep.subr.mxu0 0.0
        %1578 = vmatpush1.msra.mxu0 %v1365
        %1579 = vmatprep.subr.mxu0 0.0
        %1580 = vmatpush1.msra.mxu0 %v1435
        %1581 = vmatprep.subr.mxu0 0.0
        %1582 = vmatpush1.msra.mxu0 %v1505
        %1583 = vmatprep.subr.mxu0 0.0
        %1584 = vmatpush1.msra.mxu0 0.0
        %1585 = vmatprep.subr.mxu0 0.0
        %1586 = vmatpush1.msra.mxu0 0.0
        %1587 = vmatprep.subr.mxu0 0.0
        %1588 = vmatpush1.msra.mxu0 0.0
        %1589 = vmatprep.subr.mxu0 0.0
        %1590 = vmatpush1.msra.mxu0 0.0
        %1591 = vmatprep.subr.mxu0 0.0
        %1592 = vmatpush1.msra.mxu0 0.0
        %1593 = vmatprep.subr.mxu0 0.0
        %1594 = vmatpush1.msra.mxu0 0.0
        %1595 = vmatprep.subr.mxu0 0.0
        %1596 = vmatpush1.msra.mxu0 0.0
        %1597 = vmatprep.subr.mxu0 0.0
        %1598 = vmatpush1.msra.mxu0 0.0
        %1599 = vmatprep.subr.mxu0 0.0
        %1600 = vmatpush1.msra.mxu0 0.0
        %1601 = vmatprep.subr.mxu0 0.0
        %1602 = vmatpush1.msra.mxu0 0.0
        %1603 = vmatprep.subr.mxu0 0.0
        %1604 = vmatpush1.msra.mxu0 0.0
        %1605 = vmatprep.subr.mxu0 0.0
        %1606 = vmatpush1.msra.mxu0 0.0
        %1607 = vmatprep.subr.mxu0 0.0
        %1608 = vmatpush1.msra.mxu0 0.0
        %1609 = vmatprep.subr.mxu0 0.0
        %1610 = vmatpush1.msra.mxu0 0.0
        %1611 = vmatprep.subr.mxu0 0.0
        %1612 = vmatpush1.msra.mxu0 0.0
        %1613 = vmatprep.subr.mxu0 0.0
        %1614 = vmatpush1.msra.mxu0 0.0
        %1615 = vmatprep.subr.mxu0 0.0
        %1616 = vmatpush1.msra.mxu0 0.0
        %1617 = vmatprep.subr.mxu0 0.0
        %1618 = vmatpush1.msra.mxu0 0.0
        %1619 = vmatprep.subr.mxu0 0.0
        %1620 = vmatpush1.msra.mxu0 0.0
        %1621 = vmatprep.subr.mxu0 0.0
        %1622 = vmatpush1.msra.mxu0 0.0
        %1623 = vmatprep.subr.mxu0 0.0
        %1624 = vmatpush1.msra.mxu0 0.0
        %1625 = vmatprep.subr.mxu0 0.0
        %1626 = vmatpush1.msra.mxu0 0.0
        %1627 = vmatprep.subr.mxu0 0.0
        %1628 = vmatpush1.msra.mxu0 0.0
        %1629 = vmatprep.subr.mxu0 0.0
        %1630 = vmatpush1.msra.mxu0 0.0
        %1631 = vmatprep.subr.mxu0 0.0
        %1632 = vmatpush1.msra.mxu0 0.0
        %1633 = vmatprep.subr.mxu0 0.0
        %1634 = vmatpush1.msra.mxu0 0.0
        %1635 = vmatprep.subr.mxu0 0.0
        %1636 = vmatpush1.msra.mxu0 0.0
        %1637 = vmatprep.mubr.f32.mxu0 0.0
        %1638 = vmatmul.mubr.f32.gmra.mrb[0].mxu0 %v1550
        %v1639 = vpop.f32.mrb[0].mxu0
        %v1640 = vadd.f32 %v1511, %v1639
        %v1641 = vpop.f32.mrb[0].mxu0
        %1642 = vmatprep.mubr.f32.mxu0 0.0
        %1643 = vmatmul.mubr.f32.gmra.mrb[0].mxu0 %v1553
        %v1644 = vpop.f32.mrb[0].mxu0
        %v1645 = vadd.f32 %v1516, %v1644
        %v1646 = vpop.f32.mrb[0].mxu0
        %1647 = vmatprep.mubr.f32.mxu0 0.0
        %1648 = vmatmul.mubr.f32.gmra.mrb[0].mxu0 %v1556
        %v1649 = vpop.f32.mrb[0].mxu0
        %v1650 = vadd.f32 %v1521, %v1649
        %v1651 = vpop.f32.mrb[0].mxu0
        %1652 = vmatprep.mubr.f32.mxu0 0.0
        %1653 = vmatmul.mubr.f32.gmra.mrb[0].mxu0 %v1559
        %v1654 = vpop.f32.mrb[0].mxu0
        %v1655 = vadd.f32 %v1526, %v1654
        %v1656 = vpop.f32.mrb[0].mxu0
        %1657 = vmatprep.mubr.f32.mxu0 0.0
        %1658 = vmatmul.mubr.f32.gmra.mrb[0].mxu0 %v1562
        %v1659 = vpop.f32.mrb[0].mxu0
        %v1660 = vadd.f32 %v1531, %v1659
        %v1661 = vpop.f32.mrb[0].mxu0
        %1662 = vmatprep.mubr.f32.mxu0 0.0
        %1663 = vmatmul.mubr.f32.gmra.mrb[0].mxu0 %v1565
        %v1664 = vpop.f32.mrb[0].mxu0
        %v1665 = vadd.f32 %v1536, %v1664
        %v1666 = vpop.f32.mrb[0].mxu0
        %1667 = vmatprep.mubr.f32.mxu0 0.0
        %1668 = vmatmul.mubr.f32.gmra.mrb[0].mxu0 %v1568
        %v1669 = vpop.f32.mrb[0].mxu0
        %v1670 = vadd.f32 %v1541, %v1669
        %v1671 = vpop.f32.mrb[0].mxu0
        %1672 = vmatprep.mubr.f32.mxu0 0.0
        %1673 = vmatmul.mubr.f32.gmra.mrb[0].mxu0 %v1571
        %v1674 = vpop.f32.mrb[0].mxu0
        %v1675 = vadd.f32 %v1546, %v1674
        %v1676 = vpop.f32.mrb[0].mxu0
        %1677 = vdwg.mxu0
        %v1678 = vmax.f32 %v1640, 0.0
        %v1679 = vmax.f32 %v1645, 0.0
        %v1680 = vmax.f32 %v1650, 0.0
        %v1681 = vmax.f32 %v1655, 0.0
        %v1682 = vmax.f32 %v1660, 0.0
        %v1683 = vmax.f32 %v1665, 0.0
        %v1684 = vmax.f32 %v1670, 0.0
        %v1685 = vmax.f32 %v1675, 0.0
        %vm1686 = vcmp.ne.f32.partialorder %v1640, %v1640
        %vm1687 = vcmp.ne.f32.partialorder %v1645, %v1645
        %vm1688 = vcmp.ne.f32.partialorder %v1650, %v1650
        %vm1689 = vcmp.ne.f32.partialorder %v1655, %v1655
        %vm1690 = vcmp.ne.f32.partialorder %v1660, %v1660
        %vm1691 = vcmp.ne.f32.partialorder %v1665, %v1665
        %vm1692 = vcmp.ne.f32.partialorder %v1670, %v1670
        %vm1693 = vcmp.ne.f32.partialorder %v1675, %v1675
        %v1694 = vadd.f32 %v1640, 0.0
        %v1695 = vadd.f32 %v1645, 0.0
        %v1696 = vadd.f32 %v1650, 0.0
        %v1697 = vadd.f32 %v1655, 0.0
        %v1698 = vadd.f32 %v1660, 0.0
        %v1699 = vadd.f32 %v1665, 0.0
        %v1700 = vadd.f32 %v1670, 0.0
        %v1701 = vadd.f32 %v1675, 0.0
        %v1702 = vand.u32 2147483647, %v1640
        %v1703 = vand.u32 2147483647, %v1645
        %v1704 = vand.u32 2147483647, %v1650
        %v1705 = vand.u32 2147483647, %v1655
        %v1706 = vand.u32 2147483647, %v1660
        %v1707 = vand.u32 2147483647, %v1665
        %v1708 = vand.u32 2147483647, %v1670
        %v1709 = vand.u32 2147483647, %v1675
        %v1710 = vsub.f32 0.0, %v1702
        %v1711 = vsub.f32 0.0, %v1703
        %v1712 = vsub.f32 0.0, %v1704
        %v1713 = vsub.f32 0.0, %v1705
        %v1714 = vsub.f32 0.0, %v1706
        %v1715 = vsub.f32 0.0, %v1707
        %v1716 = vsub.f32 0.0, %v1708
        %v1717 = vsub.f32 0.0, %v1709
        %v1718 = vmul.f32 %v1710, 1.442695
        %v1719 = vpow.pop %v1718
        %v1720 = vmul.f32 %v1711, 1.442695
        %v1721 = vpow.pop %v1720
        %v1722 = vmul.f32 %v1712, 1.442695
        %v1723 = vpow.pop %v1722
        %v1724 = vmul.f32 %v1713, 1.442695
        %v1725 = vpow.pop %v1724
        %v1726 = vmul.f32 %v1714, 1.442695
        %v1727 = vpow.pop %v1726
        %v1728 = vmul.f32 %v1715, 1.442695
        %v1729 = vpow.pop %v1728
        %v1730 = vmul.f32 %v1716, 1.442695
        %v1731 = vpow.pop %v1730
        %v1732 = vmul.f32 %v1717, 1.442695
        %v1733 = vpow.pop %v1732
        %v1734 = vadd.f32 %v1719, 1.0
        %v1735 = vlog2.pop %v1734
        %v1736 = vmul.f32 %v1735, 0.6931472
        %v1737 = vmul.f32 -0.5, %v1719
        %v1738 = vadd.f32 %v1737, 1.0
        %v1739 = vmul.f32 %v1738, %v1719
        %v1740 = vand.u32 2147483647, %v1719
        %vm1741 = vcmp.lt.f32.partialorder %v1740, 0.0004427343
        %v1742 = vsel %vm1741, %v1739, %v1736
        %v1743 = vadd.f32 %v1721, 1.0
        %v1744 = vlog2.pop %v1743
        %v1745 = vmul.f32 %v1744, 0.6931472
        %v1746 = vmul.f32 -0.5, %v1721
        %v1747 = vadd.f32 %v1746, 1.0
        %v1748 = vmul.f32 %v1747, %v1721
        %v1749 = vand.u32 2147483647, %v1721
        %vm1750 = vcmp.lt.f32.partialorder %v1749, 0.0004427343
        %v1751 = vsel %vm1750, %v1748, %v1745
        %v1752 = vadd.f32 %v1723, 1.0
        %v1753 = vlog2.pop %v1752
        %v1754 = vmul.f32 %v1753, 0.6931472
        %v1755 = vmul.f32 -0.5, %v1723
        %v1756 = vadd.f32 %v1755, 1.0
        %v1757 = vmul.f32 %v1756, %v1723
        %v1758 = vand.u32 2147483647, %v1723
        %vm1759 = vcmp.lt.f32.partialorder %v1758, 0.0004427343
        %v1760 = vsel %vm1759, %v1757, %v1754
        %v1761 = vadd.f32 %v1725, 1.0
        %v1762 = vlog2.pop %v1761
        %v1763 = vmul.f32 %v1762, 0.6931472
        %v1764 = vmul.f32 -0.5, %v1725
        %v1765 = vadd.f32 %v1764, 1.0
        %v1766 = vmul.f32 %v1765, %v1725
        %v1767 = vand.u32 2147483647, %v1725
        %vm1768 = vcmp.lt.f32.partialorder %v1767, 0.0004427343
        %v1769 = vsel %vm1768, %v1766, %v1763
        %v1770 = vadd.f32 %v1727, 1.0
        %v1771 = vlog2.pop %v1770
        %v1772 = vmul.f32 %v1771, 0.6931472
        %v1773 = vmul.f32 -0.5, %v1727
        %v1774 = vadd.f32 %v1773, 1.0
        %v1775 = vmul.f32 %v1774, %v1727
        %v1776 = vand.u32 2147483647, %v1727
        %vm1777 = vcmp.lt.f32.partialorder %v1776, 0.0004427343
        %v1778 = vsel %vm1777, %v1775, %v1772
        %v1779 = vadd.f32 %v1729, 1.0
        %v1780 = vlog2.pop %v1779
        %v1781 = vmul.f32 %v1780, 0.6931472
        %v1782 = vmul.f32 -0.5, %v1729
        %v1783 = vadd.f32 %v1782, 1.0
        %v1784 = vmul.f32 %v1783, %v1729
        %v1785 = vand.u32 2147483647, %v1729
        %vm1786 = vcmp.lt.f32.partialorder %v1785, 0.0004427343
        %v1787 = vsel %vm1786, %v1784, %v1781
        %v1788 = vadd.f32 %v1731, 1.0
        %v1789 = vlog2.pop %v1788
        %v1790 = vmul.f32 %v1789, 0.6931472
        %v1791 = vmul.f32 -0.5, %v1731
        %v1792 = vadd.f32 %v1791, 1.0
        %v1793 = vmul.f32 %v1792, %v1731
        %v1794 = vand.u32 2147483647, %v1731
        %vm1795 = vcmp.lt.f32.partialorder %v1794, 0.0004427343
        %v1796 = vsel %vm1795, %v1793, %v1790
        %v1797 = vadd.f32 %v1733, 1.0
        %v1798 = vlog2.pop %v1797
        %v1799 = vmul.f32 %v1798, 0.6931472
        %v1800 = vmul.f32 -0.5, %v1733
        %v1801 = vadd.f32 %v1800, 1.0
        %v1802 = vmul.f32 %v1801, %v1733
        %v1803 = vand.u32 2147483647, %v1733
        %vm1804 = vcmp.lt.f32.partialorder %v1803, 0.0004427343
        %v1805 = vsel %vm1804, %v1802, %v1799
        %v1806 = vadd.f32 %v1678, %v1742
        %v1807 = vadd.f32 %v1679, %v1751
        %v1808 = vadd.f32 %v1680, %v1760
        %v1809 = vadd.f32 %v1681, %v1769
        %v1810 = vadd.f32 %v1682, %v1778
        %v1811 = vadd.f32 %v1683, %v1787
        %v1812 = vadd.f32 %v1684, %v1796
        %v1813 = vadd.f32 %v1685, %v1805
        %v1814 = vsel %vm1686, %v1694, %v1806
        %v1815 = vsel %vm1687, %v1695, %v1807
        %v1816 = vsel %vm1688, %v1696, %v1808
        %v1817 = vsel %vm1689, %v1697, %v1809
        %v1818 = vsel %vm1690, %v1698, %v1810
        %v1819 = vsel %vm1691, %v1699, %v1811
        %v1820 = vsel %vm1692, %v1700, %v1812
        %v1821 = vsel %vm1693, %v1701, %v1813
        %v1822 = vrot.slane %v1814, 4
        %v1823 = vadd.f32 %v1814, %v1822
        %v1824 = vrot.slane %v1823, 2
        %v1825 = vadd.f32 %v1823, %v1824
        %v1826 = vrot.slane %v1825, 1
        %v1827 = vadd.f32 %v1825, %v1826
        %v1828 = vrot.slane %v1815, 4
        %v1829 = vadd.f32 %v1815, %v1828
        %v1830 = vrot.slane %v1829, 2
        %v1831 = vadd.f32 %v1829, %v1830
        %v1832 = vrot.slane %v1831, 1
        %v1833 = vadd.f32 %v1831, %v1832
        %v1834 = vrot.slane %v1816, 4
        %v1835 = vadd.f32 %v1816, %v1834
        %v1836 = vrot.slane %v1835, 2
        %v1837 = vadd.f32 %v1835, %v1836
        %v1838 = vrot.slane %v1837, 1
        %v1839 = vadd.f32 %v1837, %v1838
        %v1840 = vrot.slane %v1817, 4
        %v1841 = vadd.f32 %v1817, %v1840
        %v1842 = vrot.slane %v1841, 2
        %v1843 = vadd.f32 %v1841, %v1842
        %v1844 = vrot.slane %v1843, 1
        %v1845 = vadd.f32 %v1843, %v1844
        %v1846 = vrot.slane %v1818, 4
        %v1847 = vadd.f32 %v1818, %v1846
        %v1848 = vrot.slane %v1847, 2
        %v1849 = vadd.f32 %v1847, %v1848
        %v1850 = vrot.slane %v1849, 1
        %v1851 = vadd.f32 %v1849, %v1850
        %v1852 = vrot.slane %v1819, 4
        %v1853 = vadd.f32 %v1819, %v1852
        %v1854 = vrot.slane %v1853, 2
        %v1855 = vadd.f32 %v1853, %v1854
        %v1856 = vrot.slane %v1855, 1
        %v1857 = vadd.f32 %v1855, %v1856
        %v1858 = vrot.slane %v1820, 4
        %v1859 = vadd.f32 %v1820, %v1858
        %v1860 = vrot.slane %v1859, 2
        %v1861 = vadd.f32 %v1859, %v1860
        %v1862 = vrot.slane %v1861, 1
        %v1863 = vadd.f32 %v1861, %v1862
        %v1864 = vrot.slane %v1821, 4
        %v1865 = vadd.f32 %v1821, %v1864
        %v1866 = vrot.slane %v1865, 2
        %v1867 = vadd.f32 %v1865, %v1866
        %v1868 = vrot.slane %v1867, 1
        %v1869 = vadd.f32 %v1867, %v1868
        %v1870 = vld [vmem:[%s7] sm:$0xff]
        %v1871 = vld [vmem:[%s7 + $0x8] sm:$0xff]
        %v1872 = vld [vmem:[%s7 + $0x10] sm:$0xff]
        %v1873 = vld [vmem:[%s7 + $0x18] sm:$0xff]
        %v1874 = vld [vmem:[%s7 + $0x20] sm:$0xff]
        %v1875 = vld [vmem:[%s7 + $0x28] sm:$0xff]
        %v1876 = vld [vmem:[%s7 + $0x30] sm:$0xff]
        %v1877 = vld [vmem:[%s7 + $0x38] sm:$0xff]
        %v1878 = vld [vmem:[%s8] sm:$0xff]
        %v1879 = vld [vmem:[%s8 + $0x8] sm:$0xff]
        %v1880 = vld [vmem:[%s8 + $0x10] sm:$0xff]
        %v1881 = vld [vmem:[%s8 + $0x18] sm:$0xff]
        %v1882 = vld [vmem:[%s8 + $0x20] sm:$0xff]
        %v1883 = vld [vmem:[%s8 + $0x28] sm:$0xff]
        %v1884 = vld [vmem:[%s8 + $0x30] sm:$0xff]
        %v1885 = vld [vmem:[%s8 + $0x38] sm:$0xff]
        %v1894 = vsel %vm1213, %v1833, %v1827
        %v1895 = vsel %vm1215, %v1839, %v1894
        %v1896 = vsel %vm1217, %v1845, %v1895
        %v1897 = vsel %vm1219, %v1851, %v1896
        %v1898 = vsel %vm1221, %v1857, %v1897
        %v1899 = vsel %vm1223, %v1863, %v1898
        %v1900 = vsel %vm1225, %v1869, %v1899
        %1902 = vmatprep.subr.mxu0 0.0
        %1903 = vmatpush1.msra.mxu0 %v468
        %1904 = vmatprep.subr.mxu0 0.0
        %1905 = vmatpush1.msra.mxu0 %v469
        %1906 = vmatprep.subr.mxu0 0.0
        %1907 = vmatpush1.msra.mxu0 %v470
        %1908 = vmatprep.subr.mxu0 0.0
        %1909 = vmatpush1.msra.mxu0 %v471
        %1910 = vmatprep.subr.mxu0 0.0
        %1911 = vmatpush1.msra.mxu0 %v472
        %1912 = vmatprep.subr.mxu0 0.0
        %1913 = vmatpush1.msra.mxu0 %v473
        %1914 = vmatprep.subr.mxu0 0.0
        %1915 = vmatpush1.msra.mxu0 %v474
        %1916 = vmatprep.subr.mxu0 0.0
        %1917 = vmatpush1.msra.mxu0 %v475
        %1918 = vmatprep.subr.mxu0 0.0
        %1919 = vmatpush1.msra.mxu0 %v476
        %1920 = vmatprep.subr.mxu0 0.0
        %1921 = vmatpush1.msra.mxu0 %v477
        %1922 = vmatprep.subr.mxu0 0.0
        %1923 = vmatpush1.msra.mxu0 %v478
        %1924 = vmatprep.subr.mxu0 0.0
        %1925 = vmatpush1.msra.mxu0 %v479
        %1926 = vmatprep.subr.mxu0 0.0
        %1927 = vmatpush1.msra.mxu0 %v480
        %1928 = vmatprep.subr.mxu0 0.0
        %1929 = vmatpush1.msra.mxu0 %v481
        %1930 = vmatprep.subr.mxu0 0.0
        %1931 = vmatpush1.msra.mxu0 %v482
        %1932 = vmatprep.subr.mxu0 0.0
        %1933 = vmatpush1.msra.mxu0 %v483
        %1934 = vmatprep.subr.mxu0 0.0
        %1935 = vmatpush1.msra.mxu0 0.0
        %1936 = vmatprep.subr.mxu0 0.0
        %1937 = vmatpush1.msra.mxu0 0.0
        %1938 = vmatprep.subr.mxu0 0.0
        %1939 = vmatpush1.msra.mxu0 0.0
        %1940 = vmatprep.subr.mxu0 0.0
        %1941 = vmatpush1.msra.mxu0 0.0
        %1942 = vmatprep.subr.mxu0 0.0
        %1943 = vmatpush1.msra.mxu0 0.0
        %1944 = vmatprep.subr.mxu0 0.0
        %1945 = vmatpush1.msra.mxu0 0.0
        %1946 = vmatprep.subr.mxu0 0.0
        %1947 = vmatpush1.msra.mxu0 0.0
        %1948 = vmatprep.subr.mxu0 0.0
        %1949 = vmatpush1.msra.mxu0 0.0
        %1950 = vmatprep.subr.mxu0 0.0
        %1951 = vmatpush1.msra.mxu0 0.0
        %1952 = vmatprep.subr.mxu0 0.0
        %1953 = vmatpush1.msra.mxu0 0.0
        %1954 = vmatprep.subr.mxu0 0.0
        %1955 = vmatpush1.msra.mxu0 0.0
        %1956 = vmatprep.subr.mxu0 0.0
        %1957 = vmatpush1.msra.mxu0 0.0
        %1958 = vmatprep.subr.mxu0 0.0
        %1959 = vmatpush1.msra.mxu0 0.0
        %1960 = vmatprep.subr.mxu0 0.0
        %1961 = vmatpush1.msra.mxu0 0.0
        %1962 = vmatprep.subr.mxu0 0.0
        %1963 = vmatpush1.msra.mxu0 0.0
        %1964 = vmatprep.subr.mxu0 0.0
        %1965 = vmatpush1.msra.mxu0 0.0
        %1966 = vmatprep.mubr.f32.mxu0 0.0
        %1967 = vmatmul.mubr.f32.gmra.mrb[0].mxu0 %v1900
        %v1968 = vpop.f32.mrb[0].mxu0
        %v1969 = vadd.f32 0.0, %v1968
        %v1970 = vpop.f32.mrb[0].mxu0
        %1971 = vdwg.mxu0
        %1972 = vmatprep.subr.mxu0 0.0
        %1973 = vmatpush1.msra.mxu0 %v555
        %1974 = vmatprep.subr.mxu0 0.0
        %1975 = vmatpush1.msra.mxu0 %v556
        %1976 = vmatprep.subr.mxu0 0.0
        %1977 = vmatpush1.msra.mxu0 %v557
        %1978 = vmatprep.subr.mxu0 0.0
        %1979 = vmatpush1.msra.mxu0 %v558
        %1980 = vmatprep.subr.mxu0 0.0
        %1981 = vmatpush1.msra.mxu0 %v559
        %1982 = vmatprep.subr.mxu0 0.0
        %1983 = vmatpush1.msra.mxu0 %v560
        %1984 = vmatprep.subr.mxu0 0.0
        %1985 = vmatpush1.msra.mxu0 %v561
        %1986 = vmatprep.subr.mxu0 0.0
        %1987 = vmatpush1.msra.mxu0 %v562
        %1988 = vmatprep.subr.mxu0 0.0
        %1989 = vmatpush1.msra.mxu0 %v563
        %1990 = vmatprep.subr.mxu0 0.0
        %1991 = vmatpush1.msra.mxu0 %v564
        %1992 = vmatprep.subr.mxu0 0.0
        %1993 = vmatpush1.msra.mxu0 %v565
        %1994 = vmatprep.subr.mxu0 0.0
        %1995 = vmatpush1.msra.mxu0 %v566
        %1996 = vmatprep.subr.mxu0 0.0
        %1997 = vmatpush1.msra.mxu0 %v567
        %1998 = vmatprep.subr.mxu0 0.0
        %1999 = vmatpush1.msra.mxu0 %v568
        %2000 = vmatprep.subr.mxu0 0.0
        %2001 = vmatpush1.msra.mxu0 %v569
        %2002 = vmatprep.subr.mxu0 0.0
        %2003 = vmatpush1.msra.mxu0 %v570
        %2004 = vmatprep.subr.mxu0 0.0
        %2005 = vmatpush1.msra.mxu0 0.0
        %2006 = vmatprep.subr.mxu0 0.0
        %2007 = vmatpush1.msra.mxu0 0.0
        %2008 = vmatprep.subr.mxu0 0.0
        %2009 = vmatpush1.msra.mxu0 0.0
        %2010 = vmatprep.subr.mxu0 0.0
        %2011 = vmatpush1.msra.mxu0 0.0
        %2012 = vmatprep.subr.mxu0 0.0
        %2013 = vmatpush1.msra.mxu0 0.0
        %2014 = vmatprep.subr.mxu0 0.0
        %2015 = vmatpush1.msra.mxu0 0.0
        %2016 = vmatprep.subr.mxu0 0.0
        %2017 = vmatpush1.msra.mxu0 0.0
        %2018 = vmatprep.subr.mxu0 0.0
        %2019 = vmatpush1.msra.mxu0 0.0
        %2020 = vmatprep.subr.mxu0 0.0
        %2021 = vmatpush1.msra.mxu0 0.0
        %2022 = vmatprep.subr.mxu0 0.0
        %2023 = vmatpush1.msra.mxu0 0.0
        %2024 = vmatprep.subr.mxu0 0.0
        %2025 = vmatpush1.msra.mxu0 0.0
        %2026 = vmatprep.subr.mxu0 0.0
        %2027 = vmatpush1.msra.mxu0 0.0
        %2028 = vmatprep.subr.mxu0 0.0
        %2029 = vmatpush1.msra.mxu0 0.0
        %2030 = vmatprep.subr.mxu0 0.0
        %2031 = vmatpush1.msra.mxu0 0.0
        %2032 = vmatprep.subr.mxu0 0.0
        %2033 = vmatpush1.msra.mxu0 0.0
        %2034 = vmatprep.subr.mxu0 0.0
        %2035 = vmatpush1.msra.mxu0 0.0
        %2036 = vmatprep.mubr.f32.mxu0 0.0
        %2037 = vmatmul.mubr.f32.gmra.mrb[0].mxu0 %v1900
        %v2038 = vpop.f32.mrb[0].mxu0
        %v2039 = vadd.f32 0.0, %v2038
        %v2040 = vpop.f32.mrb[0].mxu0
        %2041 = vdwg.mxu0
        %2042 = vmatprep.subr.mxu0 0.0
        %2043 = vmatpush1.msra.mxu0 %v642
        %2044 = vmatprep.subr.mxu0 0.0
        %2045 = vmatpush1.msra.mxu0 %v643
        %2046 = vmatprep.subr.mxu0 0.0
        %2047 = vmatpush1.msra.mxu0 %v644
        %2048 = vmatprep.subr.mxu0 0.0
        %2049 = vmatpush1.msra.mxu0 %v645
        %2050 = vmatprep.subr.mxu0 0.0
        %2051 = vmatpush1.msra.mxu0 %v646
        %2052 = vmatprep.subr.mxu0 0.0
        %2053 = vmatpush1.msra.mxu0 %v647
        %2054 = vmatprep.subr.mxu0 0.0
        %2055 = vmatpush1.msra.mxu0 %v648
        %2056 = vmatprep.subr.mxu0 0.0
        %2057 = vmatpush1.msra.mxu0 %v649
        %2058 = vmatprep.subr.mxu0 0.0
        %2059 = vmatpush1.msra.mxu0 %v650
        %2060 = vmatprep.subr.mxu0 0.0
        %2061 = vmatpush1.msra.mxu0 %v651
        %2062 = vmatprep.subr.mxu0 0.0
        %2063 = vmatpush1.msra.mxu0 %v652
        %2064 = vmatprep.subr.mxu0 0.0
        %2065 = vmatpush1.msra.mxu0 %v653
        %2066 = vmatprep.subr.mxu0 0.0
        %2067 = vmatpush1.msra.mxu0 %v654
        %2068 = vmatprep.subr.mxu0 0.0
        %2069 = vmatpush1.msra.mxu0 %v655
        %2070 = vmatprep.subr.mxu0 0.0
        %2071 = vmatpush1.msra.mxu0 %v656
        %2072 = vmatprep.subr.mxu0 0.0
        %2073 = vmatpush1.msra.mxu0 %v657
        %2074 = vmatprep.subr.mxu0 0.0
        %2075 = vmatpush1.msra.mxu0 0.0
        %2076 = vmatprep.subr.mxu0 0.0
        %2077 = vmatpush1.msra.mxu0 0.0
        %2078 = vmatprep.subr.mxu0 0.0
        %2079 = vmatpush1.msra.mxu0 0.0
        %2080 = vmatprep.subr.mxu0 0.0
        %2081 = vmatpush1.msra.mxu0 0.0
        %2082 = vmatprep.subr.mxu0 0.0
        %2083 = vmatpush1.msra.mxu0 0.0
        %2084 = vmatprep.subr.mxu0 0.0
        %2085 = vmatpush1.msra.mxu0 0.0
        %2086 = vmatprep.subr.mxu0 0.0
        %2087 = vmatpush1.msra.mxu0 0.0
        %2088 = vmatprep.subr.mxu0 0.0
        %2089 = vmatpush1.msra.mxu0 0.0
        %2090 = vmatprep.subr.mxu0 0.0
        %2091 = vmatpush1.msra.mxu0 0.0
        %2092 = vmatprep.subr.mxu0 0.0
        %2093 = vmatpush1.msra.mxu0 0.0
        %2094 = vmatprep.subr.mxu0 0.0
        %2095 = vmatpush1.msra.mxu0 0.0
        %2096 = vmatprep.subr.mxu0 0.0
        %2097 = vmatpush1.msra.mxu0 0.0
        %2098 = vmatprep.subr.mxu0 0.0
        %2099 = vmatpush1.msra.mxu0 0.0
        %2100 = vmatprep.subr.mxu0 0.0
        %2101 = vmatpush1.msra.mxu0 0.0
        %2102 = vmatprep.subr.mxu0 0.0
        %2103 = vmatpush1.msra.mxu0 0.0
        %2104 = vmatprep.subr.mxu0 0.0
        %2105 = vmatpush1.msra.mxu0 0.0
        %2106 = vmatprep.mubr.f32.mxu0 0.0
        %2107 = vmatmul.mubr.f32.gmra.mrb[0].mxu0 %v1900
        %v2108 = vpop.f32.mrb[0].mxu0
        %v2109 = vadd.f32 0.0, %v2108
        %v2110 = vpop.f32.mrb[0].mxu0
        %2111 = vdwg.mxu0
        %2112 = vmatprep.subr.mxu0 0.0
        %2113 = vmatpush1.msra.mxu0 %v729
        %2114 = vmatprep.subr.mxu0 0.0
        %2115 = vmatpush1.msra.mxu0 %v730
        %2116 = vmatprep.subr.mxu0 0.0
        %2117 = vmatpush1.msra.mxu0 %v731
        %2118 = vmatprep.subr.mxu0 0.0
        %2119 = vmatpush1.msra.mxu0 %v732
        %2120 = vmatprep.subr.mxu0 0.0
        %2121 = vmatpush1.msra.mxu0 %v733
        %2122 = vmatprep.subr.mxu0 0.0
        %2123 = vmatpush1.msra.mxu0 %v734
        %2124 = vmatprep.subr.mxu0 0.0
        %2125 = vmatpush1.msra.mxu0 %v735
        %2126 = vmatprep.subr.mxu0 0.0
        %2127 = vmatpush1.msra.mxu0 %v736
        %2128 = vmatprep.subr.mxu0 0.0
        %2129 = vmatpush1.msra.mxu0 %v737
        %2130 = vmatprep.subr.mxu0 0.0
        %2131 = vmatpush1.msra.mxu0 %v738
        %2132 = vmatprep.subr.mxu0 0.0
        %2133 = vmatpush1.msra.mxu0 %v739
        %2134 = vmatprep.subr.mxu0 0.0
        %2135 = vmatpush1.msra.mxu0 %v740
        %2136 = vmatprep.subr.mxu0 0.0
        %2137 = vmatpush1.msra.mxu0 %v741
        %2138 = vmatprep.subr.mxu0 0.0
        %2139 = vmatpush1.msra.mxu0 %v742
        %2140 = vmatprep.subr.mxu0 0.0
        %2141 = vmatpush1.msra.mxu0 %v743
        %2142 = vmatprep.subr.mxu0 0.0
        %2143 = vmatpush1.msra.mxu0 %v744
        %2144 = vmatprep.subr.mxu0 0.0
        %2145 = vmatpush1.msra.mxu0 0.0
        %2146 = vmatprep.subr.mxu0 0.0
        %2147 = vmatpush1.msra.mxu0 0.0
        %2148 = vmatprep.subr.mxu0 0.0
        %2149 = vmatpush1.msra.mxu0 0.0
        %2150 = vmatprep.subr.mxu0 0.0
        %2151 = vmatpush1.msra.mxu0 0.0
        %2152 = vmatprep.subr.mxu0 0.0
        %2153 = vmatpush1.msra.mxu0 0.0
        %2154 = vmatprep.subr.mxu0 0.0
        %2155 = vmatpush1.msra.mxu0 0.0
        %2156 = vmatprep.subr.mxu0 0.0
        %2157 = vmatpush1.msra.mxu0 0.0
        %2158 = vmatprep.subr.mxu0 0.0
        %2159 = vmatpush1.msra.mxu0 0.0
        %2160 = vmatprep.subr.mxu0 0.0
        %2161 = vmatpush1.msra.mxu0 0.0
        %2162 = vmatprep.subr.mxu0 0.0
        %2163 = vmatpush1.msra.mxu0 0.0
        %2164 = vmatprep.subr.mxu0 0.0
        %2165 = vmatpush1.msra.mxu0 0.0
        %2166 = vmatprep.subr.mxu0 0.0
        %2167 = vmatpush1.msra.mxu0 0.0
        %2168 = vmatprep.subr.mxu0 0.0
        %2169 = vmatpush1.msra.mxu0 0.0
        %2170 = vmatprep.subr.mxu0 0.0
        %2171 = vmatpush1.msra.mxu0 0.0
        %2172 = vmatprep.subr.mxu0 0.0
        %2173 = vmatpush1.msra.mxu0 0.0
        %2174 = vmatprep.subr.mxu0 0.0
        %2175 = vmatpush1.msra.mxu0 0.0
        %2176 = vmatprep.mubr.f32.mxu0 0.0
        %2177 = vmatmul.mubr.f32.gmra.mrb[0].mxu0 %v1900
        %v2178 = vpop.f32.mrb[0].mxu0
        %v2179 = vadd.f32 0.0, %v2178
        %v2180 = vpop.f32.mrb[0].mxu0
        %2181 = vdwg.mxu0
        %2183 = vset.pattern.permute.xlu0 0
        %2184 = vperm.xlu0 %2183, %v1878
        %v2185 = vpop.permute.xlu0 %2184
        %2188 = vset.pattern.permute.xlu0 0
        %2189 = vperm.xlu0 %2188, %v1879
        %v2190 = vpop.permute.xlu0 %2189
        %2193 = vset.pattern.permute.xlu0 0
        %2194 = vperm.xlu0 %2193, %v1880
        %v2195 = vpop.permute.xlu0 %2194
        %2198 = vset.pattern.permute.xlu0 0
        %2199 = vperm.xlu0 %2198, %v1881
        %v2200 = vpop.permute.xlu0 %2199
        %2203 = vset.pattern.permute.xlu0 0
        %2204 = vperm.xlu0 %2203, %v1882
        %v2205 = vpop.permute.xlu0 %2204
        %2208 = vset.pattern.permute.xlu0 0
        %2209 = vperm.xlu0 %2208, %v1883
        %v2210 = vpop.permute.xlu0 %2209
        %2213 = vset.pattern.permute.xlu0 0
        %2214 = vperm.xlu0 %2213, %v1884
        %v2215 = vpop.permute.xlu0 %2214
        %2218 = vset.pattern.permute.xlu0 0
        %2219 = vperm.xlu0 %2218, %v1885
        %v2220 = vpop.permute.xlu0 %2219
        %v2223 = vsel %vm1548, %v1870, 0
        %v2226 = vsel %vm1548, %v1871, 0
        %v2229 = vsel %vm1548, %v1872, 0
        %v2232 = vsel %vm1548, %v1873, 0
        %v2235 = vsel %vm1548, %v1874, 0
        %v2238 = vsel %vm1548, %v1875, 0
        %v2241 = vsel %vm1548, %v1876, 0
        %v2244 = vsel %vm1548, %v1877, 0
        %2246 = vmatprep.subr.mxu0 0.0
        %2247 = vmatpush1.msra.mxu0 %v1900
        %2248 = vmatprep.subr.mxu0 0.0
        %2249 = vmatpush1.msra.mxu0 %v1969
        %2250 = vmatprep.subr.mxu0 0.0
        %2251 = vmatpush1.msra.mxu0 %v2039
        %2252 = vmatprep.subr.mxu0 0.0
        %2253 = vmatpush1.msra.mxu0 %v2109
        %2254 = vmatprep.subr.mxu0 0.0
        %2255 = vmatpush1.msra.mxu0 %v2179
        %2256 = vmatprep.subr.mxu0 0.0
        %2257 = vmatpush1.msra.mxu0 0.0
        %2258 = vmatprep.subr.mxu0 0.0
        %2259 = vmatpush1.msra.mxu0 0.0
        %2260 = vmatprep.subr.mxu0 0.0
        %2261 = vmatpush1.msra.mxu0 0.0
        %2262 = vmatprep.subr.mxu0 0.0
        %2263 = vmatpush1.msra.mxu0 0.0
        %2264 = vmatprep.subr.mxu0 0.0
        %2265 = vmatpush1.msra.mxu0 0.0
        %2266 = vmatprep.subr.mxu0 0.0
        %2267 = vmatpush1.msra.mxu0 0.0
        %2268 = vmatprep.subr.mxu0 0.0
        %2269 = vmatpush1.msra.mxu0 0.0
        %2270 = vmatprep.subr.mxu0 0.0
        %2271 = vmatpush1.msra.mxu0 0.0
        %2272 = vmatprep.subr.mxu0 0.0
        %2273 = vmatpush1.msra.mxu0 0.0
        %2274 = vmatprep.subr.mxu0 0.0
        %2275 = vmatpush1.msra.mxu0 0.0
        %2276 = vmatprep.subr.mxu0 0.0
        %2277 = vmatpush1.msra.mxu0 0.0
        %2278 = vmatprep.subr.mxu0 0.0
        %2279 = vmatpush1.msra.mxu0 0.0
        %2280 = vmatprep.subr.mxu0 0.0
        %2281 = vmatpush1.msra.mxu0 0.0
        %2282 = vmatprep.subr.mxu0 0.0
        %2283 = vmatpush1.msra.mxu0 0.0
        %2284 = vmatprep.subr.mxu0 0.0
        %2285 = vmatpush1.msra.mxu0 0.0
        %2286 = vmatprep.subr.mxu0 0.0
        %2287 = vmatpush1.msra.mxu0 0.0
        %2288 = vmatprep.subr.mxu0 0.0
        %2289 = vmatpush1.msra.mxu0 0.0
        %2290 = vmatprep.subr.mxu0 0.0
        %2291 = vmatpush1.msra.mxu0 0.0
        %2292 = vmatprep.subr.mxu0 0.0
        %2293 = vmatpush1.msra.mxu0 0.0
        %2294 = vmatprep.subr.mxu0 0.0
        %2295 = vmatpush1.msra.mxu0 0.0
        %2296 = vmatprep.subr.mxu0 0.0
        %2297 = vmatpush1.msra.mxu0 0.0
        %2298 = vmatprep.subr.mxu0 0.0
        %2299 = vmatpush1.msra.mxu0 0.0
        %2300 = vmatprep.subr.mxu0 0.0
        %2301 = vmatpush1.msra.mxu0 0.0
        %2302 = vmatprep.subr.mxu0 0.0
        %2303 = vmatpush1.msra.mxu0 0.0
        %2304 = vmatprep.subr.mxu0 0.0
        %2305 = vmatpush1.msra.mxu0 0.0
        %2306 = vmatprep.subr.mxu0 0.0
        %2307 = vmatpush1.msra.mxu0 0.0
        %2308 = vmatprep.subr.mxu0 0.0
        %2309 = vmatpush1.msra.mxu0 0.0
        %2310 = vmatprep.mubr.f32.mxu0 0.0
        %2311 = vmatmul.mubr.f32.gmra.mrb[0].mxu0 %v2223
        %v2312 = vpop.f32.mrb[0].mxu0
        %v2313 = vadd.f32 %v2185, %v2312
        %v2314 = vpop.f32.mrb[0].mxu0
        %2315 = vmatprep.mubr.f32.mxu0 0.0
        %2316 = vmatmul.mubr.f32.gmra.mrb[0].mxu0 %v2226
        %v2317 = vpop.f32.mrb[0].mxu0
        %v2318 = vadd.f32 %v2190, %v2317
        %v2319 = vpop.f32.mrb[0].mxu0
        %2320 = vmatprep.mubr.f32.mxu0 0.0
        %2321 = vmatmul.mubr.f32.gmra.mrb[0].mxu0 %v2229
        %v2322 = vpop.f32.mrb[0].mxu0
        %v2323 = vadd.f32 %v2195, %v2322
        %v2324 = vpop.f32.mrb[0].mxu0
        %2325 = vmatprep.mubr.f32.mxu0 0.0
        %2326 = vmatmul.mubr.f32.gmra.mrb[0].mxu0 %v2232
        %v2327 = vpop.f32.mrb[0].mxu0
        %v2328 = vadd.f32 %v2200, %v2327
        %v2329 = vpop.f32.mrb[0].mxu0
        %2330 = vmatprep.mubr.f32.mxu0 0.0
        %2331 = vmatmul.mubr.f32.gmra.mrb[0].mxu0 %v2235
        %v2332 = vpop.f32.mrb[0].mxu0
        %v2333 = vadd.f32 %v2205, %v2332
        %v2334 = vpop.f32.mrb[0].mxu0
        %2335 = vmatprep.mubr.f32.mxu0 0.0
        %2336 = vmatmul.mubr.f32.gmra.mrb[0].mxu0 %v2238
        %v2337 = vpop.f32.mrb[0].mxu0
        %v2338 = vadd.f32 %v2210, %v2337
        %v2339 = vpop.f32.mrb[0].mxu0
        %2340 = vmatprep.mubr.f32.mxu0 0.0
        %2341 = vmatmul.mubr.f32.gmra.mrb[0].mxu0 %v2241
        %v2342 = vpop.f32.mrb[0].mxu0
        %v2343 = vadd.f32 %v2215, %v2342
        %v2344 = vpop.f32.mrb[0].mxu0
        %2345 = vmatprep.mubr.f32.mxu0 0.0
        %2346 = vmatmul.mubr.f32.gmra.mrb[0].mxu0 %v2244
        %v2347 = vpop.f32.mrb[0].mxu0
        %v2348 = vadd.f32 %v2220, %v2347
        %v2349 = vpop.f32.mrb[0].mxu0
        %2350 = vdwg.mxu0
        %v2351 = vmax.f32 %v2313, 0.0
        %v2352 = vmax.f32 %v2318, 0.0
        %v2353 = vmax.f32 %v2323, 0.0
        %v2354 = vmax.f32 %v2328, 0.0
        %v2355 = vmax.f32 %v2333, 0.0
        %v2356 = vmax.f32 %v2338, 0.0
        %v2357 = vmax.f32 %v2343, 0.0
        %v2358 = vmax.f32 %v2348, 0.0
        %vm2359 = vcmp.ne.f32.partialorder %v2313, %v2313
        %vm2360 = vcmp.ne.f32.partialorder %v2318, %v2318
        %vm2361 = vcmp.ne.f32.partialorder %v2323, %v2323
        %vm2362 = vcmp.ne.f32.partialorder %v2328, %v2328
        %vm2363 = vcmp.ne.f32.partialorder %v2333, %v2333
        %vm2364 = vcmp.ne.f32.partialorder %v2338, %v2338
        %vm2365 = vcmp.ne.f32.partialorder %v2343, %v2343
        %vm2366 = vcmp.ne.f32.partialorder %v2348, %v2348
        %v2367 = vadd.f32 %v2313, 0.0
        %v2368 = vadd.f32 %v2318, 0.0
        %v2369 = vadd.f32 %v2323, 0.0
        %v2370 = vadd.f32 %v2328, 0.0
        %v2371 = vadd.f32 %v2333, 0.0
        %v2372 = vadd.f32 %v2338, 0.0
        %v2373 = vadd.f32 %v2343, 0.0
        %v2374 = vadd.f32 %v2348, 0.0
        %v2375 = vand.u32 2147483647, %v2313
        %v2376 = vand.u32 2147483647, %v2318
        %v2377 = vand.u32 2147483647, %v2323
        %v2378 = vand.u32 2147483647, %v2328
        %v2379 = vand.u32 2147483647, %v2333
        %v2380 = vand.u32 2147483647, %v2338
        %v2381 = vand.u32 2147483647, %v2343
        %v2382 = vand.u32 2147483647, %v2348
        %v2383 = vsub.f32 0.0, %v2375
        %v2384 = vsub.f32 0.0, %v2376
        %v2385 = vsub.f32 0.0, %v2377
        %v2386 = vsub.f32 0.0, %v2378
        %v2387 = vsub.f32 0.0, %v2379
        %v2388 = vsub.f32 0.0, %v2380
        %v2389 = vsub.f32 0.0, %v2381
        %v2390 = vsub.f32 0.0, %v2382
        %v2391 = vmul.f32 %v2383, 1.442695
        %v2392 = vpow.pop %v2391
        %v2393 = vmul.f32 %v2384, 1.442695
        %v2394 = vpow.pop %v2393
        %v2395 = vmul.f32 %v2385, 1.442695
        %v2396 = vpow.pop %v2395
        %v2397 = vmul.f32 %v2386, 1.442695
        %v2398 = vpow.pop %v2397
        %v2399 = vmul.f32 %v2387, 1.442695
        %v2400 = vpow.pop %v2399
        %v2401 = vmul.f32 %v2388, 1.442695
        %v2402 = vpow.pop %v2401
        %v2403 = vmul.f32 %v2389, 1.442695
        %v2404 = vpow.pop %v2403
        %v2405 = vmul.f32 %v2390, 1.442695
        %v2406 = vpow.pop %v2405
        %v2407 = vadd.f32 %v2392, 1.0
        %v2408 = vlog2.pop %v2407
        %v2409 = vmul.f32 %v2408, 0.6931472
        %v2410 = vmul.f32 -0.5, %v2392
        %v2411 = vadd.f32 %v2410, 1.0
        %v2412 = vmul.f32 %v2411, %v2392
        %v2413 = vand.u32 2147483647, %v2392
        %vm2414 = vcmp.lt.f32.partialorder %v2413, 0.0004427343
        %v2415 = vsel %vm2414, %v2412, %v2409
        %v2416 = vadd.f32 %v2394, 1.0
        %v2417 = vlog2.pop %v2416
        %v2418 = vmul.f32 %v2417, 0.6931472
        %v2419 = vmul.f32 -0.5, %v2394
        %v2420 = vadd.f32 %v2419, 1.0
        %v2421 = vmul.f32 %v2420, %v2394
        %v2422 = vand.u32 2147483647, %v2394
        %vm2423 = vcmp.lt.f32.partialorder %v2422, 0.0004427343
        %v2424 = vsel %vm2423, %v2421, %v2418
        %v2425 = vadd.f32 %v2396, 1.0
        %v2426 = vlog2.pop %v2425
        %v2427 = vmul.f32 %v2426, 0.6931472
        %v2428 = vmul.f32 -0.5, %v2396
        %v2429 = vadd.f32 %v2428, 1.0
        %v2430 = vmul.f32 %v2429, %v2396
        %v2431 = vand.u32 2147483647, %v2396
        %vm2432 = vcmp.lt.f32.partialorder %v2431, 0.0004427343
        %v2433 = vsel %vm2432, %v2430, %v2427
        %v2434 = vadd.f32 %v2398, 1.0
        %v2435 = vlog2.pop %v2434
        %v2436 = vmul.f32 %v2435, 0.6931472
        %v2437 = vmul.f32 -0.5, %v2398
        %v2438 = vadd.f32 %v2437, 1.0
        %v2439 = vmul.f32 %v2438, %v2398
        %v2440 = vand.u32 2147483647, %v2398
        %vm2441 = vcmp.lt.f32.partialorder %v2440, 0.0004427343
        %v2442 = vsel %vm2441, %v2439, %v2436
        %v2443 = vadd.f32 %v2400, 1.0
        %v2444 = vlog2.pop %v2443
        %v2445 = vmul.f32 %v2444, 0.6931472
        %v2446 = vmul.f32 -0.5, %v2400
        %v2447 = vadd.f32 %v2446, 1.0
        %v2448 = vmul.f32 %v2447, %v2400
        %v2449 = vand.u32 2147483647, %v2400
        %vm2450 = vcmp.lt.f32.partialorder %v2449, 0.0004427343
        %v2451 = vsel %vm2450, %v2448, %v2445
        %v2452 = vadd.f32 %v2402, 1.0
        %v2453 = vlog2.pop %v2452
        %v2454 = vmul.f32 %v2453, 0.6931472
        %v2455 = vmul.f32 -0.5, %v2402
        %v2456 = vadd.f32 %v2455, 1.0
        %v2457 = vmul.f32 %v2456, %v2402
        %v2458 = vand.u32 2147483647, %v2402
        %vm2459 = vcmp.lt.f32.partialorder %v2458, 0.0004427343
        %v2460 = vsel %vm2459, %v2457, %v2454
        %v2461 = vadd.f32 %v2404, 1.0
        %v2462 = vlog2.pop %v2461
        %v2463 = vmul.f32 %v2462, 0.6931472
        %v2464 = vmul.f32 -0.5, %v2404
        %v2465 = vadd.f32 %v2464, 1.0
        %v2466 = vmul.f32 %v2465, %v2404
        %v2467 = vand.u32 2147483647, %v2404
        %vm2468 = vcmp.lt.f32.partialorder %v2467, 0.0004427343
        %v2469 = vsel %vm2468, %v2466, %v2463
        %v2470 = vadd.f32 %v2406, 1.0
        %v2471 = vlog2.pop %v2470
        %v2472 = vmul.f32 %v2471, 0.6931472
        %v2473 = vmul.f32 -0.5, %v2406
        %v2474 = vadd.f32 %v2473, 1.0
        %v2475 = vmul.f32 %v2474, %v2406
        %v2476 = vand.u32 2147483647, %v2406
        %vm2477 = vcmp.lt.f32.partialorder %v2476, 0.0004427343
        %v2478 = vsel %vm2477, %v2475, %v2472
        %v2479 = vadd.f32 %v2351, %v2415
        %v2480 = vadd.f32 %v2352, %v2424
        %v2481 = vadd.f32 %v2353, %v2433
        %v2482 = vadd.f32 %v2354, %v2442
        %v2483 = vadd.f32 %v2355, %v2451
        %v2484 = vadd.f32 %v2356, %v2460
        %v2485 = vadd.f32 %v2357, %v2469
        %v2486 = vadd.f32 %v2358, %v2478
        %v2487 = vsel %vm2359, %v2367, %v2479
        %v2488 = vsel %vm2360, %v2368, %v2480
        %v2489 = vsel %vm2361, %v2369, %v2481
        %v2490 = vsel %vm2362, %v2370, %v2482
        %v2491 = vsel %vm2363, %v2371, %v2483
        %v2492 = vsel %vm2364, %v2372, %v2484
        %v2493 = vsel %vm2365, %v2373, %v2485
        %v2494 = vsel %vm2366, %v2374, %v2486
        %v2495 = vrot.slane %v2487, 4
        %v2496 = vadd.f32 %v2487, %v2495
        %v2497 = vrot.slane %v2496, 2
        %v2498 = vadd.f32 %v2496, %v2497
        %v2499 = vrot.slane %v2498, 1
        %v2500 = vadd.f32 %v2498, %v2499
        %v2501 = vrot.slane %v2488, 4
        %v2502 = vadd.f32 %v2488, %v2501
        %v2503 = vrot.slane %v2502, 2
        %v2504 = vadd.f32 %v2502, %v2503
        %v2505 = vrot.slane %v2504, 1
        %v2506 = vadd.f32 %v2504, %v2505
        %v2507 = vrot.slane %v2489, 4
        %v2508 = vadd.f32 %v2489, %v2507
        %v2509 = vrot.slane %v2508, 2
        %v2510 = vadd.f32 %v2508, %v2509
        %v2511 = vrot.slane %v2510, 1
        %v2512 = vadd.f32 %v2510, %v2511
        %v2513 = vrot.slane %v2490, 4
        %v2514 = vadd.f32 %v2490, %v2513
        %v2515 = vrot.slane %v2514, 2
        %v2516 = vadd.f32 %v2514, %v2515
        %v2517 = vrot.slane %v2516, 1
        %v2518 = vadd.f32 %v2516, %v2517
        %v2519 = vrot.slane %v2491, 4
        %v2520 = vadd.f32 %v2491, %v2519
        %v2521 = vrot.slane %v2520, 2
        %v2522 = vadd.f32 %v2520, %v2521
        %v2523 = vrot.slane %v2522, 1
        %v2524 = vadd.f32 %v2522, %v2523
        %v2525 = vrot.slane %v2492, 4
        %v2526 = vadd.f32 %v2492, %v2525
        %v2527 = vrot.slane %v2526, 2
        %v2528 = vadd.f32 %v2526, %v2527
        %v2529 = vrot.slane %v2528, 1
        %v2530 = vadd.f32 %v2528, %v2529
        %v2531 = vrot.slane %v2493, 4
        %v2532 = vadd.f32 %v2493, %v2531
        %v2533 = vrot.slane %v2532, 2
        %v2534 = vadd.f32 %v2532, %v2533
        %v2535 = vrot.slane %v2534, 1
        %v2536 = vadd.f32 %v2534, %v2535
        %v2537 = vrot.slane %v2494, 4
        %v2538 = vadd.f32 %v2494, %v2537
        %v2539 = vrot.slane %v2538, 2
        %v2540 = vadd.f32 %v2538, %v2539
        %v2541 = vrot.slane %v2540, 1
        %v2542 = vadd.f32 %v2540, %v2541
        %v2543 = vld [vmem:[%s9] sm:$0xff]
        %v2544 = vld [vmem:[%s9 + $0x8] sm:$0xff]
        %v2545 = vld [vmem:[%s9 + $0x10] sm:$0xff]
        %v2546 = vld [vmem:[%s9 + $0x18] sm:$0xff]
        %v2547 = vld [vmem:[%s9 + $0x20] sm:$0xff]
        %v2548 = vld [vmem:[%s9 + $0x28] sm:$0xff]
        %v2549 = vld [vmem:[%s9 + $0x30] sm:$0xff]
        %v2550 = vld [vmem:[%s9 + $0x38] sm:$0xff]
        %v2551 = vld [vmem:[%s10] sm:$0xff]
        %v2552 = vld [vmem:[%s10 + $0x8] sm:$0xff]
        %v2553 = vld [vmem:[%s10 + $0x10] sm:$0xff]
        %v2554 = vld [vmem:[%s10 + $0x18] sm:$0xff]
        %v2555 = vld [vmem:[%s10 + $0x20] sm:$0xff]
        %v2556 = vld [vmem:[%s10 + $0x28] sm:$0xff]
        %v2557 = vld [vmem:[%s10 + $0x30] sm:$0xff]
        %v2558 = vld [vmem:[%s10 + $0x38] sm:$0xff]
        %v2567 = vsel %vm1213, %v2506, %v2500
        %v2568 = vsel %vm1215, %v2512, %v2567
        %v2569 = vsel %vm1217, %v2518, %v2568
        %v2570 = vsel %vm1219, %v2524, %v2569
        %v2571 = vsel %vm1221, %v2530, %v2570
        %v2572 = vsel %vm1223, %v2536, %v2571
        %v2573 = vsel %vm1225, %v2542, %v2572
        %2575 = vmatprep.subr.mxu0 0.0
        %2576 = vmatpush1.msra.mxu0 %v468
        %2577 = vmatprep.subr.mxu0 0.0
        %2578 = vmatpush1.msra.mxu0 %v469
        %2579 = vmatprep.subr.mxu0 0.0
        %2580 = vmatpush1.msra.mxu0 %v470
        %2581 = vmatprep.subr.mxu0 0.0
        %2582 = vmatpush1.msra.mxu0 %v471
        %2583 = vmatprep.subr.mxu0 0.0
        %2584 = vmatpush1.msra.mxu0 %v472
        %2585 = vmatprep.subr.mxu0 0.0
        %2586 = vmatpush1.msra.mxu0 %v473
        %2587 = vmatprep.subr.mxu0 0.0
        %2588 = vmatpush1.msra.mxu0 %v474
        %2589 = vmatprep.subr.mxu0 0.0
        %2590 = vmatpush1.msra.mxu0 %v475
        %2591 = vmatprep.subr.mxu0 0.0
        %2592 = vmatpush1.msra.mxu0 %v476
        %2593 = vmatprep.subr.mxu0 0.0
        %2594 = vmatpush1.msra.mxu0 %v477
        %2595 = vmatprep.subr.mxu0 0.0
        %2596 = vmatpush1.msra.mxu0 %v478
        %2597 = vmatprep.subr.mxu0 0.0
        %2598 = vmatpush1.msra.mxu0 %v479
        %2599 = vmatprep.subr.mxu0 0.0
        %2600 = vmatpush1.msra.mxu0 %v480
        %2601 = vmatprep.subr.mxu0 0.0
        %2602 = vmatpush1.msra.mxu0 %v481
        %2603 = vmatprep.subr.mxu0 0.0
        %2604 = vmatpush1.msra.mxu0 %v482
        %2605 = vmatprep.subr.mxu0 0.0
        %2606 = vmatpush1.msra.mxu0 %v483
        %2607 = vmatprep.subr.mxu0 0.0
        %2608 = vmatpush1.msra.mxu0 0.0
        %2609 = vmatprep.subr.mxu0 0.0
        %2610 = vmatpush1.msra.mxu0 0.0
        %2611 = vmatprep.subr.mxu0 0.0
        %2612 = vmatpush1.msra.mxu0 0.0
        %2613 = vmatprep.subr.mxu0 0.0
        %2614 = vmatpush1.msra.mxu0 0.0
        %2615 = vmatprep.subr.mxu0 0.0
        %2616 = vmatpush1.msra.mxu0 0.0
        %2617 = vmatprep.subr.mxu0 0.0
        %2618 = vmatpush1.msra.mxu0 0.0
        %2619 = vmatprep.subr.mxu0 0.0
        %2620 = vmatpush1.msra.mxu0 0.0
        %2621 = vmatprep.subr.mxu0 0.0
        %2622 = vmatpush1.msra.mxu0 0.0
        %2623 = vmatprep.subr.mxu0 0.0
        %2624 = vmatpush1.msra.mxu0 0.0
        %2625 = vmatprep.subr.mxu0 0.0
        %2626 = vmatpush1.msra.mxu0 0.0
        %2627 = vmatprep.subr.mxu0 0.0
        %2628 = vmatpush1.msra.mxu0 0.0
        %2629 = vmatprep.subr.mxu0 0.0
        %2630 = vmatpush1.msra.mxu0 0.0
        %2631 = vmatprep.subr.mxu0 0.0
        %2632 = vmatpush1.msra.mxu0 0.0
        %2633 = vmatprep.subr.mxu0 0.0
        %2634 = vmatpush1.msra.mxu0 0.0
        %2635 = vmatprep.subr.mxu0 0.0
        %2636 = vmatpush1.msra.mxu0 0.0
        %2637 = vmatprep.subr.mxu0 0.0
        %2638 = vmatpush1.msra.mxu0 0.0
        %2639 = vmatprep.mubr.f32.mxu0 0.0
        %2640 = vmatmul.mubr.f32.gmra.mrb[0].mxu0 %v2573
        %v2641 = vpop.f32.mrb[0].mxu0
        %v2642 = vadd.f32 0.0, %v2641
        %v2643 = vpop.f32.mrb[0].mxu0
        %2644 = vdwg.mxu0
        %2645 = vmatprep.subr.mxu0 0.0
        %2646 = vmatpush1.msra.mxu0 %v555
        %2647 = vmatprep.subr.mxu0 0.0
        %2648 = vmatpush1.msra.mxu0 %v556
        %2649 = vmatprep.subr.mxu0 0.0
        %2650 = vmatpush1.msra.mxu0 %v557
        %2651 = vmatprep.subr.mxu0 0.0
        %2652 = vmatpush1.msra.mxu0 %v558
        %2653 = vmatprep.subr.mxu0 0.0
        %2654 = vmatpush1.msra.mxu0 %v559
        %2655 = vmatprep.subr.mxu0 0.0
        %2656 = vmatpush1.msra.mxu0 %v560
        %2657 = vmatprep.subr.mxu0 0.0
        %2658 = vmatpush1.msra.mxu0 %v561
        %2659 = vmatprep.subr.mxu0 0.0
        %2660 = vmatpush1.msra.mxu0 %v562
        %2661 = vmatprep.subr.mxu0 0.0
        %2662 = vmatpush1.msra.mxu0 %v563
        %2663 = vmatprep.subr.mxu0 0.0
        %2664 = vmatpush1.msra.mxu0 %v564
        %2665 = vmatprep.subr.mxu0 0.0
        %2666 = vmatpush1.msra.mxu0 %v565
        %2667 = vmatprep.subr.mxu0 0.0
        %2668 = vmatpush1.msra.mxu0 %v566
        %2669 = vmatprep.subr.mxu0 0.0
        %2670 = vmatpush1.msra.mxu0 %v567
        %2671 = vmatprep.subr.mxu0 0.0
        %2672 = vmatpush1.msra.mxu0 %v568
        %2673 = vmatprep.subr.mxu0 0.0
        %2674 = vmatpush1.msra.mxu0 %v569
        %2675 = vmatprep.subr.mxu0 0.0
        %2676 = vmatpush1.msra.mxu0 %v570
        %2677 = vmatprep.subr.mxu0 0.0
        %2678 = vmatpush1.msra.mxu0 0.0
        %2679 = vmatprep.subr.mxu0 0.0
        %2680 = vmatpush1.msra.mxu0 0.0
        %2681 = vmatprep.subr.mxu0 0.0
        %2682 = vmatpush1.msra.mxu0 0.0
        %2683 = vmatprep.subr.mxu0 0.0
        %2684 = vmatpush1.msra.mxu0 0.0
        %2685 = vmatprep.subr.mxu0 0.0
        %2686 = vmatpush1.msra.mxu0 0.0
        %2687 = vmatprep.subr.mxu0 0.0
        %2688 = vmatpush1.msra.mxu0 0.0
        %2689 = vmatprep.subr.mxu0 0.0
        %2690 = vmatpush1.msra.mxu0 0.0
        %2691 = vmatprep.subr.mxu0 0.0
        %2692 = vmatpush1.msra.mxu0 0.0
        %2693 = vmatprep.subr.mxu0 0.0
        %2694 = vmatpush1.msra.mxu0 0.0
        %2695 = vmatprep.subr.mxu0 0.0
        %2696 = vmatpush1.msra.mxu0 0.0
        %2697 = vmatprep.subr.mxu0 0.0
        %2698 = vmatpush1.msra.mxu0 0.0
        %2699 = vmatprep.subr.mxu0 0.0
        %2700 = vmatpush1.msra.mxu0 0.0
        %2701 = vmatprep.subr.mxu0 0.0
        %2702 = vmatpush1.msra.mxu0 0.0
        %2703 = vmatprep.subr.mxu0 0.0
        %2704 = vmatpush1.msra.mxu0 0.0
        %2705 = vmatprep.subr.mxu0 0.0
        %2706 = vmatpush1.msra.mxu0 0.0
        %2707 = vmatprep.subr.mxu0 0.0
        %2708 = vmatpush1.msra.mxu0 0.0
        %2709 = vmatprep.mubr.f32.mxu0 0.0
        %2710 = vmatmul.mubr.f32.gmra.mrb[0].mxu0 %v2573
        %v2711 = vpop.f32.mrb[0].mxu0
        %v2712 = vadd.f32 0.0, %v2711
        %v2713 = vpop.f32.mrb[0].mxu0
        %2714 = vdwg.mxu0
        %2715 = vmatprep.subr.mxu0 0.0
        %2716 = vmatpush1.msra.mxu0 %v642
        %2717 = vmatprep.subr.mxu0 0.0
        %2718 = vmatpush1.msra.mxu0 %v643
        %2719 = vmatprep.subr.mxu0 0.0
        %2720 = vmatpush1.msra.mxu0 %v644
        %2721 = vmatprep.subr.mxu0 0.0
        %2722 = vmatpush1.msra.mxu0 %v645
        %2723 = vmatprep.subr.mxu0 0.0
        %2724 = vmatpush1.msra.mxu0 %v646
        %2725 = vmatprep.subr.mxu0 0.0
        %2726 = vmatpush1.msra.mxu0 %v647
        %2727 = vmatprep.subr.mxu0 0.0
        %2728 = vmatpush1.msra.mxu0 %v648
        %2729 = vmatprep.subr.mxu0 0.0
        %2730 = vmatpush1.msra.mxu0 %v649
        %2731 = vmatprep.subr.mxu0 0.0
        %2732 = vmatpush1.msra.mxu0 %v650
        %2733 = vmatprep.subr.mxu0 0.0
        %2734 = vmatpush1.msra.mxu0 %v651
        %2735 = vmatprep.subr.mxu0 0.0
        %2736 = vmatpush1.msra.mxu0 %v652
        %2737 = vmatprep.subr.mxu0 0.0
        %2738 = vmatpush1.msra.mxu0 %v653
        %2739 = vmatprep.subr.mxu0 0.0
        %2740 = vmatpush1.msra.mxu0 %v654
        %2741 = vmatprep.subr.mxu0 0.0
        %2742 = vmatpush1.msra.mxu0 %v655
        %2743 = vmatprep.subr.mxu0 0.0
        %2744 = vmatpush1.msra.mxu0 %v656
        %2745 = vmatprep.subr.mxu0 0.0
        %2746 = vmatpush1.msra.mxu0 %v657
        %2747 = vmatprep.subr.mxu0 0.0
        %2748 = vmatpush1.msra.mxu0 0.0
        %2749 = vmatprep.subr.mxu0 0.0
        %2750 = vmatpush1.msra.mxu0 0.0
        %2751 = vmatprep.subr.mxu0 0.0
        %2752 = vmatpush1.msra.mxu0 0.0
        %2753 = vmatprep.subr.mxu0 0.0
        %2754 = vmatpush1.msra.mxu0 0.0
        %2755 = vmatprep.subr.mxu0 0.0
        %2756 = vmatpush1.msra.mxu0 0.0
        %2757 = vmatprep.subr.mxu0 0.0
        %2758 = vmatpush1.msra.mxu0 0.0
        %2759 = vmatprep.subr.mxu0 0.0
        %2760 = vmatpush1.msra.mxu0 0.0
        %2761 = vmatprep.subr.mxu0 0.0
        %2762 = vmatpush1.msra.mxu0 0.0
        %2763 = vmatprep.subr.mxu0 0.0
        %2764 = vmatpush1.msra.mxu0 0.0
        %2765 = vmatprep.subr.mxu0 0.0
        %2766 = vmatpush1.msra.mxu0 0.0
        %2767 = vmatprep.subr.mxu0 0.0
        %2768 = vmatpush1.msra.mxu0 0.0
        %2769 = vmatprep.subr.mxu0 0.0
        %2770 = vmatpush1.msra.mxu0 0.0
        %2771 = vmatprep.subr.mxu0 0.0
        %2772 = vmatpush1.msra.mxu0 0.0
        %2773 = vmatprep.subr.mxu0 0.0
        %2774 = vmatpush1.msra.mxu0 0.0
        %2775 = vmatprep.subr.mxu0 0.0
        %2776 = vmatpush1.msra.mxu0 0.0
        %2777 = vmatprep.subr.mxu0 0.0
        %2778 = vmatpush1.msra.mxu0 0.0
        %2779 = vmatprep.mubr.f32.mxu0 0.0
        %2780 = vmatmul.mubr.f32.gmra.mrb[0].mxu0 %v2573
        %v2781 = vpop.f32.mrb[0].mxu0
        %v2782 = vadd.f32 0.0, %v2781
        %v2783 = vpop.f32.mrb[0].mxu0
        %2784 = vdwg.mxu0
        %2785 = vmatprep.subr.mxu0 0.0
        %2786 = vmatpush1.msra.mxu0 %v729
        %2787 = vmatprep.subr.mxu0 0.0
        %2788 = vmatpush1.msra.mxu0 %v730
        %2789 = vmatprep.subr.mxu0 0.0
        %2790 = vmatpush1.msra.mxu0 %v731
        %2791 = vmatprep.subr.mxu0 0.0
        %2792 = vmatpush1.msra.mxu0 %v732
        %2793 = vmatprep.subr.mxu0 0.0
        %2794 = vmatpush1.msra.mxu0 %v733
        %2795 = vmatprep.subr.mxu0 0.0
        %2796 = vmatpush1.msra.mxu0 %v734
        %2797 = vmatprep.subr.mxu0 0.0
        %2798 = vmatpush1.msra.mxu0 %v735
        %2799 = vmatprep.subr.mxu0 0.0
        %2800 = vmatpush1.msra.mxu0 %v736
        %2801 = vmatprep.subr.mxu0 0.0
        %2802 = vmatpush1.msra.mxu0 %v737
        %2803 = vmatprep.subr.mxu0 0.0
        %2804 = vmatpush1.msra.mxu0 %v738
        %2805 = vmatprep.subr.mxu0 0.0
        %2806 = vmatpush1.msra.mxu0 %v739
        %2807 = vmatprep.subr.mxu0 0.0
        %2808 = vmatpush1.msra.mxu0 %v740
        %2809 = vmatprep.subr.mxu0 0.0
        %2810 = vmatpush1.msra.mxu0 %v741
        %2811 = vmatprep.subr.mxu0 0.0
        %2812 = vmatpush1.msra.mxu0 %v742
        %2813 = vmatprep.subr.mxu0 0.0
        %2814 = vmatpush1.msra.mxu0 %v743
        %2815 = vmatprep.subr.mxu0 0.0
        %2816 = vmatpush1.msra.mxu0 %v744
        %2817 = vmatprep.subr.mxu0 0.0
        %2818 = vmatpush1.msra.mxu0 0.0
        %2819 = vmatprep.subr.mxu0 0.0
        %2820 = vmatpush1.msra.mxu0 0.0
        %2821 = vmatprep.subr.mxu0 0.0
        %2822 = vmatpush1.msra.mxu0 0.0
        %2823 = vmatprep.subr.mxu0 0.0
        %2824 = vmatpush1.msra.mxu0 0.0
        %2825 = vmatprep.subr.mxu0 0.0
        %2826 = vmatpush1.msra.mxu0 0.0
        %2827 = vmatprep.subr.mxu0 0.0
        %2828 = vmatpush1.msra.mxu0 0.0
        %2829 = vmatprep.subr.mxu0 0.0
        %2830 = vmatpush1.msra.mxu0 0.0
        %2831 = vmatprep.subr.mxu0 0.0
        %2832 = vmatpush1.msra.mxu0 0.0
        %2833 = vmatprep.subr.mxu0 0.0
        %2834 = vmatpush1.msra.mxu0 0.0
        %2835 = vmatprep.subr.mxu0 0.0
        %2836 = vmatpush1.msra.mxu0 0.0
        %2837 = vmatprep.subr.mxu0 0.0
        %2838 = vmatpush1.msra.mxu0 0.0
        %2839 = vmatprep.subr.mxu0 0.0
        %2840 = vmatpush1.msra.mxu0 0.0
        %2841 = vmatprep.subr.mxu0 0.0
        %2842 = vmatpush1.msra.mxu0 0.0
        %2843 = vmatprep.subr.mxu0 0.0
        %2844 = vmatpush1.msra.mxu0 0.0
        %2845 = vmatprep.subr.mxu0 0.0
        %2846 = vmatpush1.msra.mxu0 0.0
        %2847 = vmatprep.subr.mxu0 0.0
        %2848 = vmatpush1.msra.mxu0 0.0
        %2849 = vmatprep.mubr.f32.mxu0 0.0
        %2850 = vmatmul.mubr.f32.gmra.mrb[0].mxu0 %v2573
        %v2851 = vpop.f32.mrb[0].mxu0
        %v2852 = vadd.f32 0.0, %v2851
        %v2853 = vpop.f32.mrb[0].mxu0
        %2854 = vdwg.mxu0
        %2856 = vset.pattern.permute.xlu0 0
        %2857 = vperm.xlu0 %2856, %v2551
        %v2858 = vpop.permute.xlu0 %2857
        %2861 = vset.pattern.permute.xlu0 0
        %2862 = vperm.xlu0 %2861, %v2552
        %v2863 = vpop.permute.xlu0 %2862
        %2866 = vset.pattern.permute.xlu0 0
        %2867 = vperm.xlu0 %2866, %v2553
        %v2868 = vpop.permute.xlu0 %2867
        %2871 = vset.pattern.permute.xlu0 0
        %2872 = vperm.xlu0 %2871, %v2554
        %v2873 = vpop.permute.xlu0 %2872
        %2876 = vset.pattern.permute.xlu0 0
        %2877 = vperm.xlu0 %2876, %v2555
        %v2878 = vpop.permute.xlu0 %2877
        %2881 = vset.pattern.permute.xlu0 0
        %2882 = vperm.xlu0 %2881, %v2556
        %v2883 = vpop.permute.xlu0 %2882
        %2886 = vset.pattern.permute.xlu0 0
        %2887 = vperm.xlu0 %2886, %v2557
        %v2888 = vpop.permute.xlu0 %2887
        %2891 = vset.pattern.permute.xlu0 0
        %2892 = vperm.xlu0 %2891, %v2558
        %v2893 = vpop.permute.xlu0 %2892
        %v2896 = vsel %vm1548, %v2543, 0
        %v2899 = vsel %vm1548, %v2544, 0
        %v2902 = vsel %vm1548, %v2545, 0
        %v2905 = vsel %vm1548, %v2546, 0
        %v2908 = vsel %vm1548, %v2547, 0
        %v2911 = vsel %vm1548, %v2548, 0
        %v2914 = vsel %vm1548, %v2549, 0
        %v2917 = vsel %vm1548, %v2550, 0
        %2919 = vmatprep.subr.mxu0 0.0
        %2920 = vmatpush1.msra.mxu0 %v2573
        %2921 = vmatprep.subr.mxu0 0.0
        %2922 = vmatpush1.msra.mxu0 %v2642
        %2923 = vmatprep.subr.mxu0 0.0
        %2924 = vmatpush1.msra.mxu0 %v2712
        %2925 = vmatprep.subr.mxu0 0.0
        %2926 = vmatpush1.msra.mxu0 %v2782
        %2927 = vmatprep.subr.mxu0 0.0
        %2928 = vmatpush1.msra.mxu0 %v2852
        %2929 = vmatprep.subr.mxu0 0.0
        %2930 = vmatpush1.msra.mxu0 0.0
        %2931 = vmatprep.subr.mxu0 0.0
        %2932 = vmatpush1.msra.mxu0 0.0
        %2933 = vmatprep.subr.mxu0 0.0
        %2934 = vmatpush1.msra.mxu0 0.0
        %2935 = vmatprep.subr.mxu0 0.0
        %2936 = vmatpush1.msra.mxu0 0.0
        %2937 = vmatprep.subr.mxu0 0.0
        %2938 = vmatpush1.msra.mxu0 0.0
        %2939 = vmatprep.subr.mxu0 0.0
        %2940 = vmatpush1.msra.mxu0 0.0
        %2941 = vmatprep.subr.mxu0 0.0
        %2942 = vmatpush1.msra.mxu0 0.0
        %2943 = vmatprep.subr.mxu0 0.0
        %2944 = vmatpush1.msra.mxu0 0.0
        %2945 = vmatprep.subr.mxu0 0.0
        %2946 = vmatpush1.msra.mxu0 0.0
        %2947 = vmatprep.subr.mxu0 0.0
        %2948 = vmatpush1.msra.mxu0 0.0
        %2949 = vmatprep.subr.mxu0 0.0
        %2950 = vmatpush1.msra.mxu0 0.0
        %2951 = vmatprep.subr.mxu0 0.0
        %2952 = vmatpush1.msra.mxu0 0.0
        %2953 = vmatprep.subr.mxu0 0.0
        %2954 = vmatpush1.msra.mxu0 0.0
        %2955 = vmatprep.subr.mxu0 0.0
        %2956 = vmatpush1.msra.mxu0 0.0
        %2957 = vmatprep.subr.mxu0 0.0
        %2958 = vmatpush1.msra.mxu0 0.0
        %2959 = vmatprep.subr.mxu0 0.0
        %2960 = vmatpush1.msra.mxu0 0.0
        %2961 = vmatprep.subr.mxu0 0.0
        %2962 = vmatpush1.msra.mxu0 0.0
        %2963 = vmatprep.subr.mxu0 0.0
        %2964 = vmatpush1.msra.mxu0 0.0
        %2965 = vmatprep.subr.mxu0 0.0
        %2966 = vmatpush1.msra.mxu0 0.0
        %2967 = vmatprep.subr.mxu0 0.0
        %2968 = vmatpush1.msra.mxu0 0.0
        %2969 = vmatprep.subr.mxu0 0.0
        %2970 = vmatpush1.msra.mxu0 0.0
        %2971 = vmatprep.subr.mxu0 0.0
        %2972 = vmatpush1.msra.mxu0 0.0
        %2973 = vmatprep.subr.mxu0 0.0
        %2974 = vmatpush1.msra.mxu0 0.0
        %2975 = vmatprep.subr.mxu0 0.0
        %2976 = vmatpush1.msra.mxu0 0.0
        %2977 = vmatprep.subr.mxu0 0.0
        %2978 = vmatpush1.msra.mxu0 0.0
        %2979 = vmatprep.subr.mxu0 0.0
        %2980 = vmatpush1.msra.mxu0 0.0
        %2981 = vmatprep.subr.mxu0 0.0
        %2982 = vmatpush1.msra.mxu0 0.0
        %2983 = vmatprep.mubr.f32.mxu0 0.0
        %2984 = vmatmul.mubr.f32.gmra.mrb[0].mxu0 %v2896
        %v2985 = vpop.f32.mrb[0].mxu0
        %v2986 = vadd.f32 %v2858, %v2985
        %v2987 = vpop.f32.mrb[0].mxu0
        %2988 = vmatprep.mubr.f32.mxu0 0.0
        %2989 = vmatmul.mubr.f32.gmra.mrb[0].mxu0 %v2899
        %v2990 = vpop.f32.mrb[0].mxu0
        %v2991 = vadd.f32 %v2863, %v2990
        %v2992 = vpop.f32.mrb[0].mxu0
        %2993 = vmatprep.mubr.f32.mxu0 0.0
        %2994 = vmatmul.mubr.f32.gmra.mrb[0].mxu0 %v2902
        %v2995 = vpop.f32.mrb[0].mxu0
        %v2996 = vadd.f32 %v2868, %v2995
        %v2997 = vpop.f32.mrb[0].mxu0
        %2998 = vmatprep.mubr.f32.mxu0 0.0
        %2999 = vmatmul.mubr.f32.gmra.mrb[0].mxu0 %v2905
        %v3000 = vpop.f32.mrb[0].mxu0
        %v3001 = vadd.f32 %v2873, %v3000
        %v3002 = vpop.f32.mrb[0].mxu0
        %3003 = vmatprep.mubr.f32.mxu0 0.0
        %3004 = vmatmul.mubr.f32.gmra.mrb[0].mxu0 %v2908
        %v3005 = vpop.f32.mrb[0].mxu0
        %v3006 = vadd.f32 %v2878, %v3005
        %v3007 = vpop.f32.mrb[0].mxu0
        %3008 = vmatprep.mubr.f32.mxu0 0.0
        %3009 = vmatmul.mubr.f32.gmra.mrb[0].mxu0 %v2911
        %v3010 = vpop.f32.mrb[0].mxu0
        %v3011 = vadd.f32 %v2883, %v3010
        %v3012 = vpop.f32.mrb[0].mxu0
        %3013 = vmatprep.mubr.f32.mxu0 0.0
        %3014 = vmatmul.mubr.f32.gmra.mrb[0].mxu0 %v2914
        %v3015 = vpop.f32.mrb[0].mxu0
        %v3016 = vadd.f32 %v2888, %v3015
        %v3017 = vpop.f32.mrb[0].mxu0
        %3018 = vmatprep.mubr.f32.mxu0 0.0
        %3019 = vmatmul.mubr.f32.gmra.mrb[0].mxu0 %v2917
        %v3020 = vpop.f32.mrb[0].mxu0
        %v3021 = vadd.f32 %v2893, %v3020
        %v3022 = vpop.f32.mrb[0].mxu0
        %3023 = vdwg.mxu0
        %v3024 = vmax.f32 %v2986, 0.0
        %v3025 = vmax.f32 %v2991, 0.0
        %v3026 = vmax.f32 %v2996, 0.0
        %v3027 = vmax.f32 %v3001, 0.0
        %v3028 = vmax.f32 %v3006, 0.0
        %v3029 = vmax.f32 %v3011, 0.0
        %v3030 = vmax.f32 %v3016, 0.0
        %v3031 = vmax.f32 %v3021, 0.0
        %vm3032 = vcmp.ne.f32.partialorder %v2986, %v2986
        %vm3033 = vcmp.ne.f32.partialorder %v2991, %v2991
        %vm3034 = vcmp.ne.f32.partialorder %v2996, %v2996
        %vm3035 = vcmp.ne.f32.partialorder %v3001, %v3001
        %vm3036 = vcmp.ne.f32.partialorder %v3006, %v3006
        %vm3037 = vcmp.ne.f32.partialorder %v3011, %v3011
        %vm3038 = vcmp.ne.f32.partialorder %v3016, %v3016
        %vm3039 = vcmp.ne.f32.partialorder %v3021, %v3021
        %v3040 = vadd.f32 %v2986, 0.0
        %v3041 = vadd.f32 %v2991, 0.0
        %v3042 = vadd.f32 %v2996, 0.0
        %v3043 = vadd.f32 %v3001, 0.0
        %v3044 = vadd.f32 %v3006, 0.0
        %v3045 = vadd.f32 %v3011, 0.0
        %v3046 = vadd.f32 %v3016, 0.0
        %v3047 = vadd.f32 %v3021, 0.0
        %v3048 = vand.u32 2147483647, %v2986
        %v3049 = vand.u32 2147483647, %v2991
        %v3050 = vand.u32 2147483647, %v2996
        %v3051 = vand.u32 2147483647, %v3001
        %v3052 = vand.u32 2147483647, %v3006
        %v3053 = vand.u32 2147483647, %v3011
        %v3054 = vand.u32 2147483647, %v3016
        %v3055 = vand.u32 2147483647, %v3021
        %v3056 = vsub.f32 0.0, %v3048
        %v3057 = vsub.f32 0.0, %v3049
        %v3058 = vsub.f32 0.0, %v3050
        %v3059 = vsub.f32 0.0, %v3051
        %v3060 = vsub.f32 0.0, %v3052
        %v3061 = vsub.f32 0.0, %v3053
        %v3062 = vsub.f32 0.0, %v3054
        %v3063 = vsub.f32 0.0, %v3055
        %v3064 = vmul.f32 %v3056, 1.442695
        %v3065 = vpow.pop %v3064
        %v3066 = vmul.f32 %v3057, 1.442695
        %v3067 = vpow.pop %v3066
        %v3068 = vmul.f32 %v3058, 1.442695
        %v3069 = vpow.pop %v3068
        %v3070 = vmul.f32 %v3059, 1.442695
        %v3071 = vpow.pop %v3070
        %v3072 = vmul.f32 %v3060, 1.442695
        %v3073 = vpow.pop %v3072
        %v3074 = vmul.f32 %v3061, 1.442695
        %v3075 = vpow.pop %v3074
        %v3076 = vmul.f32 %v3062, 1.442695
        %v3077 = vpow.pop %v3076
        %v3078 = vmul.f32 %v3063, 1.442695
        %v3079 = vpow.pop %v3078
        %v3080 = vadd.f32 %v3065, 1.0
        %v3081 = vlog2.pop %v3080
        %v3082 = vmul.f32 %v3081, 0.6931472
        %v3083 = vmul.f32 -0.5, %v3065
        %v3084 = vadd.f32 %v3083, 1.0
        %v3085 = vmul.f32 %v3084, %v3065
        %v3086 = vand.u32 2147483647, %v3065
        %vm3087 = vcmp.lt.f32.partialorder %v3086, 0.0004427343
        %v3088 = vsel %vm3087, %v3085, %v3082
        %v3089 = vadd.f32 %v3067, 1.0
        %v3090 = vlog2.pop %v3089
        %v3091 = vmul.f32 %v3090, 0.6931472
        %v3092 = vmul.f32 -0.5, %v3067
        %v3093 = vadd.f32 %v3092, 1.0
        %v3094 = vmul.f32 %v3093, %v3067
        %v3095 = vand.u32 2147483647, %v3067
        %vm3096 = vcmp.lt.f32.partialorder %v3095, 0.0004427343
        %v3097 = vsel %vm3096, %v3094, %v3091
        %v3098 = vadd.f32 %v3069, 1.0
        %v3099 = vlog2.pop %v3098
        %v3100 = vmul.f32 %v3099, 0.6931472
        %v3101 = vmul.f32 -0.5, %v3069
        %v3102 = vadd.f32 %v3101, 1.0
        %v3103 = vmul.f32 %v3102, %v3069
        %v3104 = vand.u32 2147483647, %v3069
        %vm3105 = vcmp.lt.f32.partialorder %v3104, 0.0004427343
        %v3106 = vsel %vm3105, %v3103, %v3100
        %v3107 = vadd.f32 %v3071, 1.0
        %v3108 = vlog2.pop %v3107
        %v3109 = vmul.f32 %v3108, 0.6931472
        %v3110 = vmul.f32 -0.5, %v3071
        %v3111 = vadd.f32 %v3110, 1.0
        %v3112 = vmul.f32 %v3111, %v3071
        %v3113 = vand.u32 2147483647, %v3071
        %vm3114 = vcmp.lt.f32.partialorder %v3113, 0.0004427343
        %v3115 = vsel %vm3114, %v3112, %v3109
        %v3116 = vadd.f32 %v3073, 1.0
        %v3117 = vlog2.pop %v3116
        %v3118 = vmul.f32 %v3117, 0.6931472
        %v3119 = vmul.f32 -0.5, %v3073
        %v3120 = vadd.f32 %v3119, 1.0
        %v3121 = vmul.f32 %v3120, %v3073
        %v3122 = vand.u32 2147483647, %v3073
        %vm3123 = vcmp.lt.f32.partialorder %v3122, 0.0004427343
        %v3124 = vsel %vm3123, %v3121, %v3118
        %v3125 = vadd.f32 %v3075, 1.0
        %v3126 = vlog2.pop %v3125
        %v3127 = vmul.f32 %v3126, 0.6931472
        %v3128 = vmul.f32 -0.5, %v3075
        %v3129 = vadd.f32 %v3128, 1.0
        %v3130 = vmul.f32 %v3129, %v3075
        %v3131 = vand.u32 2147483647, %v3075
        %vm3132 = vcmp.lt.f32.partialorder %v3131, 0.0004427343
        %v3133 = vsel %vm3132, %v3130, %v3127
        %v3134 = vadd.f32 %v3077, 1.0
        %v3135 = vlog2.pop %v3134
        %v3136 = vmul.f32 %v3135, 0.6931472
        %v3137 = vmul.f32 -0.5, %v3077
        %v3138 = vadd.f32 %v3137, 1.0
        %v3139 = vmul.f32 %v3138, %v3077
        %v3140 = vand.u32 2147483647, %v3077
        %vm3141 = vcmp.lt.f32.partialorder %v3140, 0.0004427343
        %v3142 = vsel %vm3141, %v3139, %v3136
        %v3143 = vadd.f32 %v3079, 1.0
        %v3144 = vlog2.pop %v3143
        %v3145 = vmul.f32 %v3144, 0.6931472
        %v3146 = vmul.f32 -0.5, %v3079
        %v3147 = vadd.f32 %v3146, 1.0
        %v3148 = vmul.f32 %v3147, %v3079
        %v3149 = vand.u32 2147483647, %v3079
        %vm3150 = vcmp.lt.f32.partialorder %v3149, 0.0004427343
        %v3151 = vsel %vm3150, %v3148, %v3145
        %v3152 = vadd.f32 %v3024, %v3088
        %v3153 = vadd.f32 %v3025, %v3097
        %v3154 = vadd.f32 %v3026, %v3106
        %v3155 = vadd.f32 %v3027, %v3115
        %v3156 = vadd.f32 %v3028, %v3124
        %v3157 = vadd.f32 %v3029, %v3133
        %v3158 = vadd.f32 %v3030, %v3142
        %v3159 = vadd.f32 %v3031, %v3151
        %v3160 = vsel %vm3032, %v3040, %v3152
        %v3161 = vsel %vm3033, %v3041, %v3153
        %v3162 = vsel %vm3034, %v3042, %v3154
        %v3163 = vsel %vm3035, %v3043, %v3155
        %v3164 = vsel %vm3036, %v3044, %v3156
        %v3165 = vsel %vm3037, %v3045, %v3157
        %v3166 = vsel %vm3038, %v3046, %v3158
        %v3167 = vsel %vm3039, %v3047, %v3159
        %v3168 = vrot.slane %v3160, 4
        %v3169 = vadd.f32 %v3160, %v3168
        %v3170 = vrot.slane %v3169, 2
        %v3171 = vadd.f32 %v3169, %v3170
        %v3172 = vrot.slane %v3171, 1
        %v3173 = vadd.f32 %v3171, %v3172
        %v3174 = vrot.slane %v3161, 4
        %v3175 = vadd.f32 %v3161, %v3174
        %v3176 = vrot.slane %v3175, 2
        %v3177 = vadd.f32 %v3175, %v3176
        %v3178 = vrot.slane %v3177, 1
        %v3179 = vadd.f32 %v3177, %v3178
        %v3180 = vrot.slane %v3162, 4
        %v3181 = vadd.f32 %v3162, %v3180
        %v3182 = vrot.slane %v3181, 2
        %v3183 = vadd.f32 %v3181, %v3182
        %v3184 = vrot.slane %v3183, 1
        %v3185 = vadd.f32 %v3183, %v3184
        %v3186 = vrot.slane %v3163, 4
        %v3187 = vadd.f32 %v3163, %v3186
        %v3188 = vrot.slane %v3187, 2
        %v3189 = vadd.f32 %v3187, %v3188
        %v3190 = vrot.slane %v3189, 1
        %v3191 = vadd.f32 %v3189, %v3190
        %v3192 = vrot.slane %v3164, 4
        %v3193 = vadd.f32 %v3164, %v3192
        %v3194 = vrot.slane %v3193, 2
        %v3195 = vadd.f32 %v3193, %v3194
        %v3196 = vrot.slane %v3195, 1
        %v3197 = vadd.f32 %v3195, %v3196
        %v3198 = vrot.slane %v3165, 4
        %v3199 = vadd.f32 %v3165, %v3198
        %v3200 = vrot.slane %v3199, 2
        %v3201 = vadd.f32 %v3199, %v3200
        %v3202 = vrot.slane %v3201, 1
        %v3203 = vadd.f32 %v3201, %v3202
        %v3204 = vrot.slane %v3166, 4
        %v3205 = vadd.f32 %v3166, %v3204
        %v3206 = vrot.slane %v3205, 2
        %v3207 = vadd.f32 %v3205, %v3206
        %v3208 = vrot.slane %v3207, 1
        %v3209 = vadd.f32 %v3207, %v3208
        %v3210 = vrot.slane %v3167, 4
        %v3211 = vadd.f32 %v3167, %v3210
        %v3212 = vrot.slane %v3211, 2
        %v3213 = vadd.f32 %v3211, %v3212
        %v3214 = vrot.slane %v3213, 1
        %v3215 = vadd.f32 %v3213, %v3214
        %v3216 = vld [vmem:[%s11] sm:$0xff]
        %v3217 = vld [vmem:[%s12] sm:$0xff]
        %v3226 = vsel %vm1213, %v3179, %v3173
        %v3227 = vsel %vm1215, %v3185, %v3226
        %v3228 = vsel %vm1217, %v3191, %v3227
        %v3229 = vsel %vm1219, %v3197, %v3228
        %v3230 = vsel %vm1221, %v3203, %v3229
        %v3231 = vsel %vm1223, %v3209, %v3230
        %v3232 = vsel %vm1225, %v3215, %v3231
        %3234 = vmatprep.subr.mxu0 0.0
        %3235 = vmatpush1.msra.mxu0 %v468
        %3236 = vmatprep.subr.mxu0 0.0
        %3237 = vmatpush1.msra.mxu0 %v469
        %3238 = vmatprep.subr.mxu0 0.0
        %3239 = vmatpush1.msra.mxu0 %v470
        %3240 = vmatprep.subr.mxu0 0.0
        %3241 = vmatpush1.msra.mxu0 %v471
        %3242 = vmatprep.subr.mxu0 0.0
        %3243 = vmatpush1.msra.mxu0 %v472
        %3244 = vmatprep.subr.mxu0 0.0
        %3245 = vmatpush1.msra.mxu0 %v473
        %3246 = vmatprep.subr.mxu0 0.0
        %3247 = vmatpush1.msra.mxu0 %v474
        %3248 = vmatprep.subr.mxu0 0.0
        %3249 = vmatpush1.msra.mxu0 %v475
        %3250 = vmatprep.subr.mxu0 0.0
        %3251 = vmatpush1.msra.mxu0 %v476
        %3252 = vmatprep.subr.mxu0 0.0
        %3253 = vmatpush1.msra.mxu0 %v477
        %3254 = vmatprep.subr.mxu0 0.0
        %3255 = vmatpush1.msra.mxu0 %v478
        %3256 = vmatprep.subr.mxu0 0.0
        %3257 = vmatpush1.msra.mxu0 %v479
        %3258 = vmatprep.subr.mxu0 0.0
        %3259 = vmatpush1.msra.mxu0 %v480
        %3260 = vmatprep.subr.mxu0 0.0
        %3261 = vmatpush1.msra.mxu0 %v481
        %3262 = vmatprep.subr.mxu0 0.0
        %3263 = vmatpush1.msra.mxu0 %v482
        %3264 = vmatprep.subr.mxu0 0.0
        %3265 = vmatpush1.msra.mxu0 %v483
        %3266 = vmatprep.subr.mxu0 0.0
        %3267 = vmatpush1.msra.mxu0 0.0
        %3268 = vmatprep.subr.mxu0 0.0
        %3269 = vmatpush1.msra.mxu0 0.0
        %3270 = vmatprep.subr.mxu0 0.0
        %3271 = vmatpush1.msra.mxu0 0.0
        %3272 = vmatprep.subr.mxu0 0.0
        %3273 = vmatpush1.msra.mxu0 0.0
        %3274 = vmatprep.subr.mxu0 0.0
        %3275 = vmatpush1.msra.mxu0 0.0
        %3276 = vmatprep.subr.mxu0 0.0
        %3277 = vmatpush1.msra.mxu0 0.0
        %3278 = vmatprep.subr.mxu0 0.0
        %3279 = vmatpush1.msra.mxu0 0.0
        %3280 = vmatprep.subr.mxu0 0.0
        %3281 = vmatpush1.msra.mxu0 0.0
        %3282 = vmatprep.subr.mxu0 0.0
        %3283 = vmatpush1.msra.mxu0 0.0
        %3284 = vmatprep.subr.mxu0 0.0
        %3285 = vmatpush1.msra.mxu0 0.0
        %3286 = vmatprep.subr.mxu0 0.0
        %3287 = vmatpush1.msra.mxu0 0.0
        %3288 = vmatprep.subr.mxu0 0.0
        %3289 = vmatpush1.msra.mxu0 0.0
        %3290 = vmatprep.subr.mxu0 0.0
        %3291 = vmatpush1.msra.mxu0 0.0
        %3292 = vmatprep.subr.mxu0 0.0
        %3293 = vmatpush1.msra.mxu0 0.0
        %3294 = vmatprep.subr.mxu0 0.0
        %3295 = vmatpush1.msra.mxu0 0.0
        %3296 = vmatprep.subr.mxu0 0.0
        %3297 = vmatpush1.msra.mxu0 0.0
        %3298 = vmatprep.mubr.f32.mxu0 0.0
        %3299 = vmatmul.mubr.f32.gmra.mrb[0].mxu0 %v3232
        %v3300 = vpop.f32.mrb[0].mxu0
        %v3301 = vadd.f32 0.0, %v3300
        %v3302 = vpop.f32.mrb[0].mxu0
        %3303 = vdwg.mxu0
        %3304 = vmatprep.subr.mxu0 0.0
        %3305 = vmatpush1.msra.mxu0 %v555
        %3306 = vmatprep.subr.mxu0 0.0
        %3307 = vmatpush1.msra.mxu0 %v556
        %3308 = vmatprep.subr.mxu0 0.0
        %3309 = vmatpush1.msra.mxu0 %v557
        %3310 = vmatprep.subr.mxu0 0.0
        %3311 = vmatpush1.msra.mxu0 %v558
        %3312 = vmatprep.subr.mxu0 0.0
        %3313 = vmatpush1.msra.mxu0 %v559
        %3314 = vmatprep.subr.mxu0 0.0
        %3315 = vmatpush1.msra.mxu0 %v560
        %3316 = vmatprep.subr.mxu0 0.0
        %3317 = vmatpush1.msra.mxu0 %v561
        %3318 = vmatprep.subr.mxu0 0.0
        %3319 = vmatpush1.msra.mxu0 %v562
        %3320 = vmatprep.subr.mxu0 0.0
        %3321 = vmatpush1.msra.mxu0 %v563
        %3322 = vmatprep.subr.mxu0 0.0
        %3323 = vmatpush1.msra.mxu0 %v564
        %3324 = vmatprep.subr.mxu0 0.0
        %3325 = vmatpush1.msra.mxu0 %v565
        %3326 = vmatprep.subr.mxu0 0.0
        %3327 = vmatpush1.msra.mxu0 %v566
        %3328 = vmatprep.subr.mxu0 0.0
        %3329 = vmatpush1.msra.mxu0 %v567
        %3330 = vmatprep.subr.mxu0 0.0
        %3331 = vmatpush1.msra.mxu0 %v568
        %3332 = vmatprep.subr.mxu0 0.0
        %3333 = vmatpush1.msra.mxu0 %v569
        %3334 = vmatprep.subr.mxu0 0.0
        %3335 = vmatpush1.msra.mxu0 %v570
        %3336 = vmatprep.subr.mxu0 0.0
        %3337 = vmatpush1.msra.mxu0 0.0
        %3338 = vmatprep.subr.mxu0 0.0
        %3339 = vmatpush1.msra.mxu0 0.0
        %3340 = vmatprep.subr.mxu0 0.0
        %3341 = vmatpush1.msra.mxu0 0.0
        %3342 = vmatprep.subr.mxu0 0.0
        %3343 = vmatpush1.msra.mxu0 0.0
        %3344 = vmatprep.subr.mxu0 0.0
        %3345 = vmatpush1.msra.mxu0 0.0
        %3346 = vmatprep.subr.mxu0 0.0
        %3347 = vmatpush1.msra.mxu0 0.0
        %3348 = vmatprep.subr.mxu0 0.0
        %3349 = vmatpush1.msra.mxu0 0.0
        %3350 = vmatprep.subr.mxu0 0.0
        %3351 = vmatpush1.msra.mxu0 0.0
        %3352 = vmatprep.subr.mxu0 0.0
        %3353 = vmatpush1.msra.mxu0 0.0
        %3354 = vmatprep.subr.mxu0 0.0
        %3355 = vmatpush1.msra.mxu0 0.0
        %3356 = vmatprep.subr.mxu0 0.0
        %3357 = vmatpush1.msra.mxu0 0.0
        %3358 = vmatprep.subr.mxu0 0.0
        %3359 = vmatpush1.msra.mxu0 0.0
        %3360 = vmatprep.subr.mxu0 0.0
        %3361 = vmatpush1.msra.mxu0 0.0
        %3362 = vmatprep.subr.mxu0 0.0
        %3363 = vmatpush1.msra.mxu0 0.0
        %3364 = vmatprep.subr.mxu0 0.0
        %3365 = vmatpush1.msra.mxu0 0.0
        %3366 = vmatprep.subr.mxu0 0.0
        %3367 = vmatpush1.msra.mxu0 0.0
        %3368 = vmatprep.mubr.f32.mxu0 0.0
        %3369 = vmatmul.mubr.f32.gmra.mrb[0].mxu0 %v3232
        %v3370 = vpop.f32.mrb[0].mxu0
        %v3371 = vadd.f32 0.0, %v3370
        %v3372 = vpop.f32.mrb[0].mxu0
        %3373 = vdwg.mxu0
        %3374 = vmatprep.subr.mxu0 0.0
        %3375 = vmatpush1.msra.mxu0 %v642
        %3376 = vmatprep.subr.mxu0 0.0
        %3377 = vmatpush1.msra.mxu0 %v643
        %3378 = vmatprep.subr.mxu0 0.0
        %3379 = vmatpush1.msra.mxu0 %v644
        %3380 = vmatprep.subr.mxu0 0.0
        %3381 = vmatpush1.msra.mxu0 %v645
        %3382 = vmatprep.subr.mxu0 0.0
        %3383 = vmatpush1.msra.mxu0 %v646
        %3384 = vmatprep.subr.mxu0 0.0
        %3385 = vmatpush1.msra.mxu0 %v647
        %3386 = vmatprep.subr.mxu0 0.0
        %3387 = vmatpush1.msra.mxu0 %v648
        %3388 = vmatprep.subr.mxu0 0.0
        %3389 = vmatpush1.msra.mxu0 %v649
        %3390 = vmatprep.subr.mxu0 0.0
        %3391 = vmatpush1.msra.mxu0 %v650
        %3392 = vmatprep.subr.mxu0 0.0
        %3393 = vmatpush1.msra.mxu0 %v651
        %3394 = vmatprep.subr.mxu0 0.0
        %3395 = vmatpush1.msra.mxu0 %v652
        %3396 = vmatprep.subr.mxu0 0.0
        %3397 = vmatpush1.msra.mxu0 %v653
        %3398 = vmatprep.subr.mxu0 0.0
        %3399 = vmatpush1.msra.mxu0 %v654
        %3400 = vmatprep.subr.mxu0 0.0
        %3401 = vmatpush1.msra.mxu0 %v655
        %3402 = vmatprep.subr.mxu0 0.0
        %3403 = vmatpush1.msra.mxu0 %v656
        %3404 = vmatprep.subr.mxu0 0.0
        %3405 = vmatpush1.msra.mxu0 %v657
        %3406 = vmatprep.subr.mxu0 0.0
        %3407 = vmatpush1.msra.mxu0 0.0
        %3408 = vmatprep.subr.mxu0 0.0
        %3409 = vmatpush1.msra.mxu0 0.0
        %3410 = vmatprep.subr.mxu0 0.0
        %3411 = vmatpush1.msra.mxu0 0.0
        %3412 = vmatprep.subr.mxu0 0.0
        %3413 = vmatpush1.msra.mxu0 0.0
        %3414 = vmatprep.subr.mxu0 0.0
        %3415 = vmatpush1.msra.mxu0 0.0
        %3416 = vmatprep.subr.mxu0 0.0
        %3417 = vmatpush1.msra.mxu0 0.0
        %3418 = vmatprep.subr.mxu0 0.0
        %3419 = vmatpush1.msra.mxu0 0.0
        %3420 = vmatprep.subr.mxu0 0.0
        %3421 = vmatpush1.msra.mxu0 0.0
        %3422 = vmatprep.subr.mxu0 0.0
        %3423 = vmatpush1.msra.mxu0 0.0
        %3424 = vmatprep.subr.mxu0 0.0
        %3425 = vmatpush1.msra.mxu0 0.0
        %3426 = vmatprep.subr.mxu0 0.0
        %3427 = vmatpush1.msra.mxu0 0.0
        %3428 = vmatprep.subr.mxu0 0.0
        %3429 = vmatpush1.msra.mxu0 0.0
        %3430 = vmatprep.subr.mxu0 0.0
        %3431 = vmatpush1.msra.mxu0 0.0
        %3432 = vmatprep.subr.mxu0 0.0
        %3433 = vmatpush1.msra.mxu0 0.0
        %3434 = vmatprep.subr.mxu0 0.0
        %3435 = vmatpush1.msra.mxu0 0.0
        %3436 = vmatprep.subr.mxu0 0.0
        %3437 = vmatpush1.msra.mxu0 0.0
        %3438 = vmatprep.mubr.f32.mxu0 0.0
        %3439 = vmatmul.mubr.f32.gmra.mrb[0].mxu0 %v3232
        %v3440 = vpop.f32.mrb[0].mxu0
        %v3441 = vadd.f32 0.0, %v3440
        %v3442 = vpop.f32.mrb[0].mxu0
        %3443 = vdwg.mxu0
        %3444 = vmatprep.subr.mxu0 0.0
        %3445 = vmatpush1.msra.mxu0 %v729
        %3446 = vmatprep.subr.mxu0 0.0
        %3447 = vmatpush1.msra.mxu0 %v730
        %3448 = vmatprep.subr.mxu0 0.0
        %3449 = vmatpush1.msra.mxu0 %v731
        %3450 = vmatprep.subr.mxu0 0.0
        %3451 = vmatpush1.msra.mxu0 %v732
        %3452 = vmatprep.subr.mxu0 0.0
        %3453 = vmatpush1.msra.mxu0 %v733
        %3454 = vmatprep.subr.mxu0 0.0
        %3455 = vmatpush1.msra.mxu0 %v734
        %3456 = vmatprep.subr.mxu0 0.0
        %3457 = vmatpush1.msra.mxu0 %v735
        %3458 = vmatprep.subr.mxu0 0.0
        %3459 = vmatpush1.msra.mxu0 %v736
        %3460 = vmatprep.subr.mxu0 0.0
        %3461 = vmatpush1.msra.mxu0 %v737
        %3462 = vmatprep.subr.mxu0 0.0
        %3463 = vmatpush1.msra.mxu0 %v738
        %3464 = vmatprep.subr.mxu0 0.0
        %3465 = vmatpush1.msra.mxu0 %v739
        %3466 = vmatprep.subr.mxu0 0.0
        %3467 = vmatpush1.msra.mxu0 %v740
        %3468 = vmatprep.subr.mxu0 0.0
        %3469 = vmatpush1.msra.mxu0 %v741
        %3470 = vmatprep.subr.mxu0 0.0
        %3471 = vmatpush1.msra.mxu0 %v742
        %3472 = vmatprep.subr.mxu0 0.0
        %3473 = vmatpush1.msra.mxu0 %v743
        %3474 = vmatprep.subr.mxu0 0.0
        %3475 = vmatpush1.msra.mxu0 %v744
        %3476 = vmatprep.subr.mxu0 0.0
        %3477 = vmatpush1.msra.mxu0 0.0
        %3478 = vmatprep.subr.mxu0 0.0
        %3479 = vmatpush1.msra.mxu0 0.0
        %3480 = vmatprep.subr.mxu0 0.0
        %3481 = vmatpush1.msra.mxu0 0.0
        %3482 = vmatprep.subr.mxu0 0.0
        %3483 = vmatpush1.msra.mxu0 0.0
        %3484 = vmatprep.subr.mxu0 0.0
        %3485 = vmatpush1.msra.mxu0 0.0
        %3486 = vmatprep.subr.mxu0 0.0
        %3487 = vmatpush1.msra.mxu0 0.0
        %3488 = vmatprep.subr.mxu0 0.0
        %3489 = vmatpush1.msra.mxu0 0.0
        %3490 = vmatprep.subr.mxu0 0.0
        %3491 = vmatpush1.msra.mxu0 0.0
        %3492 = vmatprep.subr.mxu0 0.0
        %3493 = vmatpush1.msra.mxu0 0.0
        %3494 = vmatprep.subr.mxu0 0.0
        %3495 = vmatpush1.msra.mxu0 0.0
        %3496 = vmatprep.subr.mxu0 0.0
        %3497 = vmatpush1.msra.mxu0 0.0
        %3498 = vmatprep.subr.mxu0 0.0
        %3499 = vmatpush1.msra.mxu0 0.0
        %3500 = vmatprep.subr.mxu0 0.0
        %3501 = vmatpush1.msra.mxu0 0.0
        %3502 = vmatprep.subr.mxu0 0.0
        %3503 = vmatpush1.msra.mxu0 0.0
        %3504 = vmatprep.subr.mxu0 0.0
        %3505 = vmatpush1.msra.mxu0 0.0
        %3506 = vmatprep.subr.mxu0 0.0
        %3507 = vmatpush1.msra.mxu0 0.0
        %3508 = vmatprep.mubr.f32.mxu0 0.0
        %3509 = vmatmul.mubr.f32.gmra.mrb[0].mxu0 %v3232
        %v3510 = vpop.f32.mrb[0].mxu0
        %v3511 = vadd.f32 0.0, %v3510
        %v3512 = vpop.f32.mrb[0].mxu0
        %3513 = vdwg.mxu0
        %3515 = vset.pattern.permute.xlu0 0
        %3516 = vperm.xlu0 %3515, %v3217
        %v3517 = vpop.permute.xlu0 %3516
        %v3520 = vsel %vm1548, %v3216, 0
        %3522 = vmatprep.subr.mxu0 0.0
        %3523 = vmatpush1.msra.mxu0 %v3232
        %3524 = vmatprep.subr.mxu0 0.0
        %3525 = vmatpush1.msra.mxu0 %v3301
        %3526 = vmatprep.subr.mxu0 0.0
        %3527 = vmatpush1.msra.mxu0 %v3371
        %3528 = vmatprep.subr.mxu0 0.0
        %3529 = vmatpush1.msra.mxu0 %v3441
        %3530 = vmatprep.subr.mxu0 0.0
        %3531 = vmatpush1.msra.mxu0 %v3511
        %3532 = vmatprep.subr.mxu0 0.0
        %3533 = vmatpush1.msra.mxu0 0.0
        %3534 = vmatprep.subr.mxu0 0.0
        %3535 = vmatpush1.msra.mxu0 0.0
        %3536 = vmatprep.subr.mxu0 0.0
        %3537 = vmatpush1.msra.mxu0 0.0
        %3538 = vmatprep.subr.mxu0 0.0
        %3539 = vmatpush1.msra.mxu0 0.0
        %3540 = vmatprep.subr.mxu0 0.0
        %3541 = vmatpush1.msra.mxu0 0.0
        %3542 = vmatprep.subr.mxu0 0.0
        %3543 = vmatpush1.msra.mxu0 0.0
        %3544 = vmatprep.subr.mxu0 0.0
        %3545 = vmatpush1.msra.mxu0 0.0
        %3546 = vmatprep.subr.mxu0 0.0
        %3547 = vmatpush1.msra.mxu0 0.0
        %3548 = vmatprep.subr.mxu0 0.0
        %3549 = vmatpush1.msra.mxu0 0.0
        %3550 = vmatprep.subr.mxu0 0.0
        %3551 = vmatpush1.msra.mxu0 0.0
        %3552 = vmatprep.subr.mxu0 0.0
        %3553 = vmatpush1.msra.mxu0 0.0
        %3554 = vmatprep.subr.mxu0 0.0
        %3555 = vmatpush1.msra.mxu0 0.0
        %3556 = vmatprep.subr.mxu0 0.0
        %3557 = vmatpush1.msra.mxu0 0.0
        %3558 = vmatprep.subr.mxu0 0.0
        %3559 = vmatpush1.msra.mxu0 0.0
        %3560 = vmatprep.subr.mxu0 0.0
        %3561 = vmatpush1.msra.mxu0 0.0
        %3562 = vmatprep.subr.mxu0 0.0
        %3563 = vmatpush1.msra.mxu0 0.0
        %3564 = vmatprep.subr.mxu0 0.0
        %3565 = vmatpush1.msra.mxu0 0.0
        %3566 = vmatprep.subr.mxu0 0.0
        %3567 = vmatpush1.msra.mxu0 0.0
        %3568 = vmatprep.subr.mxu0 0.0
        %3569 = vmatpush1.msra.mxu0 0.0
        %3570 = vmatprep.subr.mxu0 0.0
        %3571 = vmatpush1.msra.mxu0 0.0
        %3572 = vmatprep.subr.mxu0 0.0
        %3573 = vmatpush1.msra.mxu0 0.0
        %3574 = vmatprep.subr.mxu0 0.0
        %3575 = vmatpush1.msra.mxu0 0.0
        %3576 = vmatprep.subr.mxu0 0.0
        %3577 = vmatpush1.msra.mxu0 0.0
        %3578 = vmatprep.subr.mxu0 0.0
        %3579 = vmatpush1.msra.mxu0 0.0
        %3580 = vmatprep.subr.mxu0 0.0
        %3581 = vmatpush1.msra.mxu0 0.0
        %3582 = vmatprep.subr.mxu0 0.0
        %3583 = vmatpush1.msra.mxu0 0.0
        %3584 = vmatprep.subr.mxu0 0.0
        %3585 = vmatpush1.msra.mxu0 0.0
        %3586 = vmatprep.mubr.f32.mxu0 0.0
        %3587 = vmatmul.mubr.f32.gmra.mrb[0].mxu0 %v3520
        %v3588 = vpop.f32.mrb[0].mxu0
        %v3589 = vadd.f32 %v3517, %v3588
        %v3590 = vpop.f32.mrb[0].mxu0
        %3591 = vdwg.mxu0
        %v3592 = vmax.f32 %v3589, 0.0
        %vm3593 = vcmp.ne.f32.partialorder %v3589, %v3589
        %v3594 = vadd.f32 %v3589, 0.0
        %v3595 = vand.u32 2147483647, %v3589
        %v3596 = vsub.f32 0.0, %v3595
        %v3597 = vmul.f32 %v3596, 1.442695
        %v3598 = vpow.pop %v3597
        %v3599 = vadd.f32 %v3598, 1.0
        %v3600 = vlog2.pop %v3599
        %v3601 = vmul.f32 %v3600, 0.6931472
        %v3602 = vmul.f32 -0.5, %v3598
        %v3603 = vadd.f32 %v3602, 1.0
        %v3604 = vmul.f32 %v3603, %v3598
        %v3605 = vand.u32 2147483647, %v3598
        %vm3606 = vcmp.lt.f32.partialorder %v3605, 0.0004427343
        %v3607 = vsel %vm3606, %v3604, %v3601
        %v3608 = vadd.f32 %v3592, %v3607
        %v3609 = vsel %vm3593, %v3594, %v3608
        %v3610 = vrot.slane %v3609, 4
        %v3611 = vadd.f32 %v3609, %v3610
        %v3612 = vrot.slane %v3611, 2
        %v3613 = vadd.f32 %v3611, %v3612
        %v3614 = vrot.slane %v3613, 1
        %v3615 = vadd.f32 %v3613, %v3614
        %v3616 = vld [vmem:[#allocation2] sm:$0xff]
        %v3617 = vld [vmem:[#allocation2 + $0x8] sm:$0xff]
        %v3618 = vld [vmem:[#allocation2 + $0x10] sm:$0xff]
        %v3619 = vld [vmem:[#allocation2 + $0x18] sm:$0xff]
        %v3620 = vld [vmem:[#allocation2 + $0x20] sm:$0xff]
        %v3621 = vld [vmem:[#allocation2 + $0x28] sm:$0xff]
        %v3622 = vld [vmem:[#allocation2 + $0x30] sm:$0xff]
        %v3623 = vld [vmem:[#allocation2 + $0x38] sm:$0xff]
        %v3624 = vld [vmem:[#allocation2 + $0x40] sm:$0xff]
        %v3625 = vld [vmem:[#allocation2 + $0x48] sm:$0xff]
        %v3626 = vld [vmem:[#allocation2 + $0x50] sm:$0xff]
        %v3627 = vld [vmem:[#allocation2 + $0x58] sm:$0xff]
        %v3628 = vld [vmem:[#allocation2 + $0x60] sm:$0xff]
        %v3629 = vld [vmem:[#allocation2 + $0x68] sm:$0xff]
        %v3630 = vld [vmem:[#allocation2 + $0x70] sm:$0xff]
        %v3631 = vld [vmem:[#allocation2 + $0x78] sm:$0xff]
        %v3632 = vld [vmem:[#allocation2 + $0x80] sm:$0xff]
        %v3633 = vld [vmem:[#allocation2 + $0x88] sm:$0xff]
        %v3634 = vld [vmem:[#allocation2 + $0x90] sm:$0xff]
        %v3635 = vld [vmem:[#allocation2 + $0x98] sm:$0xff]
        %v3636 = vld [vmem:[#allocation2 + $0xa0] sm:$0xff]
        %v3637 = vld [vmem:[#allocation2 + $0xa8] sm:$0xff]
        %v3638 = vld [vmem:[#allocation2 + $0xb0] sm:$0xff]
        %v3639 = vld [vmem:[#allocation2 + $0xb8] sm:$0xff]
        %v3640 = vld [vmem:[#allocation2 + $0xc0] sm:$0xff]
        %v3641 = vld [vmem:[#allocation2 + $0xc8] sm:$0xff]
        %v3642 = vld [vmem:[#allocation2 + $0xd0] sm:$0xff]
        %v3643 = vld [vmem:[#allocation2 + $0xd8] sm:$0xff]
        %v3644 = vld [vmem:[#allocation2 + $0xe0] sm:$0xff]
        %v3645 = vld [vmem:[#allocation2 + $0xe8] sm:$0xff]
        %v3646 = vld [vmem:[#allocation2 + $0xf0] sm:$0xff]
        %v3647 = vld [vmem:[#allocation2 + $0xf8] sm:$0xff]
        %v3648 = vld [vmem:[#allocation2 + $0x100] sm:$0xff]
        %v3649 = vld [vmem:[#allocation2 + $0x108] sm:$0xff]
        %v3650 = vld [vmem:[#allocation2 + $0x110] sm:$0xff]
        %v3651 = vld [vmem:[#allocation2 + $0x118] sm:$0xff]
        %v3652 = vld [vmem:[#allocation2 + $0x120] sm:$0xff]
        %v3653 = vld [vmem:[#allocation2 + $0x128] sm:$0xff]
        %v3654 = vld [vmem:[#allocation2 + $0x130] sm:$0xff]
        %v3655 = vld [vmem:[#allocation2 + $0x138] sm:$0xff]
        %v3656 = vld [vmem:[#allocation2 + $0x140] sm:$0xff]
        %v3657 = vld [vmem:[#allocation2 + $0x148] sm:$0xff]
        %v3658 = vld [vmem:[#allocation2 + $0x150] sm:$0xff]
        %v3659 = vld [vmem:[#allocation2 + $0x158] sm:$0xff]
        %v3660 = vld [vmem:[#allocation2 + $0x160] sm:$0xff]
        %v3661 = vld [vmem:[#allocation2 + $0x168] sm:$0xff]
        %v3662 = vld [vmem:[#allocation2 + $0x170] sm:$0xff]
        %v3663 = vld [vmem:[#allocation2 + $0x178] sm:$0xff]
        %3664 = vmatprep.subr.mxu0 %v3617
        %3665 = vmatpush1.msra.mxu0 %v3616
        %3666 = vmatprep.subr.mxu0 %v3620
        %3667 = vmatpush1.msra.mxu0 %v3619
        %3668 = vmatprep.subr.mxu0 %v3623
        %3669 = vmatpush1.msra.mxu0 %v3622
        %3670 = vmatprep.subr.mxu0 %v3626
        %3671 = vmatpush1.msra.mxu0 %v3625
        %3672 = vmatprep.subr.mxu0 %v3629
        %3673 = vmatpush1.msra.mxu0 %v3628
        %3674 = vmatprep.subr.mxu0 %v3632
        %3675 = vmatpush1.msra.mxu0 %v3631
        %3676 = vmatprep.subr.mxu0 %v3635
        %3677 = vmatpush1.msra.mxu0 %v3634
        %3678 = vmatprep.subr.mxu0 %v3638
        %3679 = vmatpush1.msra.mxu0 %v3637
        %3680 = vmatprep.subr.mxu0 %v3641
        %3681 = vmatpush1.msra.mxu0 %v3640
        %3682 = vmatprep.subr.mxu0 %v3644
        %3683 = vmatpush1.msra.mxu0 %v3643
        %3684 = vmatprep.subr.mxu0 %v3647
        %3685 = vmatpush1.msra.mxu0 %v3646
        %3686 = vmatprep.subr.mxu0 %v3650
        %3687 = vmatpush1.msra.mxu0 %v3649
        %3688 = vmatprep.subr.mxu0 %v3653
        %3689 = vmatpush1.msra.mxu0 %v3652
        %3690 = vmatprep.subr.mxu0 %v3656
        %3691 = vmatpush1.msra.mxu0 %v3655
        %3692 = vmatprep.subr.mxu0 %v3659
        %3693 = vmatpush1.msra.mxu0 %v3658
        %3694 = vmatprep.subr.mxu0 %v3662
        %3695 = vmatpush1.msra.mxu0 %v3661
        %3696 = vmatprep.subr.mxu0 0.0
        %3697 = vmatpush1.msra.mxu0 0.0
        %3698 = vmatprep.subr.mxu0 0.0
        %3699 = vmatpush1.msra.mxu0 0.0
        %3700 = vmatprep.subr.mxu0 0.0
        %3701 = vmatpush1.msra.mxu0 0.0
        %3702 = vmatprep.subr.mxu0 0.0
        %3703 = vmatpush1.msra.mxu0 0.0
        %3704 = vmatprep.subr.mxu0 0.0
        %3705 = vmatpush1.msra.mxu0 0.0
        %3706 = vmatprep.subr.mxu0 0.0
        %3707 = vmatpush1.msra.mxu0 0.0
        %3708 = vmatprep.subr.mxu0 0.0
        %3709 = vmatpush1.msra.mxu0 0.0
        %3710 = vmatprep.subr.mxu0 0.0
        %3711 = vmatpush1.msra.mxu0 0.0
        %3712 = vmatprep.subr.mxu0 0.0
        %3713 = vmatpush1.msra.mxu0 0.0
        %3714 = vmatprep.subr.mxu0 0.0
        %3715 = vmatpush1.msra.mxu0 0.0
        %3716 = vmatprep.subr.mxu0 0.0
        %3717 = vmatpush1.msra.mxu0 0.0
        %3718 = vmatprep.subr.mxu0 0.0
        %3719 = vmatpush1.msra.mxu0 0.0
        %3720 = vmatprep.subr.mxu0 0.0
        %3721 = vmatpush1.msra.mxu0 0.0
        %3722 = vmatprep.subr.mxu0 0.0
        %3723 = vmatpush1.msra.mxu0 0.0
        %3724 = vmatprep.subr.mxu0 0.0
        %3725 = vmatpush1.msra.mxu0 0.0
        %3726 = vmatprep.subr.mxu0 0.0
        %3727 = vmatpush1.msra.mxu0 0.0
        %3728 = vmatprep.mubr.f32.mxu0 0.0
        %3729 = vmatmul.mubr.f32.gmra.mrb[0].mxu0 %v3615
        %v3730 = vpop.f32.mrb[0].mxu0
        %v3731 = vadd.f32 0.0, %v3730
        %v3732 = vpop.f32.mrb[0].mxu0
        %v3733 = vadd.f32 0.0, %v3732
        %3734 = vdwg.mxu0
        %3735 = vmatprep.subr.mxu0 0.0
        %3736 = vmatpush1.msra.mxu0 %v3618
        %3737 = vmatprep.subr.mxu0 0.0
        %3738 = vmatpush1.msra.mxu0 %v3621
        %3739 = vmatprep.subr.mxu0 0.0
        %3740 = vmatpush1.msra.mxu0 %v3624
        %3741 = vmatprep.subr.mxu0 0.0
        %3742 = vmatpush1.msra.mxu0 %v3627
        %3743 = vmatprep.subr.mxu0 0.0
        %3744 = vmatpush1.msra.mxu0 %v3630
        %3745 = vmatprep.subr.mxu0 0.0
        %3746 = vmatpush1.msra.mxu0 %v3633
        %3747 = vmatprep.subr.mxu0 0.0
        %3748 = vmatpush1.msra.mxu0 %v3636
        %3749 = vmatprep.subr.mxu0 0.0
        %3750 = vmatpush1.msra.mxu0 %v3639
        %3751 = vmatprep.subr.mxu0 0.0
        %3752 = vmatpush1.msra.mxu0 %v3642
        %3753 = vmatprep.subr.mxu0 0.0
        %3754 = vmatpush1.msra.mxu0 %v3645
        %3755 = vmatprep.subr.mxu0 0.0
        %3756 = vmatpush1.msra.mxu0 %v3648
        %3757 = vmatprep.subr.mxu0 0.0
        %3758 = vmatpush1.msra.mxu0 %v3651
        %3759 = vmatprep.subr.mxu0 0.0
        %3760 = vmatpush1.msra.mxu0 %v3654
        %3761 = vmatprep.subr.mxu0 0.0
        %3762 = vmatpush1.msra.mxu0 %v3657
        %3763 = vmatprep.subr.mxu0 0.0
        %3764 = vmatpush1.msra.mxu0 %v3660
        %3765 = vmatprep.subr.mxu0 0.0
        %3766 = vmatpush1.msra.mxu0 %v3663
        %3767 = vmatprep.subr.mxu0 0.0
        %3768 = vmatpush1.msra.mxu0 0.0
        %3769 = vmatprep.subr.mxu0 0.0
        %3770 = vmatpush1.msra.mxu0 0.0
        %3771 = vmatprep.subr.mxu0 0.0
        %3772 = vmatpush1.msra.mxu0 0.0
        %3773 = vmatprep.subr.mxu0 0.0
        %3774 = vmatpush1.msra.mxu0 0.0
        %3775 = vmatprep.subr.mxu0 0.0
        %3776 = vmatpush1.msra.mxu0 0.0
        %3777 = vmatprep.subr.mxu0 0.0
        %3778 = vmatpush1.msra.mxu0 0.0
        %3779 = vmatprep.subr.mxu0 0.0
        %3780 = vmatpush1.msra.mxu0 0.0
        %3781 = vmatprep.subr.mxu0 0.0
        %3782 = vmatpush1.msra.mxu0 0.0
        %3783 = vmatprep.subr.mxu0 0.0
        %3784 = vmatpush1.msra.mxu0 0.0
        %3785 = vmatprep.subr.mxu0 0.0
        %3786 = vmatpush1.msra.mxu0 0.0
        %3787 = vmatprep.subr.mxu0 0.0
        %3788 = vmatpush1.msra.mxu0 0.0
        %3789 = vmatprep.subr.mxu0 0.0
        %3790 = vmatpush1.msra.mxu0 0.0
        %3791 = vmatprep.subr.mxu0 0.0
        %3792 = vmatpush1.msra.mxu0 0.0
        %3793 = vmatprep.subr.mxu0 0.0
        %3794 = vmatpush1.msra.mxu0 0.0
        %3795 = vmatprep.subr.mxu0 0.0
        %3796 = vmatpush1.msra.mxu0 0.0
        %3797 = vmatprep.subr.mxu0 0.0
        %3798 = vmatpush1.msra.mxu0 0.0
        %3799 = vmatprep.mubr.f32.mxu0 0.0
        %3800 = vmatmul.mubr.f32.gmra.mrb[0].mxu0 %v3615
        %v3801 = vpop.f32.mrb[0].mxu0
        %v3802 = vadd.f32 0.0, %v3801
        %v3803 = vpop.f32.mrb[0].mxu0
        %3804 = vdwg.mxu0
        %v3808 = vcombine.low %v3731, %v3733
        %v3810 = vunpack.c.l.s4 1966171168
        %v3811 = vunpack.c.0.s8 %v3810
        %v3812 = vlaneseq
        %v3813 = vshrl.u32 %v3812, 7
        %v3814 = vsub.s32 %v3811, %v3813
        %v3815 = vrot.slane %v3808, %v3814
        %v3817 = vunpack.c.l.s4 1966171168
        %v3818 = vunpack.c.0.s8 %v3817
        %v3819 = vlaneseq
        %v3820 = vshrl.u32 %v3819, 7
        %v3821 = vsub.s32 %v3818, %v3820
        %v3822 = vrot.slane %v3802, %v3821
        %v3823 = vcombine.low %v3815, %v3822
        %v3825 = vunpack.c.l.s4 1966171168
        %v3826 = vunpack.c.0.s8 %v3825
        %v3827 = vlaneseq
        %v3828 = vshrl.u32 %v3827, 7
        %v3829 = vsub.s32 %v3826, %v3828
        %v3830 = vrot.slane %v3823, %v3829
        %v3832 = vlaneseq
        %vm3833 = vcmp.ge.s32.totalorder %v3832, 0
        %vm3834 = vcmp.lt.s32.totalorder %v3832, 384
        %vm3835 = vmand %vm3833, %vm3834
        %3836 = vst.msk [vmem:[%s446] sm:$0x7] %vm3835, %v3830
        %s3837 = sand.u32 %s314, 1
        %s3838 = scalar_lea.sflag [#allocation4], %s3837
        %s3839 = sand.u32 %s314, 1
        %s3840 = smul.addr %s3839, 3
        %s3841 = scalar_lea.vmem [#allocation5], %s3840
        // Predicated region
        $region77: #{tpu_custom_call.1} parent=71 // pred_check
          %p3842 = pneg %p324
        $region78: #{tpu_custom_call.1} parent=71 // pred_check_branch
          %3844 = sbr.rel (%p3842) target = $region80
        $region79: #{tpu_custom_call.1} parent=71 // pred_region
          %s3846 = ssub.s32 48, 48
          %3847 = vsyncadd %s3838, %s3846
          %s3848 = smul.addr %s28, 3
          %s3849 = smul.addr %s3848, 16
          %s3850 = scalar_lea.hbm %s13, %s3849
          %s3852 = sshll.u32 %s3841, 4
          %s3853 = int_to_ptr.vmem [resolvable:$true] %s3852
          %3855 = dma.vmem_to_hbm [thread:$0]  %s3853, 48, %s3850, %s3838
        $region80: #{tpu_custom_call.1} parent=71 // pred_fallthru
          _
      $region72: #{tpu_custom_call.1} parent=5 // pred_fallthru
        _
      %p3856 = scmp.le.s32.totalorder 2, %s23
      // Predicated region
      $region81: #{tpu_custom_call.1} parent=5 // pred_check
        %p3857 = pneg %p3856
      $region82: #{tpu_custom_call.1} parent=5 // pred_check_branch
        %3859 = sbr.rel (%p3857) target = $region84
      $region83: #{tpu_custom_call.1} parent=5 // pred_region
        %s3860 = ssub.s32 %s23, 2
        // Predicated region
        $region85: #{tpu_custom_call.1} parent=83 // pred_check
          %p3861 = pneg %p330
        $region86: #{tpu_custom_call.1} parent=83 // pred_check_branch
          %3863 = sbr.rel (%p3861) target = $region88
        $region87: #{tpu_custom_call.1} parent=83 // pred_region
          %s3864 = sand.u32 %s315, 1
          %s3865 = scalar_lea.sflag [#allocation4], %s3864
          %s3866 = sand.u32 %s315, 1
          %s3867 = smul.addr %s3866, 3
          %s3868 = scalar_lea.vmem [#allocation5], %s3867
          %3869 = dma.done %s3865, 48
        $region88: #{tpu_custom_call.1} parent=83 // pred_fallthru
          _
      $region84: #{tpu_custom_call.1} parent=5 // pred_fallthru
        _
    $region6: #{tpu_custom_call.1} parent=1 // loop_footer
      %s27 = sadd.s32 1, %s23
    $region7: #{tpu_custom_call.1} parent=1 // loop_footer_branch
      %22 = sbr.rel target = $region3
    $region8: #{tpu_custom_call.1} parent=1 // loop_exit
      _
    %3870 = vsyncpa [#allocation3], 1
    %s3871 = scalar_lea.sflag [#allocation3], 1
    %3872 = vsyncpa %s3871, 1
    %3873 = vsyncpa [#allocation4], 1
    %s3874 = scalar_lea.sflag [#allocation4], 1
    %3875 = vsyncpa %s3874, 1

</llo_original>
